<compile_context>
chip_gen: v7x
topology: tpu7x:2x2x1
jax: 0.10.0
libtpu: 0.0.40
codegen_flags: <defaults>
</compile_context>

<pallas_src>
import functools

import jax
import jax.numpy as jnp
from jax.experimental import pallas as pl
from jax.experimental.pallas import tpu as pltpu

WINDOW_SIZE = 11
SIGMA = 1.5
C1 = 0.01 ** 2
C2 = 0.03 ** 2


def _gaussian_band_matrix(n, window_size=WINDOW_SIZE, sigma=SIGMA):
    """Banded matrix K (n, n) such that K @ v == 1-D 'same' gaussian conv of v."""
    k = jnp.arange(window_size, dtype=jnp.float32)
    g = jnp.exp(-((k - window_size // 2) ** 2) / (2.0 * sigma ** 2))
    g = g / jnp.sum(g)                               # normalized gaussian window
    pad = window_size // 2
    idx = jnp.arange(n)
    diff = idx[None, :] - idx[:, None] + pad         # K[i, j] = g[j - i + pad]
    valid = (diff >= 0) & (diff < window_size)
    K = jnp.where(valid, g[jnp.clip(diff, 0, window_size - 1)], 0.0)
    return K.astype(jnp.float32)                     # symmetric


def _lsloss_kernel(x_ref, y_ref, kw_ref, kh_ref, mask_ref, l1_ref, ssim_ref,
                   *, td, c, h, w, L):
    j = pl.program_id(0)

    x = x_ref[...]          # (td, c, h, w) f32
    y = y_ref[...]

    # ---- L1 partial: padded depth slices are zero in both inputs -> add 0 ----
    l1_ref[...] = jnp.full((1, 8, 128), jnp.sum(jnp.abs(x - y)), jnp.float32)

    # default: no SSIM contribution from this step
    ssim_ref[...] = jnp.zeros((1, 8, 128), jnp.float32)

    # ---- SSIM partial (skip the step entirely if all its slices are >= L) ----
    @pl.when(j * td < L)
    def _():
        kw = kw_ref[...]    # (w, w) bf16, symmetric banded gaussian
        kh = kh_ref[...]    # (h, h) bf16

        m = td * c * h
        x2 = x.reshape(m, w)
        y2 = y.reshape(m, w)
        # Stack the five blur inputs for all td slices -> one tall matmul pair.
        s = jnp.concatenate([x2, y2, x2 * x2, y2 * y2, x2 * y2], axis=0)  # (5m, w)

        # Separable 11-tap gaussian, 'same' zero padding, as two MXU matmuls.
        t = jnp.dot(s.astype(jnp.bfloat16), kw,
                    preferred_element_type=jnp.float32)            # blur along w
        t = t.reshape(5 * td * c, h, w)
        t = jnp.transpose(t, (0, 2, 1))                             # single XLU transpose
        t = t.reshape(5 * td * c * w, h)
        t = jnp.dot(t.astype(jnp.bfloat16), kh,
                    preferred_element_type=jnp.float32)             # blur along h
        # Rows stay in (slice, channel, w) order, columns are h; everything
        # below is elementwise + a full sum, so layout is moot.

        n1 = td * c * w
        mu1 = t[0 * n1:1 * n1]
        mu2 = t[1 * n1:2 * n1]
        ex2 = t[2 * n1:3 * n1]
        ey2 = t[3 * n1:4 * n1]
        exy = t[4 * n1:5 * n1]

        mu1_sq = mu1 * mu1
        mu2_sq = mu2 * mu2
        mu1_mu2 = mu1 * mu2
        sigma1_sq = ex2 - mu1_sq
        sigma2_sq = ey2 - mu2_sq
        sigma12 = exy - mu1_mu2

        num = (2.0 * mu1_mu2 + C1) * (2.0 * sigma12 + C2)
        den = (mu1_sq + mu2_sq + C1) * (sigma1_sq + sigma2_sq + C2)
        smap = num * pl.reciprocal(den, approx=True)                # (n1, h)

        # Zero out depth slices >= L (covers both range(L) and the grid pad).
        smap = smap.reshape(td, c * w, h) * mask_ref[...]           # mask: (td, 1, 1)
        ssim_ref[...] = jnp.full((1, 8, 128), jnp.sum(smap), jnp.float32)


def lsloss_pallas(x, y, L=None, alpha=0.2):
    # x, y: (b, c, d, h, w) float32, b == 1
    b, c, d, h, w = x.shape
    assert b == 1, "lsloss squeezes dim 0; batch must be 1"
    if L is None:
        L = d                                          # module default (100) is tied to depth here
    L = int(L)
    assert L <= d

    x1 = jnp.transpose(x[0], (1, 0, 2, 3)).astype(jnp.float32)   # (d, c, h, w)
    y1 = jnp.transpose(y[0], (1, 0, 2, 3)).astype(jnp.float32)

    # Depth tile TD: amortize per-step overhead / fatten the MXU M dim, bounded
    # by a conservative per-step VMEM working-set budget (fits v7x's 64 MiB).
    slice_bytes = c * h * w * 4
    budget = 20 * 1024 * 1024
    td_max = max(1, budget // (40 * slice_bytes))
    td = max(1, min(td_max, -(-d // 2)))               # >= 2 grid steps when d > 1
    num_steps = -(-d // td)                            # cdiv
    d_pad = num_steps * td
    if d_pad != d:
        pad = jnp.zeros((d_pad - d, c, h, w), jnp.float32)
        x1 = jnp.concatenate([x1, pad], axis=0)
        y1 = jnp.concatenate([y1, pad], axis=0)

    kh = _gaussian_band_matrix(h).astype(jnp.bfloat16)
    kw = _gaussian_band_matrix(w).astype(jnp.bfloat16)
    # Per-depth-slice validity mask (1 for slices counted by the SSIM loop).
    valid = (jnp.arange(d_pad) < L).astype(jnp.float32).reshape(d_pad, 1, 1)

    kernel = functools.partial(_lsloss_kernel, td=td, c=c, h=h, w=w, L=L)

    l1_parts, ssim_parts = pl.pallas_call(
        kernel,
        out_shape=(jax.ShapeDtypeStruct((num_steps, 8, 128), jnp.float32),
                   jax.ShapeDtypeStruct((num_steps, 8, 128), jnp.float32)),
        grid=(num_steps,),
        in_specs=[
            pl.BlockSpec((td, c, h, w), lambda j: (j, 0, 0, 0)),
            pl.BlockSpec((td, c, h, w), lambda j: (j, 0, 0, 0)),
            pl.BlockSpec((w, w), lambda j: (0, 0)),
            pl.BlockSpec((h, h), lambda j: (0, 0)),
            pl.BlockSpec((td, 1, 1), lambda j: (j, 0, 0)),
        ],
        out_specs=(pl.BlockSpec((1, 8, 128), lambda j: (j, 0, 0)),
                   pl.BlockSpec((1, 8, 128), lambda j: (j, 0, 0))),
        compiler_params=pltpu.CompilerParams(
            dimension_semantics=("parallel",),
            vmem_limit_bytes=48 * 1024 * 1024),
    )(x1, y1, kw, kh, valid)

    # Final combine in plain JAX (per-step partials -> better precision and a
    # fully parallel depth axis inside the kernel).
    n_total = float(b * c * d * h * w)
    lossL = jnp.sum(l1_parts[:, 0, 0]) / n_total                 # F.l1_loss mean
    lossS = 1.0 - (jnp.sum(ssim_parts[:, 0, 0]) / float(c * h * w)) / float(L)
    return float(alpha) * lossL + (1.0 - float(alpha)) * lossS


# ------------------------- pure-JAX reference (sanity) -------------------------
def lsloss_ref(x, y, L, alpha):
    b, c, d, h, w = x.shape
    x1 = jnp.transpose(x[0], (1, 0, 2, 3))
    y1 = jnp.transpose(y[0], (1, 0, 2, 3))
    kh = _gaussian_band_matrix(h)
    kw = _gaussian_band_matrix(w)

    def blur(img):
        return jnp.einsum('ij,cjk,kl->cil', kh, img, kw)

    lossL = jnp.mean(jnp.abs(x - y))
    t_ssim = 0.0
    for i in range(L):
        xi, yi = x1[i], y1[i]
        mu1, mu2 = blur(xi), blur(yi)
        mu1_sq, mu2_sq, mu1_mu2 = mu1 * mu1, mu2 * mu2, mu1 * mu2
        s1 = blur(xi * xi) - mu1_sq
        s2 = blur(yi * yi) - mu2_sq
        s12 = blur(xi * yi) - mu1_mu2
        smap = ((2 * mu1_mu2 + C1) * (2 * s12 + C2)) / \
               ((mu1_sq + mu2_sq + C1) * (s1 + s2 + C2))
        t_ssim += jnp.mean(smap)
    lossS = 1.0 - t_ssim / L
    return alpha * lossL + (1.0 - alpha) * lossS


if __name__ == "__main__":
    key = jax.random.PRNGKey(0)
    k1, k2 = jax.random.split(key)
    b, c, d, h, w = 1, 4, 8, 16, 16            # small shapes; L tied to depth d
    x = jax.random.uniform(k1, (b, c, d, h, w), dtype=jnp.float32)
    y = jax.random.uniform(k2, (b, c, d, h, w), dtype=jnp.float32)

    loss = lsloss_pallas(x, y, L=d, alpha=0.2)
    loss = jax.block_until_ready(loss)

    ref = lsloss_ref(x, y, L=d, alpha=0.2)
    assert jnp.allclose(loss, ref, atol=1e-2, rtol=1e-2), (loss, ref)
    print("KERNEL_OK")
</pallas_src>

<mosaic_0001>
module attributes {stable_mosaic.version = 11 : i64} {
  func.func @_lsloss_kernel(%arg0: i32, %arg1: memref<4x4x16x16xf32, #tpu.memory_space<vmem>>, %arg2: memref<4x4x16x16xf32, #tpu.memory_space<vmem>>, %arg3: memref<16x16xbf16, #tpu.memory_space<vmem>>, %arg4: memref<16x16xbf16, #tpu.memory_space<vmem>>, %arg5: memref<4x1x1xf32, #tpu.memory_space<vmem>>, %arg6: memref<1x8x128xf32, #tpu.memory_space<vmem>>, %arg7: memref<1x8x128xf32, #tpu.memory_space<vmem>>) attributes {dimension_semantics = [#tpu.dimension_semantics<parallel>], iteration_bounds = array<i64: 2>, scalar_prefetch = 0 : i64, scratch_operands = 0 : i64, tpu.core_type = #tpu.core_type<tc>, window_params = [{transform_indices = @transform_0, window_bounds = array<i64: 4, 4, 16, 16>}, {transform_indices = @transform_1, window_bounds = array<i64: 4, 4, 16, 16>}, {pipeline_mode = #tpu.pipeline_mode<synchronous>, transform_indices = @transform_2, window_bounds = array<i64: 16, 16>}, {pipeline_mode = #tpu.pipeline_mode<synchronous>, transform_indices = @transform_3, window_bounds = array<i64: 16, 16>}, {transform_indices = @transform_4, window_bounds = array<i64: 4, 1, 1>}, {transform_indices = @transform_5, window_bounds = array<i64: 1, 8, 128>}, {transform_indices = @transform_6, window_bounds = array<i64: 1, 8, 128>}]} {
    %c0 = arith.constant 0 : index
    %c0_0 = arith.constant 0 : index
    %c0_1 = arith.constant 0 : index
    %c0_2 = arith.constant 0 : index
    %0 = vector.load %arg1[%c0, %c0_0, %c0_1, %c0_2] : memref<4x4x16x16xf32, #tpu.memory_space<vmem>>, vector<4x4x16x16xf32>
    %c0_3 = arith.constant 0 : index
    %c0_4 = arith.constant 0 : index
    %c0_5 = arith.constant 0 : index
    %c0_6 = arith.constant 0 : index
    %1 = vector.load %arg2[%c0_3, %c0_4, %c0_5, %c0_6] : memref<4x4x16x16xf32, #tpu.memory_space<vmem>>, vector<4x4x16x16xf32>
    %2 = arith.subf %0, %1 : vector<4x4x16x16xf32>
    %3 = math.absf %2 : vector<4x4x16x16xf32>
    %4 = vector.shape_cast %3 : vector<4x4x16x16xf32> to vector<1x4x4x16x16xf32>
    %cst = arith.constant dense<0.000000e+00> : vector<1xf32>
    %5 = vector.multi_reduction <add>, %4, %cst [1, 2, 3, 4] : vector<1x4x4x16x16xf32> to vector<1xf32>
    %6 = vector.shape_cast %5 : vector<1xf32> to vector<1x1x1x1x1xf32>
    %7 = vector.extract %6[0, 0, 0, 0, 0] : f32 from vector<1x1x1x1x1xf32>
    %8 = vector.broadcast %7 : f32 to vector<1x8x128xf32>
    %c0_7 = arith.constant 0 : index
    %c0_8 = arith.constant 0 : index
    %c0_9 = arith.constant 0 : index
    %9 = vector.load %arg6[%c0_7, %c0_8, %c0_9] : memref<1x8x128xf32, #tpu.memory_space<vmem>>, vector<1x8x128xf32>
    tpu.vector_store %arg6[%c0_7, %c0_8, %c0_9], %8 {strides = array<i32>} : memref<1x8x128xf32, #tpu.memory_space<vmem>>, vector<1x8x128xf32>,
    %cst_10 = arith.constant 0.000000e+00 : f32
    %10 = vector.broadcast %cst_10 : f32 to vector<1x8x128xf32>
    %c0_11 = arith.constant 0 : index
    %c0_12 = arith.constant 0 : index
    %c0_13 = arith.constant 0 : index
    %11 = vector.load %arg7[%c0_11, %c0_12, %c0_13] : memref<1x8x128xf32, #tpu.memory_space<vmem>>, vector<1x8x128xf32>
    tpu.vector_store %arg7[%c0_11, %c0_12, %c0_13], %10 {strides = array<i32>} : memref<1x8x128xf32, #tpu.memory_space<vmem>>, vector<1x8x128xf32>,
    %c4_i32 = arith.constant 4 : i32
    %12 = arith.muli %arg0, %c4_i32 : i32
    %c8_i32 = arith.constant 8 : i32
    %13 = arith.cmpi slt, %12, %c8_i32 : i32
    %14 = arith.extui %13 : i1 to i32
    %c0_i32 = arith.constant 0 : i32
    %15 = arith.cmpi ne, %14, %c0_i32 : i32
    scf.if %15 {
      %c0_14 = arith.constant 0 : index
      %c0_15 = arith.constant 0 : index
      %16 = vector.load %arg3[%c0_14, %c0_15] : memref<16x16xbf16, #tpu.memory_space<vmem>>, vector<16x16xbf16>
      %c0_16 = arith.constant 0 : index
      %c0_17 = arith.constant 0 : index
      %17 = vector.load %arg4[%c0_16, %c0_17] : memref<16x16xbf16, #tpu.memory_space<vmem>>, vector<16x16xbf16>
      %18 = vector.shape_cast %0 : vector<4x4x16x16xf32> to vector<256x16xf32>
      %19 = vector.shape_cast %1 : vector<4x4x16x16xf32> to vector<256x16xf32>
      %20 = arith.mulf %18, %18 : vector<256x16xf32>
      %21 = arith.mulf %19, %19 : vector<256x16xf32>
      %22 = arith.mulf %18, %19 : vector<256x16xf32>
      %23 = tpu.concatenate %18, %19, %20, %21, %22 in 0 : vector<256x16xf32>, vector<256x16xf32>, vector<256x16xf32>, vector<256x16xf32>, vector<256x16xf32> -> vector<1280x16xf32>
      %24 = arith.truncf %23 : vector<1280x16xf32> to vector<1280x16xbf16>
      %cst_18 = arith.constant dense<0.000000e+00> : vector<1280x16xf32>
      %25 = tpu.matmul %24, %16, %cst_18 {dimension_numbers = #tpu.dot_dimension_numbers<[1], [0], [0], [1], [0, 0, 1, 1], [], []>} : vector<1280x16xbf16>, vector<16x16xbf16>, vector<1280x16xf32> -> vector<1280x16xf32>
      %26 = vector.shape_cast %25 : vector<1280x16xf32> to vector<80x16x16xf32>
      %27 = tpu.transpose %26, [0, 2, 1] : vector<80x16x16xf32> -> vector<80x16x16xf32>
      %28 = vector.shape_cast %27 : vector<80x16x16xf32> to vector<1280x16xf32>
      %29 = arith.truncf %28 : vector<1280x16xf32> to vector<1280x16xbf16>
      %cst_19 = arith.constant dense<0.000000e+00> : vector<1280x16xf32>
      %30 = tpu.matmul %29, %17, %cst_19 {dimension_numbers = #tpu.dot_dimension_numbers<[1], [0], [0], [1], [0, 0, 1, 1], [], []>} : vector<1280x16xbf16>, vector<16x16xbf16>, vector<1280x16xf32> -> vector<1280x16xf32>
      %31 = vector.extract_strided_slice %30 {offsets = [0, 0], sizes = [256, 16], strides = [1, 1]} : vector<1280x16xf32> to vector<256x16xf32>
      %32 = vector.extract_strided_slice %30 {offsets = [256, 0], sizes = [256, 16], strides = [1, 1]} : vector<1280x16xf32> to vector<256x16xf32>
      %33 = vector.extract_strided_slice %30 {offsets = [512, 0], sizes = [256, 16], strides = [1, 1]} : vector<1280x16xf32> to vector<256x16xf32>
      %34 = vector.extract_strided_slice %30 {offsets = [768, 0], sizes = [256, 16], strides = [1, 1]} : vector<1280x16xf32> to vector<256x16xf32>
      %35 = vector.extract_strided_slice %30 {offsets = [1024, 0], sizes = [256, 16], strides = [1, 1]} : vector<1280x16xf32> to vector<256x16xf32>
      %36 = arith.mulf %31, %31 : vector<256x16xf32>
      %37 = arith.mulf %32, %32 : vector<256x16xf32>
      %38 = arith.mulf %31, %32 : vector<256x16xf32>
      %39 = arith.subf %33, %36 : vector<256x16xf32>
      %40 = arith.subf %34, %37 : vector<256x16xf32>
      %41 = arith.subf %35, %38 : vector<256x16xf32>
      %cst_20 = arith.constant 2.000000e+00 : f32
      %42 = vector.broadcast %cst_20 : f32 to vector<256x16xf32>
      %43 = arith.mulf %42, %38 : vector<256x16xf32>
      %cst_21 = arith.constant 9.99999974E-5 : f32
      %44 = vector.broadcast %cst_21 : f32 to vector<256x16xf32>
      %45 = arith.addf %43, %44 : vector<256x16xf32>
      %cst_22 = arith.constant 2.000000e+00 : f32
      %46 = vector.broadcast %cst_22 : f32 to vector<256x16xf32>
      %47 = arith.mulf %46, %41 : vector<256x16xf32>
      %cst_23 = arith.constant 8.99999984E-4 : f32
      %48 = vector.broadcast %cst_23 : f32 to vector<256x16xf32>
      %49 = arith.addf %47, %48 : vector<256x16xf32>
      %50 = arith.mulf %45, %49 : vector<256x16xf32>
      %51 = arith.addf %36, %37 : vector<256x16xf32>
      %cst_24 = arith.constant 9.99999974E-5 : f32
      %52 = vector.broadcast %cst_24 : f32 to vector<256x16xf32>
      %53 = arith.addf %51, %52 : vector<256x16xf32>
      %54 = arith.addf %39, %40 : vector<256x16xf32>
      %cst_25 = arith.constant 8.99999984E-4 : f32
      %55 = vector.broadcast %cst_25 : f32 to vector<256x16xf32>
      %56 = arith.addf %54, %55 : vector<256x16xf32>
      %57 = arith.mulf %53, %56 : vector<256x16xf32>
      %58 = tpu.reciprocal %57 {approx = true} : vector<256x16xf32> -> vector<256x16xf32>
      %59 = arith.mulf %50, %58 : vector<256x16xf32>
      %60 = vector.shape_cast %59 : vector<256x16xf32> to vector<4x64x16xf32>
      %c0_26 = arith.constant 0 : index
      %c0_27 = arith.constant 0 : index
      %c0_28 = arith.constant 0 : index
      %61 = vector.load %arg5[%c0_26, %c0_27, %c0_28] : memref<4x1x1xf32, #tpu.memory_space<vmem>>, vector<4x1x1xf32>
      %62 = vector.broadcast %61 : vector<4x1x1xf32> to vector<4x64x16xf32>
      %63 = arith.mulf %60, %62 : vector<4x64x16xf32>
      %64 = vector.shape_cast %63 : vector<4x64x16xf32> to vector<1x4x64x16xf32>
      %cst_29 = arith.constant dense<0.000000e+00> : vector<1xf32>
      %65 = vector.multi_reduction <add>, %64, %cst_29 [1, 2, 3] : vector<1x4x64x16xf32> to vector<1xf32>
      %66 = vector.shape_cast %65 : vector<1xf32> to vector<1x1x1x1xf32>
      %67 = vector.extract %66[0, 0, 0, 0] : f32 from vector<1x1x1x1xf32>
      %68 = vector.broadcast %67 : f32 to vector<1x8x128xf32>
      %c0_30 = arith.constant 0 : index
      %c0_31 = arith.constant 0 : index
      %c0_32 = arith.constant 0 : index
      %69 = vector.load %arg7[%c0_30, %c0_31, %c0_32] : memref<1x8x128xf32, #tpu.memory_space<vmem>>, vector<1x8x128xf32>
      tpu.vector_store %arg7[%c0_30, %c0_31, %c0_32], %68 {strides = array<i32>} : memref<1x8x128xf32, #tpu.memory_space<vmem>>, vector<1x8x128xf32>,
    } else {
    }
    return
  }
  func.func @transform_0(%arg0: i32) -> (i32, i32, i32, i32) {
    %c0_i32 = arith.constant 0 : i32
    %c0_i32_0 = arith.constant 0 : i32
    %c0_i32_1 = arith.constant 0 : i32
    %c0_i32_2 = arith.constant 0 : i32
    return %arg0, %c0_i32, %c0_i32_0, %c0_i32_1 : i32, i32, i32, i32
  }
  func.func @transform_1(%arg0: i32) -> (i32, i32, i32, i32) {
    %c0_i32 = arith.constant 0 : i32
    %c0_i32_0 = arith.constant 0 : i32
    %c0_i32_1 = arith.constant 0 : i32
    %c0_i32_2 = arith.constant 0 : i32
    return %arg0, %c0_i32, %c0_i32_0, %c0_i32_1 : i32, i32, i32, i32
  }
  func.func @transform_2(%arg0: i32) -> (i32, i32) {
    %c0_i32 = arith.constant 0 : i32
    %c0_i32_0 = arith.constant 0 : i32
    %c0_i32_1 = arith.constant 0 : i32
    return %c0_i32, %c0_i32_0 : i32, i32
  }
  func.func @transform_3(%arg0: i32) -> (i32, i32) {
    %c0_i32 = arith.constant 0 : i32
    %c0_i32_0 = arith.constant 0 : i32
    %c0_i32_1 = arith.constant 0 : i32
    return %c0_i32, %c0_i32_0 : i32, i32
  }
  func.func @transform_4(%arg0: i32) -> (i32, i32, i32) {
    %c0_i32 = arith.constant 0 : i32
    %c0_i32_0 = arith.constant 0 : i32
    %c0_i32_1 = arith.constant 0 : i32
    return %arg0, %c0_i32, %c0_i32_0 : i32, i32, i32
  }
  func.func @transform_5(%arg0: i32) -> (i32, i32, i32) {
    %c0_i32 = arith.constant 0 : i32
    %c0_i32_0 = arith.constant 0 : i32
    %c0_i32_1 = arith.constant 0 : i32
    return %arg0, %c0_i32, %c0_i32_0 : i32, i32, i32
  }
  func.func @transform_6(%arg0: i32) -> (i32, i32, i32) {
    %c0_i32 = arith.constant 0 : i32
    %c0_i32_0 = arith.constant 0 : i32
    %c0_i32_1 = arith.constant 0 : i32
    return %arg0, %c0_i32, %c0_i32_0 : i32, i32, i32
  }
}

</mosaic_0001>

<llo_original>
// kernel: tpu_custom_call.1
$region0: #{tpu_custom_call.1}
  #allocation0 [shape = 'u32[]', space=smem, size = 0x4, offset = 0x4, fixed_abs, tag = 'smem constant byte address 0x4 - core index']
  #allocation1 [shape = 'u32[144,128]{1,0:T(1,128)}', space=vmem, size = 0x12000, scoped, tag = 'internal scratch']
  %s0 = inlined_call_operand.hbm [shape: f32[8,4,16,16], index: 0, kind: input, shape index: {}]
  %s1 = inlined_call_operand.hbm [shape: f32[8,4,16,16], index: 1, kind: input, shape index: {}]
  %s2 = inlined_call_operand.vmem [shape: bf16[16,16], index: 2, kind: input, shape index: {}]
  %s3 = inlined_call_operand.vmem [shape: bf16[16,16], index: 3, kind: input, shape index: {}]
  %s4 = inlined_call_operand.vmem [shape: f32[8,1,1], index: 4, kind: input, shape index: {}]
  %s5 = inlined_call_operand.hbm [shape: f32[2,8,128], index: 5, kind: output, shape index: {0}]
  %s6 = inlined_call_operand.hbm [shape: f32[2,8,128], index: 6, kind: output, shape index: {1}]
  %7 = xla_tuple %s5, %s6
  %s8 = sld [smem:[#allocation0]]
  $region73: #{tpu_custom_call.1} parent=0
    _
  %s10 = ssub.s32 1, %s8
  %s11 = scalar_select 0, %s10, %s8
  $region1: #{tpu_custom_call.1} parent=0
    #allocation2 [shape = 'u8[262144]{0}', space=vmem, size = 0x40000, scoped, tag = 'input window, operand 0']
    #allocation3 [shape = 's32[2]{0}', space=sflag, size = 0x8, scoped, tag = 'scoped memory for tpu_custom_call.1']
    #allocation4 [shape = 's32[2]{0}', space=sflag, size = 0x8, scoped, tag = 'scoped memory for tpu_custom_call.1']
    #allocation5 [shape = 'u8[262144]{0}', space=vmem, size = 0x40000, scoped, tag = 'input window, operand 1']
    #allocation6 [shape = 's32[2]{0}', space=sflag, size = 0x8, scoped, tag = 'scoped memory for tpu_custom_call.1']
    #allocation7 [shape = 'u8[8192]{0}', space=vmem, size = 0x2000, scoped, tag = 'output window, operand 0']
    #allocation8 [shape = 'u8[8192]{0}', space=vmem, size = 0x2000, scoped, tag = 'output window, operand 1']
    #allocation9 [shape = 's32[2]{0}', space=sflag, size = 0x8, scoped, tag = 'scoped memory for tpu_custom_call.1']
    %12 = vsyncpa [#allocation3], 0
    %s13 = scalar_lea.sflag [#allocation3], 1
    %14 = vsyncpa %s13, 0
    %15 = vsyncpa [#allocation6], 0
    %s16 = scalar_lea.sflag [#allocation6], 1
    %17 = vsyncpa %s16, 0
    %18 = vsyncpa [#allocation4], 0
    %s19 = scalar_lea.sflag [#allocation4], 1
    %20 = vsyncpa %s19, 0
    %21 = vsyncpa [#allocation9], 0
    %s22 = scalar_lea.sflag [#allocation9], 1
    %23 = vsyncpa %s22, 0
    loop: start=0, step=1, limit=4
    $region2: #{tpu_custom_call.1} parent=1 // loop_pre_header
      _
    $region3: #{tpu_custom_call.1} parent=1 // loop_header
      %s25 = sphi 0, %s29
      %p26 = scmp.ge.s32.totalorder %s25, 4
      %s35 = sphi 0, %s37
      %s38 = sphi 0, %s35
      %s39 = sphi 0, %s38
      %s55 = sphi 0, %s39
      %s61 = sphi 0, %s63
      %s64 = sphi 0, %s61
      %s65 = sphi 0, %s64
      %s81 = sphi 0, %s65
      %s85 = sphi 0, %s85
      %s87 = sphi 0, %s85
      %s88 = sphi 0, %s87
      %s102 = sphi 0, %s88
      %s106 = sphi 0, %s106
      %s108 = sphi 0, %s106
      %s109 = sphi 0, %s108
      %s123 = sphi 0, %s109
      %s129 = sphi 0, %s131
      %s132 = sphi 0, %s129
      %s133 = sphi 0, %s132
      %s149 = sphi 0, %s133
      %s155 = sphi 0, %s157
      %s158 = sphi 0, %s155
      %s159 = sphi 0, %s158
      %s175 = sphi 0, %s159
      %s181 = sphi 0, %s183
      %s184 = sphi 0, %s181
      %s185 = sphi 0, %s184
      %s201 = sphi 0, %s185
    $region4: #{tpu_custom_call.1} parent=1 // loop_header_branch
      %28 = sbr.rel (%p26) target = $region8
    $region5: #{tpu_custom_call.1} parent=1 // loop_body
      %s30 = ssub.s32 %s25, 1
      %s31 = ssub.s32 %s25, 2
      %s32 = sadd.s32 %s25, 1
      %s33 = ssub.s32 %s25, %s32
      %p34 = scmp.eq.s32.totalorder %s33, 0
      %s36 = sadd.s32 %s35, 1
      %s37 = scalar_select %p34, %s35, %s36
      %p40 = pneg %p34
      %p41 = scmp.eq.s32.totalorder %s25, 1
      %p42 = por %p40, %p41
      %p43 = scmp.ne.s32.totalorder %s35, %s38
      %p44 = scmp.eq.s32.totalorder %s25, 0
      %p45 = por %p43, %p44
      %p46 = scmp.ne.s32.totalorder %s35, %s38
      %p47 = scmp.eq.s32.totalorder %s30, 1
      %p48 = por %p46, %p47
      %p49 = scmp.ne.s32.totalorder %s38, %s39
      %p50 = scmp.eq.s32.totalorder %s30, 0
      %p51 = por %p49, %p50
      %p52 = scmp.ne.s32.totalorder %s38, %s39
      %p53 = scmp.eq.s32.totalorder %s31, 1
      %p54 = por %p52, %p53
      %p56 = scmp.ne.s32.totalorder %s39, %s55
      %p57 = scmp.eq.s32.totalorder %s31, 0
      %p58 = por %p56, %p57
      %s59 = ssub.s32 %s25, %s32
      %p60 = scmp.eq.s32.totalorder %s59, 0
      %s62 = sadd.s32 %s61, 1
      %s63 = scalar_select %p60, %s61, %s62
      %p66 = pneg %p60
      %p67 = scmp.eq.s32.totalorder %s25, 1
      %p68 = por %p66, %p67
      %p69 = scmp.ne.s32.totalorder %s61, %s64
      %p70 = scmp.eq.s32.totalorder %s25, 0
      %p71 = por %p69, %p70
      %p72 = scmp.ne.s32.totalorder %s61, %s64
      %p73 = scmp.eq.s32.totalorder %s30, 1
      %p74 = por %p72, %p73
      %p75 = scmp.ne.s32.totalorder %s64, %s65
      %p76 = scmp.eq.s32.totalorder %s30, 0
      %p77 = por %p75, %p76
      %p78 = scmp.ne.s32.totalorder %s64, %s65
      %p79 = scmp.eq.s32.totalorder %s31, 1
      %p80 = por %p78, %p79
      %p82 = scmp.ne.s32.totalorder %s65, %s81
      %p83 = scmp.eq.s32.totalorder %s31, 0
      %p84 = por %p82, %p83
      %s86 = sadd.s32 %s85, 1
      %p89 = scmp.eq.s32.totalorder %s25, 1
      %p90 = scmp.ne.s32.totalorder %s85, %s87
      %p91 = scmp.eq.s32.totalorder %s25, 0
      %p92 = por %p90, %p91
      %p93 = scmp.ne.s32.totalorder %s85, %s87
      %p94 = scmp.eq.s32.totalorder %s30, 1
      %p95 = por %p93, %p94
      %p96 = scmp.ne.s32.totalorder %s87, %s88
      %p97 = scmp.eq.s32.totalorder %s30, 0
      %p98 = por %p96, %p97
      %p99 = scmp.ne.s32.totalorder %s87, %s88
      %p100 = scmp.eq.s32.totalorder %s31, 1
      %p101 = por %p99, %p100
      %p103 = scmp.ne.s32.totalorder %s88, %s102
      %p104 = scmp.eq.s32.totalorder %s31, 0
      %p105 = por %p103, %p104
      %s107 = sadd.s32 %s106, 1
      %p110 = scmp.eq.s32.totalorder %s25, 1
      %p111 = scmp.ne.s32.totalorder %s106, %s108
      %p112 = scmp.eq.s32.totalorder %s25, 0
      %p113 = por %p111, %p112
      %p114 = scmp.ne.s32.totalorder %s106, %s108
      %p115 = scmp.eq.s32.totalorder %s30, 1
      %p116 = por %p114, %p115
      %p117 = scmp.ne.s32.totalorder %s108, %s109
      %p118 = scmp.eq.s32.totalorder %s30, 0
      %p119 = por %p117, %p118
      %p120 = scmp.ne.s32.totalorder %s108, %s109
      %p121 = scmp.eq.s32.totalorder %s31, 1
      %p122 = por %p120, %p121
      %p124 = scmp.ne.s32.totalorder %s109, %s123
      %p125 = scmp.eq.s32.totalorder %s31, 0
      %p126 = por %p124, %p125
      %s127 = ssub.s32 %s25, %s32
      %p128 = scmp.eq.s32.totalorder %s127, 0
      %s130 = sadd.s32 %s129, 1
      %s131 = scalar_select %p128, %s129, %s130
      %p134 = pneg %p128
      %p135 = scmp.eq.s32.totalorder %s25, 1
      %p136 = por %p134, %p135
      %p137 = scmp.ne.s32.totalorder %s129, %s132
      %p138 = scmp.eq.s32.totalorder %s25, 0
      %p139 = por %p137, %p138
      %p140 = scmp.ne.s32.totalorder %s129, %s132
      %p141 = scmp.eq.s32.totalorder %s30, 1
      %p142 = por %p140, %p141
      %p143 = scmp.ne.s32.totalorder %s132, %s133
      %p144 = scmp.eq.s32.totalorder %s30, 0
      %p145 = por %p143, %p144
      %p146 = scmp.ne.s32.totalorder %s132, %s133
      %p147 = scmp.eq.s32.totalorder %s31, 1
      %p148 = por %p146, %p147
      %p150 = scmp.ne.s32.totalorder %s133, %s149
      %p151 = scmp.eq.s32.totalorder %s31, 0
      %p152 = por %p150, %p151
      %s153 = ssub.s32 %s25, %s32
      %p154 = scmp.eq.s32.totalorder %s153, 0
      %s156 = sadd.s32 %s155, 1
      %s157 = scalar_select %p154, %s155, %s156
      %p160 = pneg %p154
      %p161 = scmp.eq.s32.totalorder %s25, 1
      %p162 = por %p160, %p161
      %p163 = scmp.ne.s32.totalorder %s155, %s158
      %p164 = scmp.eq.s32.totalorder %s25, 0
      %p165 = por %p163, %p164
      %p166 = scmp.ne.s32.totalorder %s155, %s158
      %p167 = scmp.eq.s32.totalorder %s30, 1
      %p168 = por %p166, %p167
      %p169 = scmp.ne.s32.totalorder %s158, %s159
      %p170 = scmp.eq.s32.totalorder %s30, 0
      %p171 = por %p169, %p170
      %p172 = scmp.ne.s32.totalorder %s158, %s159
      %p173 = scmp.eq.s32.totalorder %s31, 1
      %p174 = por %p172, %p173
      %p176 = scmp.ne.s32.totalorder %s159, %s175
      %p177 = scmp.eq.s32.totalorder %s31, 0
      %p178 = por %p176, %p177
      %s179 = ssub.s32 %s25, %s32
      %p180 = scmp.eq.s32.totalorder %s179, 0
      %s182 = sadd.s32 %s181, 1
      %s183 = scalar_select %p180, %s181, %s182
      %p186 = pneg %p180
      %p187 = scmp.eq.s32.totalorder %s25, 1
      %p188 = por %p186, %p187
      %p189 = scmp.ne.s32.totalorder %s181, %s184
      %p190 = scmp.eq.s32.totalorder %s25, 0
      %p191 = por %p189, %p190
      %p192 = scmp.ne.s32.totalorder %s181, %s184
      %p193 = scmp.eq.s32.totalorder %s30, 1
      %p194 = por %p192, %p193
      %p195 = scmp.ne.s32.totalorder %s184, %s185
      %p196 = scmp.eq.s32.totalorder %s30, 0
      %p197 = por %p195, %p196
      %p198 = scmp.ne.s32.totalorder %s184, %s185
      %p199 = scmp.eq.s32.totalorder %s31, 1
      %p200 = por %p198, %p199
      %p202 = scmp.ne.s32.totalorder %s185, %s201
      %p203 = scmp.eq.s32.totalorder %s31, 0
      %p204 = por %p202, %p203
      %p205 = scmp.le.s32.totalorder 1, %s25
      %p206 = scmp.lt.s32.totalorder %s25, 3
      %p207 = pnand %p205, %p206
      %p208 = pneg %p207
      // Predicated region
      $region9: #{tpu_custom_call.1} parent=5 // pred_check
        _
      $region10: #{tpu_custom_call.1} parent=5 // pred_check_branch
        %210 = sbr.rel (%p207) target = $region12
      $region11: #{tpu_custom_call.1} parent=5 // pred_region
        %s211 = ssub.s32 %s25, 1
        // Predicated region
        $region13: #{tpu_custom_call.1} parent=11 // pred_check
          %p212 = pneg %p98
        $region14: #{tpu_custom_call.1} parent=11 // pred_check_branch
          %214 = sbr.rel (%p212) target = $region16
        $region15: #{tpu_custom_call.1} parent=11 // pred_region
          _
        $region16: #{tpu_custom_call.1} parent=11 // pred_fallthru
          _
        // Predicated region
        $region17: #{tpu_custom_call.1} parent=11 // pred_check
          %p215 = pneg %p119
        $region18: #{tpu_custom_call.1} parent=11 // pred_check_branch
          %217 = sbr.rel (%p215) target = $region20
        $region19: #{tpu_custom_call.1} parent=11 // pred_region
          _
        $region20: #{tpu_custom_call.1} parent=11 // pred_fallthru
          _
      $region12: #{tpu_custom_call.1} parent=5 // pred_fallthru
        _
      %p218 = scmp.lt.s32.totalorder %s25, 2
      // Predicated region
      $region21: #{tpu_custom_call.1} parent=5 // pred_check
        %p219 = pneg %p218
      $region22: #{tpu_custom_call.1} parent=5 // pred_check_branch
        %221 = sbr.rel (%p219) target = $region24
      $region23: #{tpu_custom_call.1} parent=5 // pred_region
        // Predicated region
        $region25: #{tpu_custom_call.1} parent=23 // pred_check
          %p222 = pneg %p45
        $region26: #{tpu_custom_call.1} parent=23 // pred_check_branch
          %224 = sbr.rel (%p222) target = $region28
        $region27: #{tpu_custom_call.1} parent=23 // pred_region
          %s225 = sand.u32 %s35, 1
          %s226 = scalar_lea.sflag [#allocation3], %s225
          %s227 = sand.u32 %s35, 1
          %s228 = smul.addr %s227, 256
          %s229 = scalar_lea.vmem [#allocation2], %s228
          %s230 = smul.u32 4, %s25
          %s232 = ssub.s32 4096, 4096
          %233 = vsyncadd %s226, %s232
          %s234 = smul.addr %s230, 8
          %s235 = smul.addr %s234, 128
          %s236 = scalar_lea.hbm %s0, %s235
          %s237 = sshll.u32 %s229, 4
          %s238 = int_to_ptr.vmem [resolvable:$true] %s237
          %243 = dma.hbm_to_vmem [thread:$0]  %s236, 4096, %s238, %s226, 128, 128, 8
        $region28: #{tpu_custom_call.1} parent=23 // pred_fallthru
          _
        // Predicated region
        $region29: #{tpu_custom_call.1} parent=23 // pred_check
          %p244 = pneg %p71
        $region30: #{tpu_custom_call.1} parent=23 // pred_check_branch
          %246 = sbr.rel (%p244) target = $region32
        $region31: #{tpu_custom_call.1} parent=23 // pred_region
          %s247 = sand.u32 %s61, 1
          %s248 = scalar_lea.sflag [#allocation6], %s247
          %s249 = sand.u32 %s61, 1
          %s250 = smul.addr %s249, 256
          %s251 = scalar_lea.vmem [#allocation5], %s250
          %s252 = smul.u32 4, %s25
          %s254 = ssub.s32 4096, 4096
          %255 = vsyncadd %s248, %s254
          %s256 = smul.addr %s252, 8
          %s257 = smul.addr %s256, 128
          %s258 = scalar_lea.hbm %s1, %s257
          %s259 = sshll.u32 %s251, 4
          %s260 = int_to_ptr.vmem [resolvable:$true] %s259
          %265 = dma.hbm_to_vmem [thread:$0]  %s258, 4096, %s260, %s248, 128, 128, 8
        $region32: #{tpu_custom_call.1} parent=23 // pred_fallthru
          _
        // Predicated region
        $region33: #{tpu_custom_call.1} parent=23 // pred_check
          %p266 = pneg %p139
        $region34: #{tpu_custom_call.1} parent=23 // pred_check_branch
          %268 = sbr.rel (%p266) target = $region36
        $region35: #{tpu_custom_call.1} parent=23 // pred_region
          %s269 = smul.u32 4, %s25
          %p270 = scmp.lt.s32.totalorder %s269, 7
          %s271 = scalar_select %p270, %s269, 7
          %s272 = scalar_lea.vmem %s4, %s271
          %s273 = smul.u32 4, %s25
        $region36: #{tpu_custom_call.1} parent=23 // pred_fallthru
          _
      $region24: #{tpu_custom_call.1} parent=5 // pred_fallthru
        _
      %p274 = scmp.le.s32.totalorder 1, %s25
      %p275 = scmp.lt.s32.totalorder %s25, 3
      %p276 = pnand %p274, %p275
      %p277 = pneg %p276
      // Predicated region
      $region37: #{tpu_custom_call.1} parent=5 // pred_check
        _
      $region38: #{tpu_custom_call.1} parent=5 // pred_check_branch
        %279 = sbr.rel (%p276) target = $region40
      $region39: #{tpu_custom_call.1} parent=5 // pred_region
        %s280 = ssub.s32 %s25, 1
        %s281 = sand.u32 %s38, 1
        %s282 = scalar_lea.sflag [#allocation3], %s281
        %s283 = sand.u32 %s38, 1
        %s284 = smul.addr %s283, 256
        %s285 = scalar_lea.vmem [#allocation2], %s284
        // Predicated region
        $region41: #{tpu_custom_call.1} parent=39 // pred_check
          %p286 = pneg %p51
        $region42: #{tpu_custom_call.1} parent=39 // pred_check_branch
          %288 = sbr.rel (%p286) target = $region44
        $region43: #{tpu_custom_call.1} parent=39 // pred_region
          %289 = dma.done %s282, 4096
        $region44: #{tpu_custom_call.1} parent=39 // pred_fallthru
          _
        %s290 = sand.u32 %s64, 1
        %s291 = scalar_lea.sflag [#allocation6], %s290
        %s292 = sand.u32 %s64, 1
        %s293 = smul.addr %s292, 256
        %s294 = scalar_lea.vmem [#allocation5], %s293
        // Predicated region
        $region45: #{tpu_custom_call.1} parent=39 // pred_check
          %p295 = pneg %p77
        $region46: #{tpu_custom_call.1} parent=39 // pred_check_branch
          %297 = sbr.rel (%p295) target = $region48
        $region47: #{tpu_custom_call.1} parent=39 // pred_region
          %298 = dma.done %s291, 4096
        $region48: #{tpu_custom_call.1} parent=39 // pred_fallthru
          _
        %s299 = sand.u32 %s38, 1
        %s300 = scalar_lea.sflag [#allocation3], %s299
        %s301 = sand.u32 %s38, 1
        %s302 = smul.addr %s301, 256
        %s303 = scalar_lea.vmem [#allocation2], %s302
        %p304 = pneg %p51
        %p305 = pneg %p48
        %s306 = sand.u32 %s64, 1
        %s307 = scalar_lea.sflag [#allocation6], %s306
        %s308 = sand.u32 %s64, 1
        %s309 = smul.addr %s308, 256
        %s310 = scalar_lea.vmem [#allocation5], %s309
        %p311 = pneg %p77
        %p312 = pneg %p74
        %p313 = pneg %p98
        %p314 = pneg %p95
        %p315 = pneg %p119
        %p316 = pneg %p116
        %s317 = smul.u32 4, %s30
        %p318 = scmp.lt.s32.totalorder %s317, 7
        %s319 = scalar_select %p318, %s317, 7
        %s320 = scalar_lea.vmem %s4, %s319
        %p321 = pneg %p145
        %p322 = pneg %p142
        %p323 = pneg %p171
        %p324 = pneg %p168
        %s325 = sand.u32 %s158, 1
        %s326 = scalar_lea.sflag [#allocation4], %s325
        %s327 = sand.u32 %s158, 1
        %s328 = smul.addr %s327, 8
        %s329 = scalar_lea.vmem [#allocation7], %s328
        %p330 = pneg %p197
        %p331 = pneg %p194
        %s332 = sand.u32 %s184, 1
        %s333 = scalar_lea.sflag [#allocation9], %s332
        %s334 = sand.u32 %s184, 1
        %s335 = smul.addr %s334, 8
        %s336 = scalar_lea.vmem [#allocation8], %s335
        %s337 = smul.u32 4, %s30
        %s338 = smul.u32 4, %s30
        %s339 = smul.u32 4, %s30
        %p340 = scmp.lt.s32.totalorder %s339, 7
        %s341 = scalar_select %p340, %s339, 7
        %s342 = scalar_lea.vmem %s4, %s341
        %s343 = smul.u32 4, %s30
        %v345 = vld [vmem:[%s285] sm:$0xff]
        %v346 = vld [vmem:[%s285 + $0x8] sm:$0xff]
        %v347 = vld [vmem:[%s285 + $0x10] sm:$0xff]
        %v348 = vld [vmem:[%s285 + $0x18] sm:$0xff]
        %v349 = vld [vmem:[%s285 + $0x20] sm:$0xff]
        %v350 = vld [vmem:[%s285 + $0x28] sm:$0xff]
        %v351 = vld [vmem:[%s285 + $0x30] sm:$0xff]
        %v352 = vld [vmem:[%s285 + $0x38] sm:$0xff]
        %v353 = vld [vmem:[%s285 + $0x40] sm:$0xff]
        %v354 = vld [vmem:[%s285 + $0x48] sm:$0xff]
        %v355 = vld [vmem:[%s285 + $0x50] sm:$0xff]
        %v356 = vld [vmem:[%s285 + $0x58] sm:$0xff]
        %v357 = vld [vmem:[%s285 + $0x60] sm:$0xff]
        %v358 = vld [vmem:[%s285 + $0x68] sm:$0xff]
        %v359 = vld [vmem:[%s285 + $0x70] sm:$0xff]
        %v360 = vld [vmem:[%s285 + $0x78] sm:$0xff]
        %v361 = vld [vmem:[%s285 + $0x80] sm:$0xff]
        %v362 = vld [vmem:[%s285 + $0x88] sm:$0xff]
        %v363 = vld [vmem:[%s285 + $0x90] sm:$0xff]
        %v364 = vld [vmem:[%s285 + $0x98] sm:$0xff]
        %v365 = vld [vmem:[%s285 + $0xa0] sm:$0xff]
        %v366 = vld [vmem:[%s285 + $0xa8] sm:$0xff]
        %v367 = vld [vmem:[%s285 + $0xb0] sm:$0xff]
        %v368 = vld [vmem:[%s285 + $0xb8] sm:$0xff]
        %v369 = vld [vmem:[%s285 + $0xc0] sm:$0xff]
        %v370 = vld [vmem:[%s285 + $0xc8] sm:$0xff]
        %v371 = vld [vmem:[%s285 + $0xd0] sm:$0xff]
        %v372 = vld [vmem:[%s285 + $0xd8] sm:$0xff]
        %v373 = vld [vmem:[%s285 + $0xe0] sm:$0xff]
        %v374 = vld [vmem:[%s285 + $0xe8] sm:$0xff]
        %v375 = vld [vmem:[%s285 + $0xf0] sm:$0xff]
        %v376 = vld [vmem:[%s285 + $0xf8] sm:$0xff]
        %v377 = vld [vmem:[%s294] sm:$0xff]
        %v378 = vld [vmem:[%s294 + $0x8] sm:$0xff]
        %v379 = vld [vmem:[%s294 + $0x10] sm:$0xff]
        %v380 = vld [vmem:[%s294 + $0x18] sm:$0xff]
        %v381 = vld [vmem:[%s294 + $0x20] sm:$0xff]
        %v382 = vld [vmem:[%s294 + $0x28] sm:$0xff]
        %v383 = vld [vmem:[%s294 + $0x30] sm:$0xff]
        %v384 = vld [vmem:[%s294 + $0x38] sm:$0xff]
        %v385 = vld [vmem:[%s294 + $0x40] sm:$0xff]
        %v386 = vld [vmem:[%s294 + $0x48] sm:$0xff]
        %v387 = vld [vmem:[%s294 + $0x50] sm:$0xff]
        %v388 = vld [vmem:[%s294 + $0x58] sm:$0xff]
        %v389 = vld [vmem:[%s294 + $0x60] sm:$0xff]
        %v390 = vld [vmem:[%s294 + $0x68] sm:$0xff]
        %v391 = vld [vmem:[%s294 + $0x70] sm:$0xff]
        %v392 = vld [vmem:[%s294 + $0x78] sm:$0xff]
        %v393 = vld [vmem:[%s294 + $0x80] sm:$0xff]
        %v394 = vld [vmem:[%s294 + $0x88] sm:$0xff]
        %v395 = vld [vmem:[%s294 + $0x90] sm:$0xff]
        %v396 = vld [vmem:[%s294 + $0x98] sm:$0xff]
        %v397 = vld [vmem:[%s294 + $0xa0] sm:$0xff]
        %v398 = vld [vmem:[%s294 + $0xa8] sm:$0xff]
        %v399 = vld [vmem:[%s294 + $0xb0] sm:$0xff]
        %v400 = vld [vmem:[%s294 + $0xb8] sm:$0xff]
        %v401 = vld [vmem:[%s294 + $0xc0] sm:$0xff]
        %v402 = vld [vmem:[%s294 + $0xc8] sm:$0xff]
        %v403 = vld [vmem:[%s294 + $0xd0] sm:$0xff]
        %v404 = vld [vmem:[%s294 + $0xd8] sm:$0xff]
        %v405 = vld [vmem:[%s294 + $0xe0] sm:$0xff]
        %v406 = vld [vmem:[%s294 + $0xe8] sm:$0xff]
        %v407 = vld [vmem:[%s294 + $0xf0] sm:$0xff]
        %v408 = vld [vmem:[%s294 + $0xf8] sm:$0xff]
        %v409 = vsub.f32 %v345, %v377
        %v410 = vsub.f32 %v346, %v378
        %v411 = vsub.f32 %v347, %v379
        %v412 = vsub.f32 %v348, %v380
        %v413 = vsub.f32 %v349, %v381
        %v414 = vsub.f32 %v350, %v382
        %v415 = vsub.f32 %v351, %v383
        %v416 = vsub.f32 %v352, %v384
        %v417 = vsub.f32 %v353, %v385
        %v418 = vsub.f32 %v354, %v386
        %v419 = vsub.f32 %v355, %v387
        %v420 = vsub.f32 %v356, %v388
        %v421 = vsub.f32 %v357, %v389
        %v422 = vsub.f32 %v358, %v390
        %v423 = vsub.f32 %v359, %v391
        %v424 = vsub.f32 %v360, %v392
        %v425 = vsub.f32 %v361, %v393
        %v426 = vsub.f32 %v362, %v394
        %v427 = vsub.f32 %v363, %v395
        %v428 = vsub.f32 %v364, %v396
        %v429 = vsub.f32 %v365, %v397
        %v430 = vsub.f32 %v366, %v398
        %v431 = vsub.f32 %v367, %v399
        %v432 = vsub.f32 %v368, %v400
        %v433 = vsub.f32 %v369, %v401
        %v434 = vsub.f32 %v370, %v402
        %v435 = vsub.f32 %v371, %v403
        %v436 = vsub.f32 %v372, %v404
        %v437 = vsub.f32 %v373, %v405
        %v438 = vsub.f32 %v374, %v406
        %v439 = vsub.f32 %v375, %v407
        %v440 = vsub.f32 %v376, %v408
        %v441 = vand.u32 2147483647, %v409
        %v442 = vand.u32 2147483647, %v410
        %v443 = vand.u32 2147483647, %v411
        %v444 = vand.u32 2147483647, %v412
        %v445 = vand.u32 2147483647, %v413
        %v446 = vand.u32 2147483647, %v414
        %v447 = vand.u32 2147483647, %v415
        %v448 = vand.u32 2147483647, %v416
        %v449 = vand.u32 2147483647, %v417
        %v450 = vand.u32 2147483647, %v418
        %v451 = vand.u32 2147483647, %v419
        %v452 = vand.u32 2147483647, %v420
        %v453 = vand.u32 2147483647, %v421
        %v454 = vand.u32 2147483647, %v422
        %v455 = vand.u32 2147483647, %v423
        %v456 = vand.u32 2147483647, %v424
        %v457 = vand.u32 2147483647, %v425
        %v458 = vand.u32 2147483647, %v426
        %v459 = vand.u32 2147483647, %v427
        %v460 = vand.u32 2147483647, %v428
        %v461 = vand.u32 2147483647, %v429
        %v462 = vand.u32 2147483647, %v430
        %v463 = vand.u32 2147483647, %v431
        %v464 = vand.u32 2147483647, %v432
        %v465 = vand.u32 2147483647, %v433
        %v466 = vand.u32 2147483647, %v434
        %v467 = vand.u32 2147483647, %v435
        %v468 = vand.u32 2147483647, %v436
        %v469 = vand.u32 2147483647, %v437
        %v470 = vand.u32 2147483647, %v438
        %v471 = vand.u32 2147483647, %v439
        %v472 = vand.u32 2147483647, %v440
        %vm473 = vcmask 130048
        %v474 = vsel %vm473, %v441, 0.0
        %v475 = vsel %vm473, %v442, 0.0
        %v476 = vadd.f32 %v474, %v475
        %v477 = vsel %vm473, %v443, 0.0
        %v478 = vadd.f32 %v476, %v477
        %v479 = vsel %vm473, %v444, 0.0
        %v480 = vadd.f32 %v478, %v479
        %v481 = vsel %vm473, %v445, 0.0
        %v482 = vadd.f32 %v480, %v481
        %v483 = vsel %vm473, %v446, 0.0
        %v484 = vadd.f32 %v482, %v483
        %v485 = vsel %vm473, %v447, 0.0
        %v486 = vadd.f32 %v484, %v485
        %v487 = vsel %vm473, %v448, 0.0
        %v488 = vadd.f32 %v486, %v487
        %v489 = vsel %vm473, %v449, 0.0
        %v490 = vadd.f32 %v488, %v489
        %v491 = vsel %vm473, %v450, 0.0
        %v492 = vadd.f32 %v490, %v491
        %v493 = vsel %vm473, %v451, 0.0
        %v494 = vadd.f32 %v492, %v493
        %v495 = vsel %vm473, %v452, 0.0
        %v496 = vadd.f32 %v494, %v495
        %v497 = vsel %vm473, %v453, 0.0
        %v498 = vadd.f32 %v496, %v497
        %v499 = vsel %vm473, %v454, 0.0
        %v500 = vadd.f32 %v498, %v499
        %v501 = vsel %vm473, %v455, 0.0
        %v502 = vadd.f32 %v500, %v501
        %v503 = vsel %vm473, %v456, 0.0
        %v504 = vadd.f32 %v502, %v503
        %v505 = vsel %vm473, %v457, 0.0
        %v506 = vadd.f32 %v504, %v505
        %v507 = vsel %vm473, %v458, 0.0
        %v508 = vadd.f32 %v506, %v507
        %v509 = vsel %vm473, %v459, 0.0
        %v510 = vadd.f32 %v508, %v509
        %v511 = vsel %vm473, %v460, 0.0
        %v512 = vadd.f32 %v510, %v511
        %v513 = vsel %vm473, %v461, 0.0
        %v514 = vadd.f32 %v512, %v513
        %v515 = vsel %vm473, %v462, 0.0
        %v516 = vadd.f32 %v514, %v515
        %v517 = vsel %vm473, %v463, 0.0
        %v518 = vadd.f32 %v516, %v517
        %v519 = vsel %vm473, %v464, 0.0
        %v520 = vadd.f32 %v518, %v519
        %v521 = vsel %vm473, %v465, 0.0
        %v522 = vadd.f32 %v520, %v521
        %v523 = vsel %vm473, %v466, 0.0
        %v524 = vadd.f32 %v522, %v523
        %v525 = vsel %vm473, %v467, 0.0
        %v526 = vadd.f32 %v524, %v525
        %v527 = vsel %vm473, %v468, 0.0
        %v528 = vadd.f32 %v526, %v527
        %v529 = vsel %vm473, %v469, 0.0
        %v530 = vadd.f32 %v528, %v529
        %v531 = vsel %vm473, %v470, 0.0
        %v532 = vadd.f32 %v530, %v531
        %v533 = vsel %vm473, %v471, 0.0
        %v534 = vadd.f32 %v532, %v533
        %v535 = vsel %vm473, %v472, 0.0
        %v536 = vadd.f32 %v534, %v535
        %537 = vadd.xlane.f32.xlu0 %v536
        %v538 = vpop.xlane.xlu0 %537
        %v539 = vrot.slane %v538, 4
        %v540 = vadd.f32 %v538, %v539
        %v541 = vrot.slane %v540, 2
        %v542 = vadd.f32 %v540, %v541
        %v543 = vrot.slane %v542, 1
        %v544 = vadd.f32 %v542, %v543
        %s545 = vtos %v544
        %v546 = vstv %s545
        %547 = vst [vmem:[%s329] sm:$0xff] %v546
        %548 = vst [vmem:[%s336] sm:$0xff] 0.0
        %s549 = smul.u32 %s30, 4
        %p550 = scmp.lt.s32.totalorder %s549, 8
        // Predicated region
        $region49: #{tpu_custom_call.1} parent=39 // pred_check
          %p551 = pneg %p550
        $region50: #{tpu_custom_call.1} parent=39 // pred_check_branch
          %553 = sbr.rel (%p551) target = $region52
        $region51: #{tpu_custom_call.1} parent=39 // pred_region
          %v554 = vld [vmem:[%s2] sm:$0xf]
          %v555 = vld [vmem:[%s2 + $0x4] sm:$0xf]
          %v556 = vld [vmem:[%s3] sm:$0xf]
          %v557 = vld [vmem:[%s3 + $0x4] sm:$0xf]
          %v558 = vmul.f32 %v345, %v345
          %v559 = vmul.f32 %v346, %v346
          %v560 = vmul.f32 %v347, %v347
          %v561 = vmul.f32 %v348, %v348
          %v562 = vmul.f32 %v349, %v349
          %v563 = vmul.f32 %v350, %v350
          %v564 = vmul.f32 %v351, %v351
          %v565 = vmul.f32 %v352, %v352
          %v566 = vmul.f32 %v353, %v353
          %v567 = vmul.f32 %v354, %v354
          %v568 = vmul.f32 %v355, %v355
          %v569 = vmul.f32 %v356, %v356
          %v570 = vmul.f32 %v357, %v357
          %v571 = vmul.f32 %v358, %v358
          %v572 = vmul.f32 %v359, %v359
          %v573 = vmul.f32 %v360, %v360
          %v574 = vmul.f32 %v361, %v361
          %v575 = vmul.f32 %v362, %v362
          %v576 = vmul.f32 %v363, %v363
          %v577 = vmul.f32 %v364, %v364
          %v578 = vmul.f32 %v365, %v365
          %v579 = vmul.f32 %v366, %v366
          %v580 = vmul.f32 %v367, %v367
          %v581 = vmul.f32 %v368, %v368
          %v582 = vmul.f32 %v369, %v369
          %v583 = vmul.f32 %v370, %v370
          %v584 = vmul.f32 %v371, %v371
          %v585 = vmul.f32 %v372, %v372
          %v586 = vmul.f32 %v373, %v373
          %v587 = vmul.f32 %v374, %v374
          %v588 = vmul.f32 %v375, %v375
          %v589 = vmul.f32 %v376, %v376
          %v590 = vmul.f32 %v377, %v377
          %v591 = vmul.f32 %v378, %v378
          %v592 = vmul.f32 %v379, %v379
          %v593 = vmul.f32 %v380, %v380
          %v594 = vmul.f32 %v381, %v381
          %v595 = vmul.f32 %v382, %v382
          %v596 = vmul.f32 %v383, %v383
          %v597 = vmul.f32 %v384, %v384
          %v598 = vmul.f32 %v385, %v385
          %v599 = vmul.f32 %v386, %v386
          %v600 = vmul.f32 %v387, %v387
          %v601 = vmul.f32 %v388, %v388
          %v602 = vmul.f32 %v389, %v389
          %v603 = vmul.f32 %v390, %v390
          %v604 = vmul.f32 %v391, %v391
          %v605 = vmul.f32 %v392, %v392
          %v606 = vmul.f32 %v393, %v393
          %v607 = vmul.f32 %v394, %v394
          %v608 = vmul.f32 %v395, %v395
          %v609 = vmul.f32 %v396, %v396
          %v610 = vmul.f32 %v397, %v397
          %v611 = vmul.f32 %v398, %v398
          %v612 = vmul.f32 %v399, %v399
          %v613 = vmul.f32 %v400, %v400
          %v614 = vmul.f32 %v401, %v401
          %v615 = vmul.f32 %v402, %v402
          %v616 = vmul.f32 %v403, %v403
          %v617 = vmul.f32 %v404, %v404
          %v618 = vmul.f32 %v405, %v405
          %v619 = vmul.f32 %v406, %v406
          %v620 = vmul.f32 %v407, %v407
          %v621 = vmul.f32 %v408, %v408
          %v622 = vmul.f32 %v345, %v377
          %v623 = vmul.f32 %v346, %v378
          %v624 = vmul.f32 %v347, %v379
          %v625 = vmul.f32 %v348, %v380
          %v626 = vmul.f32 %v349, %v381
          %v627 = vmul.f32 %v350, %v382
          %v628 = vmul.f32 %v351, %v383
          %v629 = vmul.f32 %v352, %v384
          %v630 = vmul.f32 %v353, %v385
          %v631 = vmul.f32 %v354, %v386
          %v632 = vmul.f32 %v355, %v387
          %v633 = vmul.f32 %v356, %v388
          %v634 = vmul.f32 %v357, %v389
          %v635 = vmul.f32 %v358, %v390
          %v636 = vmul.f32 %v359, %v391
          %v637 = vmul.f32 %v360, %v392
          %v638 = vmul.f32 %v361, %v393
          %v639 = vmul.f32 %v362, %v394
          %v640 = vmul.f32 %v363, %v395
          %v641 = vmul.f32 %v364, %v396
          %v642 = vmul.f32 %v365, %v397
          %v643 = vmul.f32 %v366, %v398
          %v644 = vmul.f32 %v367, %v399
          %v645 = vmul.f32 %v368, %v400
          %v646 = vmul.f32 %v369, %v401
          %v647 = vmul.f32 %v370, %v402
          %v648 = vmul.f32 %v371, %v403
          %v649 = vmul.f32 %v372, %v404
          %v650 = vmul.f32 %v373, %v405
          %v651 = vmul.f32 %v374, %v406
          %v652 = vmul.f32 %v375, %v407
          %v653 = vmul.f32 %v376, %v408
          %v654 = vpack.c.bf16 %v346, %v345
          %v655 = vpack.c.bf16 %v348, %v347
          %v656 = vpack.c.bf16 %v350, %v349
          %v657 = vpack.c.bf16 %v352, %v351
          %v658 = vpack.c.bf16 %v354, %v353
          %v659 = vpack.c.bf16 %v356, %v355
          %v660 = vpack.c.bf16 %v358, %v357
          %v661 = vpack.c.bf16 %v360, %v359
          %v662 = vpack.c.bf16 %v362, %v361
          %v663 = vpack.c.bf16 %v364, %v363
          %v664 = vpack.c.bf16 %v366, %v365
          %v665 = vpack.c.bf16 %v368, %v367
          %v666 = vpack.c.bf16 %v370, %v369
          %v667 = vpack.c.bf16 %v372, %v371
          %v668 = vpack.c.bf16 %v374, %v373
          %v669 = vpack.c.bf16 %v376, %v375
          %v670 = vpack.c.bf16 %v378, %v377
          %v671 = vpack.c.bf16 %v380, %v379
          %v672 = vpack.c.bf16 %v382, %v381
          %v673 = vpack.c.bf16 %v384, %v383
          %v674 = vpack.c.bf16 %v386, %v385
          %v675 = vpack.c.bf16 %v388, %v387
          %v676 = vpack.c.bf16 %v390, %v389
          %v677 = vpack.c.bf16 %v392, %v391
          %v678 = vpack.c.bf16 %v394, %v393
          %v679 = vpack.c.bf16 %v396, %v395
          %v680 = vpack.c.bf16 %v398, %v397
          %v681 = vpack.c.bf16 %v400, %v399
          %v682 = vpack.c.bf16 %v402, %v401
          %v683 = vpack.c.bf16 %v404, %v403
          %v684 = vpack.c.bf16 %v406, %v405
          %v685 = vpack.c.bf16 %v408, %v407
          %v686 = vpack.c.bf16 %v559, %v558
          %v687 = vpack.c.bf16 %v561, %v560
          %v688 = vpack.c.bf16 %v563, %v562
          %v689 = vpack.c.bf16 %v565, %v564
          %v690 = vpack.c.bf16 %v567, %v566
          %v691 = vpack.c.bf16 %v569, %v568
          %v692 = vpack.c.bf16 %v571, %v570
          %v693 = vpack.c.bf16 %v573, %v572
          %v694 = vpack.c.bf16 %v575, %v574
          %v695 = vpack.c.bf16 %v577, %v576
          %v696 = vpack.c.bf16 %v579, %v578
          %v697 = vpack.c.bf16 %v581, %v580
          %v698 = vpack.c.bf16 %v583, %v582
          %v699 = vpack.c.bf16 %v585, %v584
          %v700 = vpack.c.bf16 %v587, %v586
          %v701 = vpack.c.bf16 %v589, %v588
          %v702 = vpack.c.bf16 %v591, %v590
          %v703 = vpack.c.bf16 %v593, %v592
          %v704 = vpack.c.bf16 %v595, %v594
          %v705 = vpack.c.bf16 %v597, %v596
          %v706 = vpack.c.bf16 %v599, %v598
          %v707 = vpack.c.bf16 %v601, %v600
          %v708 = vpack.c.bf16 %v603, %v602
          %v709 = vpack.c.bf16 %v605, %v604
          %v710 = vpack.c.bf16 %v607, %v606
          %v711 = vpack.c.bf16 %v609, %v608
          %v712 = vpack.c.bf16 %v611, %v610
          %v713 = vpack.c.bf16 %v613, %v612
          %v714 = vpack.c.bf16 %v615, %v614
          %v715 = vpack.c.bf16 %v617, %v616
          %v716 = vpack.c.bf16 %v619, %v618
          %v717 = vpack.c.bf16 %v621, %v620
          %v718 = vpack.c.bf16 %v623, %v622
          %v719 = vpack.c.bf16 %v625, %v624
          %v720 = vpack.c.bf16 %v627, %v626
          %v721 = vpack.c.bf16 %v629, %v628
          %v722 = vpack.c.bf16 %v631, %v630
          %v723 = vpack.c.bf16 %v633, %v632
          %v724 = vpack.c.bf16 %v635, %v634
          %v725 = vpack.c.bf16 %v637, %v636
          %v726 = vpack.c.bf16 %v639, %v638
          %v727 = vpack.c.bf16 %v641, %v640
          %v728 = vpack.c.bf16 %v643, %v642
          %v729 = vpack.c.bf16 %v645, %v644
          %v730 = vpack.c.bf16 %v647, %v646
          %v731 = vpack.c.bf16 %v649, %v648
          %v732 = vpack.c.bf16 %v651, %v650
          %v733 = vpack.c.bf16 %v653, %v652
          %v736 = vunpack.c.l.b16 %v554
          %v737 = vunpack.c.l.b16 %v555
          %v738 = vpack.c.b16 %v737, %v736
          %v741 = vsel %vm473, %v654, 0
          %v744 = vsel %vm473, %v655, 0
          %v747 = vsel %vm473, %v656, 0
          %v750 = vsel %vm473, %v657, 0
          %v753 = vsel %vm473, %v658, 0
          %v756 = vsel %vm473, %v659, 0
          %v759 = vsel %vm473, %v660, 0
          %v762 = vsel %vm473, %v661, 0
          %v765 = vsel %vm473, %v662, 0
          %v768 = vsel %vm473, %v663, 0
          %v771 = vsel %vm473, %v664, 0
          %v774 = vsel %vm473, %v665, 0
          %v777 = vsel %vm473, %v666, 0
          %v780 = vsel %vm473, %v667, 0
          %v783 = vsel %vm473, %v668, 0
          %v786 = vsel %vm473, %v669, 0
          %v789 = vsel %vm473, %v670, 0
          %v792 = vsel %vm473, %v671, 0
          %v795 = vsel %vm473, %v672, 0
          %v798 = vsel %vm473, %v673, 0
          %v801 = vsel %vm473, %v674, 0
          %v804 = vsel %vm473, %v675, 0
          %v807 = vsel %vm473, %v676, 0
          %v810 = vsel %vm473, %v677, 0
          %v813 = vsel %vm473, %v678, 0
          %v816 = vsel %vm473, %v679, 0
          %v819 = vsel %vm473, %v680, 0
          %v822 = vsel %vm473, %v681, 0
          %v825 = vsel %vm473, %v682, 0
          %v828 = vsel %vm473, %v683, 0
          %v831 = vsel %vm473, %v684, 0
          %v834 = vsel %vm473, %v685, 0
          %v837 = vsel %vm473, %v686, 0
          %v840 = vsel %vm473, %v687, 0
          %v843 = vsel %vm473, %v688, 0
          %v846 = vsel %vm473, %v689, 0
          %v849 = vsel %vm473, %v690, 0
          %v852 = vsel %vm473, %v691, 0
          %v855 = vsel %vm473, %v692, 0
          %v858 = vsel %vm473, %v693, 0
          %v861 = vsel %vm473, %v694, 0
          %v864 = vsel %vm473, %v695, 0
          %v867 = vsel %vm473, %v696, 0
          %v870 = vsel %vm473, %v697, 0
          %v873 = vsel %vm473, %v698, 0
          %v876 = vsel %vm473, %v699, 0
          %v879 = vsel %vm473, %v700, 0
          %v882 = vsel %vm473, %v701, 0
          %v885 = vsel %vm473, %v702, 0
          %v888 = vsel %vm473, %v703, 0
          %v891 = vsel %vm473, %v704, 0
          %v894 = vsel %vm473, %v705, 0
          %v897 = vsel %vm473, %v706, 0
          %v900 = vsel %vm473, %v707, 0
          %v903 = vsel %vm473, %v708, 0
          %v906 = vsel %vm473, %v709, 0
          %v909 = vsel %vm473, %v710, 0
          %v912 = vsel %vm473, %v711, 0
          %v915 = vsel %vm473, %v712, 0
          %v918 = vsel %vm473, %v713, 0
          %v921 = vsel %vm473, %v714, 0
          %v924 = vsel %vm473, %v715, 0
          %v927 = vsel %vm473, %v716, 0
          %v930 = vsel %vm473, %v717, 0
          %v933 = vsel %vm473, %v718, 0
          %v936 = vsel %vm473, %v719, 0
          %v939 = vsel %vm473, %v720, 0
          %v942 = vsel %vm473, %v721, 0
          %v945 = vsel %vm473, %v722, 0
          %v948 = vsel %vm473, %v723, 0
          %v951 = vsel %vm473, %v724, 0
          %v954 = vsel %vm473, %v725, 0
          %v957 = vsel %vm473, %v726, 0
          %v960 = vsel %vm473, %v727, 0
          %v963 = vsel %vm473, %v728, 0
          %v966 = vsel %vm473, %v729, 0
          %v969 = vsel %vm473, %v730, 0
          %v972 = vsel %vm473, %v731, 0
          %v975 = vsel %vm473, %v732, 0
          %v978 = vsel %vm473, %v733, 0
          %980 = vmatprep.subr.bf16.mxu0 0
          %981 = vmatpush1.bf16.msra.mxu0 %v738
          %982 = vmatprep.subr.bf16.mxu0 0
          %983 = vmatpush1.bf16.msra.mxu0 0
          %984 = vmatprep.subr.bf16.mxu0 0
          %985 = vmatpush1.bf16.msra.mxu0 0
          %986 = vmatprep.subr.bf16.mxu0 0
          %987 = vmatpush1.bf16.msra.mxu0 0
          %988 = vmatprep.subr.bf16.mxu0 0
          %989 = vmatpush1.bf16.msra.mxu0 0
          %990 = vmatprep.subr.bf16.mxu0 0
          %991 = vmatpush1.bf16.msra.mxu0 0
          %992 = vmatprep.subr.bf16.mxu0 0
          %993 = vmatpush1.bf16.msra.mxu0 0
          %994 = vmatprep.subr.bf16.mxu0 0
          %995 = vmatpush1.bf16.msra.mxu0 0
          %996 = vmatprep.subr.bf16.mxu0 0
          %997 = vmatpush1.bf16.msra.mxu0 0
          %998 = vmatprep.subr.bf16.mxu0 0
          %999 = vmatpush1.bf16.msra.mxu0 0
          %1000 = vmatprep.subr.bf16.mxu0 0
          %1001 = vmatpush1.bf16.msra.mxu0 0
          %1002 = vmatprep.subr.bf16.mxu0 0
          %1003 = vmatpush1.bf16.msra.mxu0 0
          %1004 = vmatprep.subr.bf16.mxu0 0
          %1005 = vmatpush1.bf16.msra.mxu0 0
          %1006 = vmatprep.subr.bf16.mxu0 0
          %1007 = vmatpush1.bf16.msra.mxu0 0
          %1008 = vmatprep.subr.bf16.mxu0 0
          %1009 = vmatpush1.bf16.msra.mxu0 0
          %1010 = vmatprep.subr.bf16.mxu0 0
          %1011 = vmatpush1.bf16.msra.mxu0 0
          %1012 = vmatprep.mubr.bf16.mxu0 0
          %1013 = vmatmul.mubr.bf16.gmra.mrb[0].mxu0 %v741
          %v1014 = vpop.f32.mrb[0].mxu0
          %v1015 = vadd.f32 0.0, %v1014
          %v1016 = vpop.f32.mrb[0].mxu0
          %v1017 = vpop.f32.mrb[0].mxu0
          %v1018 = vadd.f32 0.0, %v1017
          %v1019 = vpop.f32.mrb[0].mxu0
          %1020 = vmatprep.mubr.bf16.mxu0 0
          %1021 = vmatmul.mubr.bf16.gmra.mrb[0].mxu0 %v744
          %v1022 = vpop.f32.mrb[0].mxu0
          %v1023 = vadd.f32 0.0, %v1022
          %v1024 = vpop.f32.mrb[0].mxu0
          %v1025 = vpop.f32.mrb[0].mxu0
          %v1026 = vadd.f32 0.0, %v1025
          %v1027 = vpop.f32.mrb[0].mxu0
          %1028 = vmatprep.mubr.bf16.mxu0 0
          %1029 = vmatmul.mubr.bf16.gmra.mrb[0].mxu0 %v747
          %v1030 = vpop.f32.mrb[0].mxu0
          %v1031 = vadd.f32 0.0, %v1030
          %v1032 = vpop.f32.mrb[0].mxu0
          %v1033 = vpop.f32.mrb[0].mxu0
          %v1034 = vadd.f32 0.0, %v1033
          %v1035 = vpop.f32.mrb[0].mxu0
          %1036 = vmatprep.mubr.bf16.mxu0 0
          %1037 = vmatmul.mubr.bf16.gmra.mrb[0].mxu0 %v750
          %v1038 = vpop.f32.mrb[0].mxu0
          %v1039 = vadd.f32 0.0, %v1038
          %v1040 = vpop.f32.mrb[0].mxu0
          %v1041 = vpop.f32.mrb[0].mxu0
          %v1042 = vadd.f32 0.0, %v1041
          %v1043 = vpop.f32.mrb[0].mxu0
          %1044 = vmatprep.mubr.bf16.mxu0 0
          %1045 = vmatmul.mubr.bf16.gmra.mrb[0].mxu0 %v753
          %v1046 = vpop.f32.mrb[0].mxu0
          %v1047 = vadd.f32 0.0, %v1046
          %v1048 = vpop.f32.mrb[0].mxu0
          %v1049 = vpop.f32.mrb[0].mxu0
          %v1050 = vadd.f32 0.0, %v1049
          %v1051 = vpop.f32.mrb[0].mxu0
          %1052 = vmatprep.mubr.bf16.mxu0 0
          %1053 = vmatmul.mubr.bf16.gmra.mrb[0].mxu0 %v756
          %v1054 = vpop.f32.mrb[0].mxu0
          %v1055 = vadd.f32 0.0, %v1054
          %v1056 = vpop.f32.mrb[0].mxu0
          %v1057 = vpop.f32.mrb[0].mxu0
          %v1058 = vadd.f32 0.0, %v1057
          %v1059 = vpop.f32.mrb[0].mxu0
          %1060 = vmatprep.mubr.bf16.mxu0 0
          %1061 = vmatmul.mubr.bf16.gmra.mrb[0].mxu0 %v759
          %v1062 = vpop.f32.mrb[0].mxu0
          %v1063 = vadd.f32 0.0, %v1062
          %v1064 = vpop.f32.mrb[0].mxu0
          %v1065 = vpop.f32.mrb[0].mxu0
          %v1066 = vadd.f32 0.0, %v1065
          %v1067 = vpop.f32.mrb[0].mxu0
          %1068 = vmatprep.mubr.bf16.mxu0 0
          %1069 = vmatmul.mubr.bf16.gmra.mrb[0].mxu0 %v762
          %v1070 = vpop.f32.mrb[0].mxu0
          %v1071 = vadd.f32 0.0, %v1070
          %v1072 = vpop.f32.mrb[0].mxu0
          %v1073 = vpop.f32.mrb[0].mxu0
          %v1074 = vadd.f32 0.0, %v1073
          %v1075 = vpop.f32.mrb[0].mxu0
          %1076 = vmatprep.mubr.bf16.mxu0 0
          %1077 = vmatmul.mubr.bf16.gmra.mrb[0].mxu0 %v765
          %v1078 = vpop.f32.mrb[0].mxu0
          %v1079 = vadd.f32 0.0, %v1078
          %v1080 = vpop.f32.mrb[0].mxu0
          %v1081 = vpop.f32.mrb[0].mxu0
          %v1082 = vadd.f32 0.0, %v1081
          %v1083 = vpop.f32.mrb[0].mxu0
          %1084 = vmatprep.mubr.bf16.mxu0 0
          %1085 = vmatmul.mubr.bf16.gmra.mrb[0].mxu0 %v768
          %v1086 = vpop.f32.mrb[0].mxu0
          %v1087 = vadd.f32 0.0, %v1086
          %v1088 = vpop.f32.mrb[0].mxu0
          %v1089 = vpop.f32.mrb[0].mxu0
          %v1090 = vadd.f32 0.0, %v1089
          %v1091 = vpop.f32.mrb[0].mxu0
          %1092 = vmatprep.mubr.bf16.mxu0 0
          %1093 = vmatmul.mubr.bf16.gmra.mrb[0].mxu0 %v771
          %v1094 = vpop.f32.mrb[0].mxu0
          %v1095 = vadd.f32 0.0, %v1094
          %v1096 = vpop.f32.mrb[0].mxu0
          %v1097 = vpop.f32.mrb[0].mxu0
          %v1098 = vadd.f32 0.0, %v1097
          %v1099 = vpop.f32.mrb[0].mxu0
          %1100 = vmatprep.mubr.bf16.mxu0 0
          %1101 = vmatmul.mubr.bf16.gmra.mrb[0].mxu0 %v774
          %v1102 = vpop.f32.mrb[0].mxu0
          %v1103 = vadd.f32 0.0, %v1102
          %v1104 = vpop.f32.mrb[0].mxu0
          %v1105 = vpop.f32.mrb[0].mxu0
          %v1106 = vadd.f32 0.0, %v1105
          %v1107 = vpop.f32.mrb[0].mxu0
          %1108 = vmatprep.mubr.bf16.mxu0 0
          %1109 = vmatmul.mubr.bf16.gmra.mrb[0].mxu0 %v777
          %v1110 = vpop.f32.mrb[0].mxu0
          %v1111 = vadd.f32 0.0, %v1110
          %v1112 = vpop.f32.mrb[0].mxu0
          %v1113 = vpop.f32.mrb[0].mxu0
          %v1114 = vadd.f32 0.0, %v1113
          %v1115 = vpop.f32.mrb[0].mxu0
          %1116 = vmatprep.mubr.bf16.mxu0 0
          %1117 = vmatmul.mubr.bf16.gmra.mrb[0].mxu0 %v780
          %v1118 = vpop.f32.mrb[0].mxu0
          %v1119 = vadd.f32 0.0, %v1118
          %v1120 = vpop.f32.mrb[0].mxu0
          %v1121 = vpop.f32.mrb[0].mxu0
          %v1122 = vadd.f32 0.0, %v1121
          %v1123 = vpop.f32.mrb[0].mxu0
          %1124 = vmatprep.mubr.bf16.mxu0 0
          %1125 = vmatmul.mubr.bf16.gmra.mrb[0].mxu0 %v783
          %v1126 = vpop.f32.mrb[0].mxu0
          %v1127 = vadd.f32 0.0, %v1126
          %v1128 = vpop.f32.mrb[0].mxu0
          %v1129 = vpop.f32.mrb[0].mxu0
          %v1130 = vadd.f32 0.0, %v1129
          %v1131 = vpop.f32.mrb[0].mxu0
          %1132 = vmatprep.mubr.bf16.mxu0 0
          %1133 = vmatmul.mubr.bf16.gmra.mrb[0].mxu0 %v786
          %v1134 = vpop.f32.mrb[0].mxu0
          %v1135 = vadd.f32 0.0, %v1134
          %v1136 = vpop.f32.mrb[0].mxu0
          %v1137 = vpop.f32.mrb[0].mxu0
          %v1138 = vadd.f32 0.0, %v1137
          %v1139 = vpop.f32.mrb[0].mxu0
          %1140 = vmatprep.mubr.bf16.mxu0 0
          %1141 = vmatmul.mubr.bf16.gmra.mrb[0].mxu0 %v789
          %v1142 = vpop.f32.mrb[0].mxu0
          %v1143 = vadd.f32 0.0, %v1142
          %v1144 = vpop.f32.mrb[0].mxu0
          %v1145 = vpop.f32.mrb[0].mxu0
          %v1146 = vadd.f32 0.0, %v1145
          %v1147 = vpop.f32.mrb[0].mxu0
          %1148 = vmatprep.mubr.bf16.mxu0 0
          %1149 = vmatmul.mubr.bf16.gmra.mrb[0].mxu0 %v792
          %v1150 = vpop.f32.mrb[0].mxu0
          %v1151 = vadd.f32 0.0, %v1150
          %v1152 = vpop.f32.mrb[0].mxu0
          %v1153 = vpop.f32.mrb[0].mxu0
          %v1154 = vadd.f32 0.0, %v1153
          %v1155 = vpop.f32.mrb[0].mxu0
          %1156 = vmatprep.mubr.bf16.mxu0 0
          %1157 = vmatmul.mubr.bf16.gmra.mrb[0].mxu0 %v795
          %v1158 = vpop.f32.mrb[0].mxu0
          %v1159 = vadd.f32 0.0, %v1158
          %v1160 = vpop.f32.mrb[0].mxu0
          %v1161 = vpop.f32.mrb[0].mxu0
          %v1162 = vadd.f32 0.0, %v1161
          %v1163 = vpop.f32.mrb[0].mxu0
          %1164 = vmatprep.mubr.bf16.mxu0 0
          %1165 = vmatmul.mubr.bf16.gmra.mrb[0].mxu0 %v798
          %v1166 = vpop.f32.mrb[0].mxu0
          %v1167 = vadd.f32 0.0, %v1166
          %v1168 = vpop.f32.mrb[0].mxu0
          %v1169 = vpop.f32.mrb[0].mxu0
          %v1170 = vadd.f32 0.0, %v1169
          %v1171 = vpop.f32.mrb[0].mxu0
          %1172 = vmatprep.mubr.bf16.mxu0 0
          %1173 = vmatmul.mubr.bf16.gmra.mrb[0].mxu0 %v801
          %v1174 = vpop.f32.mrb[0].mxu0
          %v1175 = vadd.f32 0.0, %v1174
          %v1176 = vpop.f32.mrb[0].mxu0
          %v1177 = vpop.f32.mrb[0].mxu0
          %v1178 = vadd.f32 0.0, %v1177
          %v1179 = vpop.f32.mrb[0].mxu0
          %1180 = vmatprep.mubr.bf16.mxu0 0
          %1181 = vmatmul.mubr.bf16.gmra.mrb[0].mxu0 %v804
          %v1182 = vpop.f32.mrb[0].mxu0
          %v1183 = vadd.f32 0.0, %v1182
          %v1184 = vpop.f32.mrb[0].mxu0
          %v1185 = vpop.f32.mrb[0].mxu0
          %v1186 = vadd.f32 0.0, %v1185
          %v1187 = vpop.f32.mrb[0].mxu0
          %1188 = vmatprep.mubr.bf16.mxu0 0
          %1189 = vmatmul.mubr.bf16.gmra.mrb[0].mxu0 %v807
          %v1190 = vpop.f32.mrb[0].mxu0
          %v1191 = vadd.f32 0.0, %v1190
          %v1192 = vpop.f32.mrb[0].mxu0
          %v1193 = vpop.f32.mrb[0].mxu0
          %v1194 = vadd.f32 0.0, %v1193
          %v1195 = vpop.f32.mrb[0].mxu0
          %1196 = vmatprep.mubr.bf16.mxu0 0
          %1197 = vmatmul.mubr.bf16.gmra.mrb[0].mxu0 %v810
          %v1198 = vpop.f32.mrb[0].mxu0
          %v1199 = vadd.f32 0.0, %v1198
          %v1200 = vpop.f32.mrb[0].mxu0
          %v1201 = vpop.f32.mrb[0].mxu0
          %v1202 = vadd.f32 0.0, %v1201
          %v1203 = vpop.f32.mrb[0].mxu0
          %1204 = vmatprep.mubr.bf16.mxu0 0
          %1205 = vmatmul.mubr.bf16.gmra.mrb[0].mxu0 %v813
          %v1206 = vpop.f32.mrb[0].mxu0
          %v1207 = vadd.f32 0.0, %v1206
          %v1208 = vpop.f32.mrb[0].mxu0
          %v1209 = vpop.f32.mrb[0].mxu0
          %v1210 = vadd.f32 0.0, %v1209
          %v1211 = vpop.f32.mrb[0].mxu0
          %1212 = vmatprep.mubr.bf16.mxu0 0
          %1213 = vmatmul.mubr.bf16.gmra.mrb[0].mxu0 %v816
          %v1214 = vpop.f32.mrb[0].mxu0
          %v1215 = vadd.f32 0.0, %v1214
          %v1216 = vpop.f32.mrb[0].mxu0
          %v1217 = vpop.f32.mrb[0].mxu0
          %v1218 = vadd.f32 0.0, %v1217
          %v1219 = vpop.f32.mrb[0].mxu0
          %1220 = vmatprep.mubr.bf16.mxu0 0
          %1221 = vmatmul.mubr.bf16.gmra.mrb[0].mxu0 %v819
          %v1222 = vpop.f32.mrb[0].mxu0
          %v1223 = vadd.f32 0.0, %v1222
          %v1224 = vpop.f32.mrb[0].mxu0
          %v1225 = vpop.f32.mrb[0].mxu0
          %v1226 = vadd.f32 0.0, %v1225
          %v1227 = vpop.f32.mrb[0].mxu0
          %1228 = vmatprep.mubr.bf16.mxu0 0
          %1229 = vmatmul.mubr.bf16.gmra.mrb[0].mxu0 %v822
          %v1230 = vpop.f32.mrb[0].mxu0
          %v1231 = vadd.f32 0.0, %v1230
          %v1232 = vpop.f32.mrb[0].mxu0
          %v1233 = vpop.f32.mrb[0].mxu0
          %v1234 = vadd.f32 0.0, %v1233
          %v1235 = vpop.f32.mrb[0].mxu0
          %1236 = vmatprep.mubr.bf16.mxu0 0
          %1237 = vmatmul.mubr.bf16.gmra.mrb[0].mxu0 %v825
          %v1238 = vpop.f32.mrb[0].mxu0
          %v1239 = vadd.f32 0.0, %v1238
          %v1240 = vpop.f32.mrb[0].mxu0
          %v1241 = vpop.f32.mrb[0].mxu0
          %v1242 = vadd.f32 0.0, %v1241
          %v1243 = vpop.f32.mrb[0].mxu0
          %1244 = vmatprep.mubr.bf16.mxu0 0
          %1245 = vmatmul.mubr.bf16.gmra.mrb[0].mxu0 %v828
          %v1246 = vpop.f32.mrb[0].mxu0
          %v1247 = vadd.f32 0.0, %v1246
          %v1248 = vpop.f32.mrb[0].mxu0
          %v1249 = vpop.f32.mrb[0].mxu0
          %v1250 = vadd.f32 0.0, %v1249
          %v1251 = vpop.f32.mrb[0].mxu0
          %1252 = vmatprep.mubr.bf16.mxu0 0
          %1253 = vmatmul.mubr.bf16.gmra.mrb[0].mxu0 %v831
          %v1254 = vpop.f32.mrb[0].mxu0
          %v1255 = vadd.f32 0.0, %v1254
          %v1256 = vpop.f32.mrb[0].mxu0
          %v1257 = vpop.f32.mrb[0].mxu0
          %v1258 = vadd.f32 0.0, %v1257
          %v1259 = vpop.f32.mrb[0].mxu0
          %1260 = vmatprep.mubr.bf16.mxu0 0
          %1261 = vmatmul.mubr.bf16.gmra.mrb[0].mxu0 %v834
          %v1262 = vpop.f32.mrb[0].mxu0
          %v1263 = vadd.f32 0.0, %v1262
          %v1264 = vpop.f32.mrb[0].mxu0
          %v1265 = vpop.f32.mrb[0].mxu0
          %v1266 = vadd.f32 0.0, %v1265
          %v1267 = vpop.f32.mrb[0].mxu0
          %1268 = vmatprep.mubr.bf16.mxu0 0
          %1269 = vmatmul.mubr.bf16.gmra.mrb[0].mxu0 %v837
          %v1270 = vpop.f32.mrb[0].mxu0
          %v1271 = vadd.f32 0.0, %v1270
          %v1272 = vpop.f32.mrb[0].mxu0
          %v1273 = vpop.f32.mrb[0].mxu0
          %v1274 = vadd.f32 0.0, %v1273
          %v1275 = vpop.f32.mrb[0].mxu0
          %1276 = vmatprep.mubr.bf16.mxu0 0
          %1277 = vmatmul.mubr.bf16.gmra.mrb[0].mxu0 %v840
          %v1278 = vpop.f32.mrb[0].mxu0
          %v1279 = vadd.f32 0.0, %v1278
          %v1280 = vpop.f32.mrb[0].mxu0
          %v1281 = vpop.f32.mrb[0].mxu0
          %v1282 = vadd.f32 0.0, %v1281
          %v1283 = vpop.f32.mrb[0].mxu0
          %1284 = vmatprep.mubr.bf16.mxu0 0
          %1285 = vmatmul.mubr.bf16.gmra.mrb[0].mxu0 %v843
          %v1286 = vpop.f32.mrb[0].mxu0
          %v1287 = vadd.f32 0.0, %v1286
          %v1288 = vpop.f32.mrb[0].mxu0
          %v1289 = vpop.f32.mrb[0].mxu0
          %v1290 = vadd.f32 0.0, %v1289
          %v1291 = vpop.f32.mrb[0].mxu0
          %1292 = vmatprep.mubr.bf16.mxu0 0
          %1293 = vmatmul.mubr.bf16.gmra.mrb[0].mxu0 %v846
          %v1294 = vpop.f32.mrb[0].mxu0
          %v1295 = vadd.f32 0.0, %v1294
          %v1296 = vpop.f32.mrb[0].mxu0
          %v1297 = vpop.f32.mrb[0].mxu0
          %v1298 = vadd.f32 0.0, %v1297
          %v1299 = vpop.f32.mrb[0].mxu0
          %1300 = vmatprep.mubr.bf16.mxu0 0
          %1301 = vmatmul.mubr.bf16.gmra.mrb[0].mxu0 %v849
          %v1302 = vpop.f32.mrb[0].mxu0
          %v1303 = vadd.f32 0.0, %v1302
          %v1304 = vpop.f32.mrb[0].mxu0
          %v1305 = vpop.f32.mrb[0].mxu0
          %v1306 = vadd.f32 0.0, %v1305
          %v1307 = vpop.f32.mrb[0].mxu0
          %1308 = vmatprep.mubr.bf16.mxu0 0
          %1309 = vmatmul.mubr.bf16.gmra.mrb[0].mxu0 %v852
          %v1310 = vpop.f32.mrb[0].mxu0
          %v1311 = vadd.f32 0.0, %v1310
          %v1312 = vpop.f32.mrb[0].mxu0
          %v1313 = vpop.f32.mrb[0].mxu0
          %v1314 = vadd.f32 0.0, %v1313
          %v1315 = vpop.f32.mrb[0].mxu0
          %1316 = vmatprep.mubr.bf16.mxu0 0
          %1317 = vmatmul.mubr.bf16.gmra.mrb[0].mxu0 %v855
          %v1318 = vpop.f32.mrb[0].mxu0
          %v1319 = vadd.f32 0.0, %v1318
          %v1320 = vpop.f32.mrb[0].mxu0
          %v1321 = vpop.f32.mrb[0].mxu0
          %v1322 = vadd.f32 0.0, %v1321
          %v1323 = vpop.f32.mrb[0].mxu0
          %1324 = vmatprep.mubr.bf16.mxu0 0
          %1325 = vmatmul.mubr.bf16.gmra.mrb[0].mxu0 %v858
          %v1326 = vpop.f32.mrb[0].mxu0
          %v1327 = vadd.f32 0.0, %v1326
          %v1328 = vpop.f32.mrb[0].mxu0
          %v1329 = vpop.f32.mrb[0].mxu0
          %v1330 = vadd.f32 0.0, %v1329
          %v1331 = vpop.f32.mrb[0].mxu0
          %1332 = vmatprep.mubr.bf16.mxu0 0
          %1333 = vmatmul.mubr.bf16.gmra.mrb[0].mxu0 %v861
          %v1334 = vpop.f32.mrb[0].mxu0
          %v1335 = vadd.f32 0.0, %v1334
          %v1336 = vpop.f32.mrb[0].mxu0
          %v1337 = vpop.f32.mrb[0].mxu0
          %v1338 = vadd.f32 0.0, %v1337
          %v1339 = vpop.f32.mrb[0].mxu0
          %1340 = vmatprep.mubr.bf16.mxu0 0
          %1341 = vmatmul.mubr.bf16.gmra.mrb[0].mxu0 %v864
          %v1342 = vpop.f32.mrb[0].mxu0
          %v1343 = vadd.f32 0.0, %v1342
          %v1344 = vpop.f32.mrb[0].mxu0
          %v1345 = vpop.f32.mrb[0].mxu0
          %v1346 = vadd.f32 0.0, %v1345
          %v1347 = vpop.f32.mrb[0].mxu0
          %1348 = vmatprep.mubr.bf16.mxu0 0
          %1349 = vmatmul.mubr.bf16.gmra.mrb[0].mxu0 %v867
          %v1350 = vpop.f32.mrb[0].mxu0
          %v1351 = vadd.f32 0.0, %v1350
          %v1352 = vpop.f32.mrb[0].mxu0
          %v1353 = vpop.f32.mrb[0].mxu0
          %v1354 = vadd.f32 0.0, %v1353
          %v1355 = vpop.f32.mrb[0].mxu0
          %1356 = vmatprep.mubr.bf16.mxu0 0
          %1357 = vmatmul.mubr.bf16.gmra.mrb[0].mxu0 %v870
          %v1358 = vpop.f32.mrb[0].mxu0
          %v1359 = vadd.f32 0.0, %v1358
          %v1360 = vpop.f32.mrb[0].mxu0
          %v1361 = vpop.f32.mrb[0].mxu0
          %v1362 = vadd.f32 0.0, %v1361
          %v1363 = vpop.f32.mrb[0].mxu0
          %1364 = vmatprep.mubr.bf16.mxu0 0
          %1365 = vmatmul.mubr.bf16.gmra.mrb[0].mxu0 %v873
          %v1366 = vpop.f32.mrb[0].mxu0
          %v1367 = vadd.f32 0.0, %v1366
          %v1368 = vpop.f32.mrb[0].mxu0
          %v1369 = vpop.f32.mrb[0].mxu0
          %v1370 = vadd.f32 0.0, %v1369
          %v1371 = vpop.f32.mrb[0].mxu0
          %1372 = vmatprep.mubr.bf16.mxu0 0
          %1373 = vmatmul.mubr.bf16.gmra.mrb[0].mxu0 %v876
          %v1374 = vpop.f32.mrb[0].mxu0
          %v1375 = vadd.f32 0.0, %v1374
          %v1376 = vpop.f32.mrb[0].mxu0
          %v1377 = vpop.f32.mrb[0].mxu0
          %v1378 = vadd.f32 0.0, %v1377
          %v1379 = vpop.f32.mrb[0].mxu0
          %1380 = vmatprep.mubr.bf16.mxu0 0
          %1381 = vmatmul.mubr.bf16.gmra.mrb[0].mxu0 %v879
          %v1382 = vpop.f32.mrb[0].mxu0
          %v1383 = vadd.f32 0.0, %v1382
          %v1384 = vpop.f32.mrb[0].mxu0
          %v1385 = vpop.f32.mrb[0].mxu0
          %v1386 = vadd.f32 0.0, %v1385
          %v1387 = vpop.f32.mrb[0].mxu0
          %1388 = vmatprep.mubr.bf16.mxu0 0
          %1389 = vmatmul.mubr.bf16.gmra.mrb[0].mxu0 %v882
          %v1390 = vpop.f32.mrb[0].mxu0
          %v1391 = vadd.f32 0.0, %v1390
          %v1392 = vpop.f32.mrb[0].mxu0
          %v1393 = vpop.f32.mrb[0].mxu0
          %v1394 = vadd.f32 0.0, %v1393
          %v1395 = vpop.f32.mrb[0].mxu0
          %1396 = vmatprep.mubr.bf16.mxu0 0
          %1397 = vmatmul.mubr.bf16.gmra.mrb[0].mxu0 %v885
          %v1398 = vpop.f32.mrb[0].mxu0
          %v1399 = vadd.f32 0.0, %v1398
          %v1400 = vpop.f32.mrb[0].mxu0
          %v1401 = vpop.f32.mrb[0].mxu0
          %v1402 = vadd.f32 0.0, %v1401
          %v1403 = vpop.f32.mrb[0].mxu0
          %1404 = vmatprep.mubr.bf16.mxu0 0
          %1405 = vmatmul.mubr.bf16.gmra.mrb[0].mxu0 %v888
          %v1406 = vpop.f32.mrb[0].mxu0
          %v1407 = vadd.f32 0.0, %v1406
          %v1408 = vpop.f32.mrb[0].mxu0
          %v1409 = vpop.f32.mrb[0].mxu0
          %v1410 = vadd.f32 0.0, %v1409
          %v1411 = vpop.f32.mrb[0].mxu0
          %1412 = vmatprep.mubr.bf16.mxu0 0
          %1413 = vmatmul.mubr.bf16.gmra.mrb[0].mxu0 %v891
          %v1414 = vpop.f32.mrb[0].mxu0
          %v1415 = vadd.f32 0.0, %v1414
          %v1416 = vpop.f32.mrb[0].mxu0
          %v1417 = vpop.f32.mrb[0].mxu0
          %v1418 = vadd.f32 0.0, %v1417
          %v1419 = vpop.f32.mrb[0].mxu0
          %1420 = vmatprep.mubr.bf16.mxu0 0
          %1421 = vmatmul.mubr.bf16.gmra.mrb[0].mxu0 %v894
          %v1422 = vpop.f32.mrb[0].mxu0
          %v1423 = vadd.f32 0.0, %v1422
          %v1424 = vpop.f32.mrb[0].mxu0
          %v1425 = vpop.f32.mrb[0].mxu0
          %v1426 = vadd.f32 0.0, %v1425
          %v1427 = vpop.f32.mrb[0].mxu0
          %1428 = vmatprep.mubr.bf16.mxu0 0
          %1429 = vmatmul.mubr.bf16.gmra.mrb[0].mxu0 %v897
          %v1430 = vpop.f32.mrb[0].mxu0
          %v1431 = vadd.f32 0.0, %v1430
          %v1432 = vpop.f32.mrb[0].mxu0
          %v1433 = vpop.f32.mrb[0].mxu0
          %v1434 = vadd.f32 0.0, %v1433
          %v1435 = vpop.f32.mrb[0].mxu0
          %1436 = vmatprep.mubr.bf16.mxu0 0
          %1437 = vmatmul.mubr.bf16.gmra.mrb[0].mxu0 %v900
          %v1438 = vpop.f32.mrb[0].mxu0
          %v1439 = vadd.f32 0.0, %v1438
          %v1440 = vpop.f32.mrb[0].mxu0
          %v1441 = vpop.f32.mrb[0].mxu0
          %v1442 = vadd.f32 0.0, %v1441
          %v1443 = vpop.f32.mrb[0].mxu0
          %1444 = vmatprep.mubr.bf16.mxu0 0
          %1445 = vmatmul.mubr.bf16.gmra.mrb[0].mxu0 %v903
          %v1446 = vpop.f32.mrb[0].mxu0
          %v1447 = vadd.f32 0.0, %v1446
          %v1448 = vpop.f32.mrb[0].mxu0
          %v1449 = vpop.f32.mrb[0].mxu0
          %v1450 = vadd.f32 0.0, %v1449
          %v1451 = vpop.f32.mrb[0].mxu0
          %1452 = vmatprep.mubr.bf16.mxu0 0
          %1453 = vmatmul.mubr.bf16.gmra.mrb[0].mxu0 %v906
          %v1454 = vpop.f32.mrb[0].mxu0
          %v1455 = vadd.f32 0.0, %v1454
          %v1456 = vpop.f32.mrb[0].mxu0
          %v1457 = vpop.f32.mrb[0].mxu0
          %v1458 = vadd.f32 0.0, %v1457
          %v1459 = vpop.f32.mrb[0].mxu0
          %1460 = vmatprep.mubr.bf16.mxu0 0
          %1461 = vmatmul.mubr.bf16.gmra.mrb[0].mxu0 %v909
          %v1462 = vpop.f32.mrb[0].mxu0
          %v1463 = vadd.f32 0.0, %v1462
          %v1464 = vpop.f32.mrb[0].mxu0
          %v1465 = vpop.f32.mrb[0].mxu0
          %v1466 = vadd.f32 0.0, %v1465
          %v1467 = vpop.f32.mrb[0].mxu0
          %1468 = vmatprep.mubr.bf16.mxu0 0
          %1469 = vmatmul.mubr.bf16.gmra.mrb[0].mxu0 %v912
          %v1470 = vpop.f32.mrb[0].mxu0
          %v1471 = vadd.f32 0.0, %v1470
          %v1472 = vpop.f32.mrb[0].mxu0
          %v1473 = vpop.f32.mrb[0].mxu0
          %v1474 = vadd.f32 0.0, %v1473
          %v1475 = vpop.f32.mrb[0].mxu0
          %1476 = vmatprep.mubr.bf16.mxu0 0
          %1477 = vmatmul.mubr.bf16.gmra.mrb[0].mxu0 %v915
          %v1478 = vpop.f32.mrb[0].mxu0
          %v1479 = vadd.f32 0.0, %v1478
          %v1480 = vpop.f32.mrb[0].mxu0
          %v1481 = vpop.f32.mrb[0].mxu0
          %v1482 = vadd.f32 0.0, %v1481
          %v1483 = vpop.f32.mrb[0].mxu0
          %1484 = vmatprep.mubr.bf16.mxu0 0
          %1485 = vmatmul.mubr.bf16.gmra.mrb[0].mxu0 %v918
          %v1486 = vpop.f32.mrb[0].mxu0
          %v1487 = vadd.f32 0.0, %v1486
          %v1488 = vpop.f32.mrb[0].mxu0
          %v1489 = vpop.f32.mrb[0].mxu0
          %v1490 = vadd.f32 0.0, %v1489
          %v1491 = vpop.f32.mrb[0].mxu0
          %1492 = vmatprep.mubr.bf16.mxu0 0
          %1493 = vmatmul.mubr.bf16.gmra.mrb[0].mxu0 %v921
          %v1494 = vpop.f32.mrb[0].mxu0
          %v1495 = vadd.f32 0.0, %v1494
          %v1496 = vpop.f32.mrb[0].mxu0
          %v1497 = vpop.f32.mrb[0].mxu0
          %v1498 = vadd.f32 0.0, %v1497
          %v1499 = vpop.f32.mrb[0].mxu0
          %1500 = vmatprep.mubr.bf16.mxu0 0
          %1501 = vmatmul.mubr.bf16.gmra.mrb[0].mxu0 %v924
          %v1502 = vpop.f32.mrb[0].mxu0
          %v1503 = vadd.f32 0.0, %v1502
          %v1504 = vpop.f32.mrb[0].mxu0
          %v1505 = vpop.f32.mrb[0].mxu0
          %v1506 = vadd.f32 0.0, %v1505
          %v1507 = vpop.f32.mrb[0].mxu0
          %1508 = vmatprep.mubr.bf16.mxu0 0
          %1509 = vmatmul.mubr.bf16.gmra.mrb[0].mxu0 %v927
          %v1510 = vpop.f32.mrb[0].mxu0
          %v1511 = vadd.f32 0.0, %v1510
          %v1512 = vpop.f32.mrb[0].mxu0
          %v1513 = vpop.f32.mrb[0].mxu0
          %v1514 = vadd.f32 0.0, %v1513
          %v1515 = vpop.f32.mrb[0].mxu0
          %1516 = vmatprep.mubr.bf16.mxu0 0
          %1517 = vmatmul.mubr.bf16.gmra.mrb[0].mxu0 %v930
          %v1518 = vpop.f32.mrb[0].mxu0
          %v1519 = vadd.f32 0.0, %v1518
          %v1520 = vpop.f32.mrb[0].mxu0
          %v1521 = vpop.f32.mrb[0].mxu0
          %v1522 = vadd.f32 0.0, %v1521
          %v1523 = vpop.f32.mrb[0].mxu0
          %1524 = vmatprep.mubr.bf16.mxu0 0
          %1525 = vmatmul.mubr.bf16.gmra.mrb[0].mxu0 %v933
          %v1526 = vpop.f32.mrb[0].mxu0
          %v1527 = vadd.f32 0.0, %v1526
          %v1528 = vpop.f32.mrb[0].mxu0
          %v1529 = vpop.f32.mrb[0].mxu0
          %v1530 = vadd.f32 0.0, %v1529
          %v1531 = vpop.f32.mrb[0].mxu0
          %1532 = vmatprep.mubr.bf16.mxu0 0
          %1533 = vmatmul.mubr.bf16.gmra.mrb[0].mxu0 %v936
          %v1534 = vpop.f32.mrb[0].mxu0
          %v1535 = vadd.f32 0.0, %v1534
          %v1536 = vpop.f32.mrb[0].mxu0
          %v1537 = vpop.f32.mrb[0].mxu0
          %v1538 = vadd.f32 0.0, %v1537
          %v1539 = vpop.f32.mrb[0].mxu0
          %1540 = vmatprep.mubr.bf16.mxu0 0
          %1541 = vmatmul.mubr.bf16.gmra.mrb[0].mxu0 %v939
          %v1542 = vpop.f32.mrb[0].mxu0
          %v1543 = vadd.f32 0.0, %v1542
          %v1544 = vpop.f32.mrb[0].mxu0
          %v1545 = vpop.f32.mrb[0].mxu0
          %v1546 = vadd.f32 0.0, %v1545
          %v1547 = vpop.f32.mrb[0].mxu0
          %1548 = vmatprep.mubr.bf16.mxu0 0
          %1549 = vmatmul.mubr.bf16.gmra.mrb[0].mxu0 %v942
          %v1550 = vpop.f32.mrb[0].mxu0
          %v1551 = vadd.f32 0.0, %v1550
          %v1552 = vpop.f32.mrb[0].mxu0
          %v1553 = vpop.f32.mrb[0].mxu0
          %v1554 = vadd.f32 0.0, %v1553
          %v1555 = vpop.f32.mrb[0].mxu0
          %1556 = vmatprep.mubr.bf16.mxu0 0
          %1557 = vmatmul.mubr.bf16.gmra.mrb[0].mxu0 %v945
          %v1558 = vpop.f32.mrb[0].mxu0
          %v1559 = vadd.f32 0.0, %v1558
          %v1560 = vpop.f32.mrb[0].mxu0
          %v1561 = vpop.f32.mrb[0].mxu0
          %v1562 = vadd.f32 0.0, %v1561
          %v1563 = vpop.f32.mrb[0].mxu0
          %1564 = vmatprep.mubr.bf16.mxu0 0
          %1565 = vmatmul.mubr.bf16.gmra.mrb[0].mxu0 %v948
          %v1566 = vpop.f32.mrb[0].mxu0
          %v1567 = vadd.f32 0.0, %v1566
          %v1568 = vpop.f32.mrb[0].mxu0
          %v1569 = vpop.f32.mrb[0].mxu0
          %v1570 = vadd.f32 0.0, %v1569
          %v1571 = vpop.f32.mrb[0].mxu0
          %1572 = vmatprep.mubr.bf16.mxu0 0
          %1573 = vmatmul.mubr.bf16.gmra.mrb[0].mxu0 %v951
          %v1574 = vpop.f32.mrb[0].mxu0
          %v1575 = vadd.f32 0.0, %v1574
          %v1576 = vpop.f32.mrb[0].mxu0
          %v1577 = vpop.f32.mrb[0].mxu0
          %v1578 = vadd.f32 0.0, %v1577
          %v1579 = vpop.f32.mrb[0].mxu0
          %1580 = vmatprep.mubr.bf16.mxu0 0
          %1581 = vmatmul.mubr.bf16.gmra.mrb[0].mxu0 %v954
          %v1582 = vpop.f32.mrb[0].mxu0
          %v1583 = vadd.f32 0.0, %v1582
          %v1584 = vpop.f32.mrb[0].mxu0
          %v1585 = vpop.f32.mrb[0].mxu0
          %v1586 = vadd.f32 0.0, %v1585
          %v1587 = vpop.f32.mrb[0].mxu0
          %1588 = vmatprep.mubr.bf16.mxu0 0
          %1589 = vmatmul.mubr.bf16.gmra.mrb[0].mxu0 %v957
          %v1590 = vpop.f32.mrb[0].mxu0
          %v1591 = vadd.f32 0.0, %v1590
          %v1592 = vpop.f32.mrb[0].mxu0
          %v1593 = vpop.f32.mrb[0].mxu0
          %v1594 = vadd.f32 0.0, %v1593
          %v1595 = vpop.f32.mrb[0].mxu0
          %1596 = vmatprep.mubr.bf16.mxu0 0
          %1597 = vmatmul.mubr.bf16.gmra.mrb[0].mxu0 %v960
          %v1598 = vpop.f32.mrb[0].mxu0
          %v1599 = vadd.f32 0.0, %v1598
          %v1600 = vpop.f32.mrb[0].mxu0
          %v1601 = vpop.f32.mrb[0].mxu0
          %v1602 = vadd.f32 0.0, %v1601
          %v1603 = vpop.f32.mrb[0].mxu0
          %1604 = vmatprep.mubr.bf16.mxu0 0
          %1605 = vmatmul.mubr.bf16.gmra.mrb[0].mxu0 %v963
          %v1606 = vpop.f32.mrb[0].mxu0
          %v1607 = vadd.f32 0.0, %v1606
          %v1608 = vpop.f32.mrb[0].mxu0
          %v1609 = vpop.f32.mrb[0].mxu0
          %v1610 = vadd.f32 0.0, %v1609
          %v1611 = vpop.f32.mrb[0].mxu0
          %1612 = vmatprep.mubr.bf16.mxu0 0
          %1613 = vmatmul.mubr.bf16.gmra.mrb[0].mxu0 %v966
          %v1614 = vpop.f32.mrb[0].mxu0
          %v1615 = vadd.f32 0.0, %v1614
          %v1616 = vpop.f32.mrb[0].mxu0
          %v1617 = vpop.f32.mrb[0].mxu0
          %v1618 = vadd.f32 0.0, %v1617
          %v1619 = vpop.f32.mrb[0].mxu0
          %1620 = vmatprep.mubr.bf16.mxu0 0
          %1621 = vmatmul.mubr.bf16.gmra.mrb[0].mxu0 %v969
          %v1622 = vpop.f32.mrb[0].mxu0
          %v1623 = vadd.f32 0.0, %v1622
          %v1624 = vpop.f32.mrb[0].mxu0
          %v1625 = vpop.f32.mrb[0].mxu0
          %v1626 = vadd.f32 0.0, %v1625
          %v1627 = vpop.f32.mrb[0].mxu0
          %1628 = vmatprep.mubr.bf16.mxu0 0
          %1629 = vmatmul.mubr.bf16.gmra.mrb[0].mxu0 %v972
          %v1630 = vpop.f32.mrb[0].mxu0
          %v1631 = vadd.f32 0.0, %v1630
          %v1632 = vpop.f32.mrb[0].mxu0
          %v1633 = vpop.f32.mrb[0].mxu0
          %v1634 = vadd.f32 0.0, %v1633
          %v1635 = vpop.f32.mrb[0].mxu0
          %1636 = vmatprep.mubr.bf16.mxu0 0
          %1637 = vmatmul.mubr.bf16.gmra.mrb[0].mxu0 %v975
          %v1638 = vpop.f32.mrb[0].mxu0
          %v1639 = vadd.f32 0.0, %v1638
          %v1640 = vpop.f32.mrb[0].mxu0
          %v1641 = vpop.f32.mrb[0].mxu0
          %v1642 = vadd.f32 0.0, %v1641
          %v1643 = vpop.f32.mrb[0].mxu0
          %1644 = vmatprep.mubr.bf16.mxu0 0
          %1645 = vmatmul.mubr.bf16.gmra.mrb[0].mxu0 %v978
          %v1646 = vpop.f32.mrb[0].mxu0
          %v1647 = vadd.f32 0.0, %v1646
          %v1648 = vpop.f32.mrb[0].mxu0
          %v1649 = vpop.f32.mrb[0].mxu0
          %v1650 = vadd.f32 0.0, %v1649
          %v1651 = vpop.f32.mrb[0].mxu0
          %1652 = vdwg.mxu0
          %1653 = vxpose.xlu0.b32.start [1/16] %v1015, 128
          %1654 = vxpose.xlu0.b32.cont [2/16] %v1018, 128
          %1655 = vxpose.xlu0.b32.cont [3/16] 0.0, 128
          %1656 = vxpose.xlu0.b32.cont [4/16] 0.0, 128
          %1657 = vxpose.xlu0.b32.cont [5/16] 0.0, 128
          %1658 = vxpose.xlu0.b32.cont [6/16] 0.0, 128
          %1659 = vxpose.xlu0.b32.cont [7/16] 0.0, 128
          %1660 = vxpose.xlu0.b32.cont [8/16] 0.0, 128
          %1661 = vxpose.xlu0.b32.cont [9/16] 0.0, 128
          %1662 = vxpose.xlu0.b32.cont [10/16] 0.0, 128
          %1663 = vxpose.xlu0.b32.cont [11/16] 0.0, 128
          %1664 = vxpose.xlu0.b32.cont [12/16] 0.0, 128
          %1665 = vxpose.xlu0.b32.cont [13/16] 0.0, 128
          %1666 = vxpose.xlu0.b32.cont [14/16] 0.0, 128
          %1667 = vxpose.xlu0.b32.cont [15/16] 0.0, 128
          %1668 = vxpose.xlu0.b32.end [16/16] 0.0, 128
          %v1669 = vpop.trf.xlu0
          %v1670 = vpop.trf.xlu0
          %v1671 = vpop.trf.xlu0
          %v1672 = vpop.trf.xlu0
          %v1673 = vpop.trf.xlu0
          %v1674 = vpop.trf.xlu0
          %v1675 = vpop.trf.xlu0
          %v1676 = vpop.trf.xlu0
          %v1677 = vpop.trf.xlu0
          %v1678 = vpop.trf.xlu0
          %v1679 = vpop.trf.xlu0
          %v1680 = vpop.trf.xlu0
          %v1681 = vpop.trf.xlu0
          %v1682 = vpop.trf.xlu0
          %v1683 = vpop.trf.xlu0
          %v1684 = vpop.trf.xlu0
          %1685 = vxpose.xlu0.b32.start [1/16] %v1023, 128
          %1686 = vxpose.xlu0.b32.cont [2/16] %v1026, 128
          %1687 = vxpose.xlu0.b32.cont [3/16] 0.0, 128
          %1688 = vxpose.xlu0.b32.cont [4/16] 0.0, 128
          %1689 = vxpose.xlu0.b32.cont [5/16] 0.0, 128
          %1690 = vxpose.xlu0.b32.cont [6/16] 0.0, 128
          %1691 = vxpose.xlu0.b32.cont [7/16] 0.0, 128
          %1692 = vxpose.xlu0.b32.cont [8/16] 0.0, 128
          %1693 = vxpose.xlu0.b32.cont [9/16] 0.0, 128
          %1694 = vxpose.xlu0.b32.cont [10/16] 0.0, 128
          %1695 = vxpose.xlu0.b32.cont [11/16] 0.0, 128
          %1696 = vxpose.xlu0.b32.cont [12/16] 0.0, 128
          %1697 = vxpose.xlu0.b32.cont [13/16] 0.0, 128
          %1698 = vxpose.xlu0.b32.cont [14/16] 0.0, 128
          %1699 = vxpose.xlu0.b32.cont [15/16] 0.0, 128
          %1700 = vxpose.xlu0.b32.end [16/16] 0.0, 128
          %v1701 = vpop.trf.xlu0
          %v1702 = vpop.trf.xlu0
          %v1703 = vpop.trf.xlu0
          %v1704 = vpop.trf.xlu0
          %v1705 = vpop.trf.xlu0
          %v1706 = vpop.trf.xlu0
          %v1707 = vpop.trf.xlu0
          %v1708 = vpop.trf.xlu0
          %v1709 = vpop.trf.xlu0
          %v1710 = vpop.trf.xlu0
          %v1711 = vpop.trf.xlu0
          %v1712 = vpop.trf.xlu0
          %v1713 = vpop.trf.xlu0
          %v1714 = vpop.trf.xlu0
          %v1715 = vpop.trf.xlu0
          %v1716 = vpop.trf.xlu0
          %1717 = vxpose.xlu0.b32.start [1/16] %v1031, 128
          %1718 = vxpose.xlu0.b32.cont [2/16] %v1034, 128
          %1719 = vxpose.xlu0.b32.cont [3/16] 0.0, 128
          %1720 = vxpose.xlu0.b32.cont [4/16] 0.0, 128
          %1721 = vxpose.xlu0.b32.cont [5/16] 0.0, 128
          %1722 = vxpose.xlu0.b32.cont [6/16] 0.0, 128
          %1723 = vxpose.xlu0.b32.cont [7/16] 0.0, 128
          %1724 = vxpose.xlu0.b32.cont [8/16] 0.0, 128
          %1725 = vxpose.xlu0.b32.cont [9/16] 0.0, 128
          %1726 = vxpose.xlu0.b32.cont [10/16] 0.0, 128
          %1727 = vxpose.xlu0.b32.cont [11/16] 0.0, 128
          %1728 = vxpose.xlu0.b32.cont [12/16] 0.0, 128
          %1729 = vxpose.xlu0.b32.cont [13/16] 0.0, 128
          %1730 = vxpose.xlu0.b32.cont [14/16] 0.0, 128
          %1731 = vxpose.xlu0.b32.cont [15/16] 0.0, 128
          %1732 = vxpose.xlu0.b32.end [16/16] 0.0, 128
          %v1733 = vpop.trf.xlu0
          %v1734 = vpop.trf.xlu0
          %v1735 = vpop.trf.xlu0
          %v1736 = vpop.trf.xlu0
          %v1737 = vpop.trf.xlu0
          %v1738 = vpop.trf.xlu0
          %v1739 = vpop.trf.xlu0
          %v1740 = vpop.trf.xlu0
          %v1741 = vpop.trf.xlu0
          %v1742 = vpop.trf.xlu0
          %v1743 = vpop.trf.xlu0
          %v1744 = vpop.trf.xlu0
          %v1745 = vpop.trf.xlu0
          %v1746 = vpop.trf.xlu0
          %v1747 = vpop.trf.xlu0
          %v1748 = vpop.trf.xlu0
          %1749 = vxpose.xlu0.b32.start [1/16] %v1039, 128
          %1750 = vxpose.xlu0.b32.cont [2/16] %v1042, 128
          %1751 = vxpose.xlu0.b32.cont [3/16] 0.0, 128
          %1752 = vxpose.xlu0.b32.cont [4/16] 0.0, 128
          %1753 = vxpose.xlu0.b32.cont [5/16] 0.0, 128
          %1754 = vxpose.xlu0.b32.cont [6/16] 0.0, 128
          %1755 = vxpose.xlu0.b32.cont [7/16] 0.0, 128
          %1756 = vxpose.xlu0.b32.cont [8/16] 0.0, 128
          %1757 = vxpose.xlu0.b32.cont [9/16] 0.0, 128
          %1758 = vxpose.xlu0.b32.cont [10/16] 0.0, 128
          %1759 = vxpose.xlu0.b32.cont [11/16] 0.0, 128
          %1760 = vxpose.xlu0.b32.cont [12/16] 0.0, 128
          %1761 = vxpose.xlu0.b32.cont [13/16] 0.0, 128
          %1762 = vxpose.xlu0.b32.cont [14/16] 0.0, 128
          %1763 = vxpose.xlu0.b32.cont [15/16] 0.0, 128
          %1764 = vxpose.xlu0.b32.end [16/16] 0.0, 128
          %v1765 = vpop.trf.xlu0
          %v1766 = vpop.trf.xlu0
          %v1767 = vpop.trf.xlu0
          %v1768 = vpop.trf.xlu0
          %v1769 = vpop.trf.xlu0
          %v1770 = vpop.trf.xlu0
          %v1771 = vpop.trf.xlu0
          %v1772 = vpop.trf.xlu0
          %v1773 = vpop.trf.xlu0
          %v1774 = vpop.trf.xlu0
          %v1775 = vpop.trf.xlu0
          %v1776 = vpop.trf.xlu0
          %v1777 = vpop.trf.xlu0
          %v1778 = vpop.trf.xlu0
          %v1779 = vpop.trf.xlu0
          %v1780 = vpop.trf.xlu0
          %1781 = vxpose.xlu0.b32.start [1/16] %v1047, 128
          %1782 = vxpose.xlu0.b32.cont [2/16] %v1050, 128
          %1783 = vxpose.xlu0.b32.cont [3/16] 0.0, 128
          %1784 = vxpose.xlu0.b32.cont [4/16] 0.0, 128
          %1785 = vxpose.xlu0.b32.cont [5/16] 0.0, 128
          %1786 = vxpose.xlu0.b32.cont [6/16] 0.0, 128
          %1787 = vxpose.xlu0.b32.cont [7/16] 0.0, 128
          %1788 = vxpose.xlu0.b32.cont [8/16] 0.0, 128
          %1789 = vxpose.xlu0.b32.cont [9/16] 0.0, 128
          %1790 = vxpose.xlu0.b32.cont [10/16] 0.0, 128
          %1791 = vxpose.xlu0.b32.cont [11/16] 0.0, 128
          %1792 = vxpose.xlu0.b32.cont [12/16] 0.0, 128
          %1793 = vxpose.xlu0.b32.cont [13/16] 0.0, 128
          %1794 = vxpose.xlu0.b32.cont [14/16] 0.0, 128
          %1795 = vxpose.xlu0.b32.cont [15/16] 0.0, 128
          %1796 = vxpose.xlu0.b32.end [16/16] 0.0, 128
          %v1797 = vpop.trf.xlu0
          %v1798 = vpop.trf.xlu0
          %v1799 = vpop.trf.xlu0
          %v1800 = vpop.trf.xlu0
          %v1801 = vpop.trf.xlu0
          %v1802 = vpop.trf.xlu0
          %v1803 = vpop.trf.xlu0
          %v1804 = vpop.trf.xlu0
          %v1805 = vpop.trf.xlu0
          %v1806 = vpop.trf.xlu0
          %v1807 = vpop.trf.xlu0
          %v1808 = vpop.trf.xlu0
          %v1809 = vpop.trf.xlu0
          %v1810 = vpop.trf.xlu0
          %v1811 = vpop.trf.xlu0
          %v1812 = vpop.trf.xlu0
          %1813 = vxpose.xlu0.b32.start [1/16] %v1055, 128
          %1814 = vxpose.xlu0.b32.cont [2/16] %v1058, 128
          %1815 = vxpose.xlu0.b32.cont [3/16] 0.0, 128
          %1816 = vxpose.xlu0.b32.cont [4/16] 0.0, 128
          %1817 = vxpose.xlu0.b32.cont [5/16] 0.0, 128
          %1818 = vxpose.xlu0.b32.cont [6/16] 0.0, 128
          %1819 = vxpose.xlu0.b32.cont [7/16] 0.0, 128
          %1820 = vxpose.xlu0.b32.cont [8/16] 0.0, 128
          %1821 = vxpose.xlu0.b32.cont [9/16] 0.0, 128
          %1822 = vxpose.xlu0.b32.cont [10/16] 0.0, 128
          %1823 = vxpose.xlu0.b32.cont [11/16] 0.0, 128
          %1824 = vxpose.xlu0.b32.cont [12/16] 0.0, 128
          %1825 = vxpose.xlu0.b32.cont [13/16] 0.0, 128
          %1826 = vxpose.xlu0.b32.cont [14/16] 0.0, 128
          %1827 = vxpose.xlu0.b32.cont [15/16] 0.0, 128
          %1828 = vxpose.xlu0.b32.end [16/16] 0.0, 128
          %v1829 = vpop.trf.xlu0
          %v1830 = vpop.trf.xlu0
          %v1831 = vpop.trf.xlu0
          %v1832 = vpop.trf.xlu0
          %v1833 = vpop.trf.xlu0
          %v1834 = vpop.trf.xlu0
          %v1835 = vpop.trf.xlu0
          %v1836 = vpop.trf.xlu0
          %v1837 = vpop.trf.xlu0
          %v1838 = vpop.trf.xlu0
          %v1839 = vpop.trf.xlu0
          %v1840 = vpop.trf.xlu0
          %v1841 = vpop.trf.xlu0
          %v1842 = vpop.trf.xlu0
          %v1843 = vpop.trf.xlu0
          %v1844 = vpop.trf.xlu0
          %1845 = vxpose.xlu0.b32.start [1/16] %v1063, 128
          %1846 = vxpose.xlu0.b32.cont [2/16] %v1066, 128
          %1847 = vxpose.xlu0.b32.cont [3/16] 0.0, 128
          %1848 = vxpose.xlu0.b32.cont [4/16] 0.0, 128
          %1849 = vxpose.xlu0.b32.cont [5/16] 0.0, 128
          %1850 = vxpose.xlu0.b32.cont [6/16] 0.0, 128
          %1851 = vxpose.xlu0.b32.cont [7/16] 0.0, 128
          %1852 = vxpose.xlu0.b32.cont [8/16] 0.0, 128
          %1853 = vxpose.xlu0.b32.cont [9/16] 0.0, 128
          %1854 = vxpose.xlu0.b32.cont [10/16] 0.0, 128
          %1855 = vxpose.xlu0.b32.cont [11/16] 0.0, 128
          %1856 = vxpose.xlu0.b32.cont [12/16] 0.0, 128
          %1857 = vxpose.xlu0.b32.cont [13/16] 0.0, 128
          %1858 = vxpose.xlu0.b32.cont [14/16] 0.0, 128
          %1859 = vxpose.xlu0.b32.cont [15/16] 0.0, 128
          %1860 = vxpose.xlu0.b32.end [16/16] 0.0, 128
          %v1861 = vpop.trf.xlu0
          %v1862 = vpop.trf.xlu0
          %v1863 = vpop.trf.xlu0
          %v1864 = vpop.trf.xlu0
          %v1865 = vpop.trf.xlu0
          %v1866 = vpop.trf.xlu0
          %v1867 = vpop.trf.xlu0
          %v1868 = vpop.trf.xlu0
          %v1869 = vpop.trf.xlu0
          %v1870 = vpop.trf.xlu0
          %v1871 = vpop.trf.xlu0
          %v1872 = vpop.trf.xlu0
          %v1873 = vpop.trf.xlu0
          %v1874 = vpop.trf.xlu0
          %v1875 = vpop.trf.xlu0
          %v1876 = vpop.trf.xlu0
          %1877 = vxpose.xlu0.b32.start [1/16] %v1071, 128
          %1878 = vxpose.xlu0.b32.cont [2/16] %v1074, 128
          %1879 = vxpose.xlu0.b32.cont [3/16] 0.0, 128
          %1880 = vxpose.xlu0.b32.cont [4/16] 0.0, 128
          %1881 = vxpose.xlu0.b32.cont [5/16] 0.0, 128
          %1882 = vxpose.xlu0.b32.cont [6/16] 0.0, 128
          %1883 = vxpose.xlu0.b32.cont [7/16] 0.0, 128
          %1884 = vxpose.xlu0.b32.cont [8/16] 0.0, 128
          %1885 = vxpose.xlu0.b32.cont [9/16] 0.0, 128
          %1886 = vxpose.xlu0.b32.cont [10/16] 0.0, 128
          %1887 = vxpose.xlu0.b32.cont [11/16] 0.0, 128
          %1888 = vxpose.xlu0.b32.cont [12/16] 0.0, 128
          %1889 = vxpose.xlu0.b32.cont [13/16] 0.0, 128
          %1890 = vxpose.xlu0.b32.cont [14/16] 0.0, 128
          %1891 = vxpose.xlu0.b32.cont [15/16] 0.0, 128
          %1892 = vxpose.xlu0.b32.end [16/16] 0.0, 128
          %v1893 = vpop.trf.xlu0
          %v1894 = vpop.trf.xlu0
          %v1895 = vpop.trf.xlu0
          %v1896 = vpop.trf.xlu0
          %v1897 = vpop.trf.xlu0
          %v1898 = vpop.trf.xlu0
          %v1899 = vpop.trf.xlu0
          %v1900 = vpop.trf.xlu0
          %v1901 = vpop.trf.xlu0
          %v1902 = vpop.trf.xlu0
          %v1903 = vpop.trf.xlu0
          %v1904 = vpop.trf.xlu0
          %v1905 = vpop.trf.xlu0
          %v1906 = vpop.trf.xlu0
          %v1907 = vpop.trf.xlu0
          %v1908 = vpop.trf.xlu0
          %1909 = vxpose.xlu0.b32.start [1/16] %v1079, 128
          %1910 = vxpose.xlu0.b32.cont [2/16] %v1082, 128
          %1911 = vxpose.xlu0.b32.cont [3/16] 0.0, 128
          %1912 = vxpose.xlu0.b32.cont [4/16] 0.0, 128
          %1913 = vxpose.xlu0.b32.cont [5/16] 0.0, 128
          %1914 = vxpose.xlu0.b32.cont [6/16] 0.0, 128
          %1915 = vxpose.xlu0.b32.cont [7/16] 0.0, 128
          %1916 = vxpose.xlu0.b32.cont [8/16] 0.0, 128
          %1917 = vxpose.xlu0.b32.cont [9/16] 0.0, 128
          %1918 = vxpose.xlu0.b32.cont [10/16] 0.0, 128
          %1919 = vxpose.xlu0.b32.cont [11/16] 0.0, 128
          %1920 = vxpose.xlu0.b32.cont [12/16] 0.0, 128
          %1921 = vxpose.xlu0.b32.cont [13/16] 0.0, 128
          %1922 = vxpose.xlu0.b32.cont [14/16] 0.0, 128
          %1923 = vxpose.xlu0.b32.cont [15/16] 0.0, 128
          %1924 = vxpose.xlu0.b32.end [16/16] 0.0, 128
          %v1925 = vpop.trf.xlu0
          %v1926 = vpop.trf.xlu0
          %v1927 = vpop.trf.xlu0
          %v1928 = vpop.trf.xlu0
          %v1929 = vpop.trf.xlu0
          %v1930 = vpop.trf.xlu0
          %v1931 = vpop.trf.xlu0
          %v1932 = vpop.trf.xlu0
          %v1933 = vpop.trf.xlu0
          %v1934 = vpop.trf.xlu0
          %v1935 = vpop.trf.xlu0
          %v1936 = vpop.trf.xlu0
          %v1937 = vpop.trf.xlu0
          %v1938 = vpop.trf.xlu0
          %v1939 = vpop.trf.xlu0
          %v1940 = vpop.trf.xlu0
          %1941 = vxpose.xlu0.b32.start [1/16] %v1087, 128
          %1942 = vxpose.xlu0.b32.cont [2/16] %v1090, 128
          %1943 = vxpose.xlu0.b32.cont [3/16] 0.0, 128
          %1944 = vxpose.xlu0.b32.cont [4/16] 0.0, 128
          %1945 = vxpose.xlu0.b32.cont [5/16] 0.0, 128
          %1946 = vxpose.xlu0.b32.cont [6/16] 0.0, 128
          %1947 = vxpose.xlu0.b32.cont [7/16] 0.0, 128
          %1948 = vxpose.xlu0.b32.cont [8/16] 0.0, 128
          %1949 = vxpose.xlu0.b32.cont [9/16] 0.0, 128
          %1950 = vxpose.xlu0.b32.cont [10/16] 0.0, 128
          %1951 = vxpose.xlu0.b32.cont [11/16] 0.0, 128
          %1952 = vxpose.xlu0.b32.cont [12/16] 0.0, 128
          %1953 = vxpose.xlu0.b32.cont [13/16] 0.0, 128
          %1954 = vxpose.xlu0.b32.cont [14/16] 0.0, 128
          %1955 = vxpose.xlu0.b32.cont [15/16] 0.0, 128
          %1956 = vxpose.xlu0.b32.end [16/16] 0.0, 128
          %v1957 = vpop.trf.xlu0
          %v1958 = vpop.trf.xlu0
          %v1959 = vpop.trf.xlu0
          %v1960 = vpop.trf.xlu0
          %v1961 = vpop.trf.xlu0
          %v1962 = vpop.trf.xlu0
          %v1963 = vpop.trf.xlu0
          %v1964 = vpop.trf.xlu0
          %v1965 = vpop.trf.xlu0
          %v1966 = vpop.trf.xlu0
          %v1967 = vpop.trf.xlu0
          %v1968 = vpop.trf.xlu0
          %v1969 = vpop.trf.xlu0
          %v1970 = vpop.trf.xlu0
          %v1971 = vpop.trf.xlu0
          %v1972 = vpop.trf.xlu0
          %1973 = vxpose.xlu0.b32.start [1/16] %v1095, 128
          %1974 = vxpose.xlu0.b32.cont [2/16] %v1098, 128
          %1975 = vxpose.xlu0.b32.cont [3/16] 0.0, 128
          %1976 = vxpose.xlu0.b32.cont [4/16] 0.0, 128
          %1977 = vxpose.xlu0.b32.cont [5/16] 0.0, 128
          %1978 = vxpose.xlu0.b32.cont [6/16] 0.0, 128
          %1979 = vxpose.xlu0.b32.cont [7/16] 0.0, 128
          %1980 = vxpose.xlu0.b32.cont [8/16] 0.0, 128
          %1981 = vxpose.xlu0.b32.cont [9/16] 0.0, 128
          %1982 = vxpose.xlu0.b32.cont [10/16] 0.0, 128
          %1983 = vxpose.xlu0.b32.cont [11/16] 0.0, 128
          %1984 = vxpose.xlu0.b32.cont [12/16] 0.0, 128
          %1985 = vxpose.xlu0.b32.cont [13/16] 0.0, 128
          %1986 = vxpose.xlu0.b32.cont [14/16] 0.0, 128
          %1987 = vxpose.xlu0.b32.cont [15/16] 0.0, 128
          %1988 = vxpose.xlu0.b32.end [16/16] 0.0, 128
          %v1989 = vpop.trf.xlu0
          %v1990 = vpop.trf.xlu0
          %v1991 = vpop.trf.xlu0
          %v1992 = vpop.trf.xlu0
          %v1993 = vpop.trf.xlu0
          %v1994 = vpop.trf.xlu0
          %v1995 = vpop.trf.xlu0
          %v1996 = vpop.trf.xlu0
          %v1997 = vpop.trf.xlu0
          %v1998 = vpop.trf.xlu0
          %v1999 = vpop.trf.xlu0
          %v2000 = vpop.trf.xlu0
          %v2001 = vpop.trf.xlu0
          %v2002 = vpop.trf.xlu0
          %v2003 = vpop.trf.xlu0
          %v2004 = vpop.trf.xlu0
          %2005 = vxpose.xlu0.b32.start [1/16] %v1103, 128
          %2006 = vxpose.xlu0.b32.cont [2/16] %v1106, 128
          %2007 = vxpose.xlu0.b32.cont [3/16] 0.0, 128
          %2008 = vxpose.xlu0.b32.cont [4/16] 0.0, 128
          %2009 = vxpose.xlu0.b32.cont [5/16] 0.0, 128
          %2010 = vxpose.xlu0.b32.cont [6/16] 0.0, 128
          %2011 = vxpose.xlu0.b32.cont [7/16] 0.0, 128
          %2012 = vxpose.xlu0.b32.cont [8/16] 0.0, 128
          %2013 = vxpose.xlu0.b32.cont [9/16] 0.0, 128
          %2014 = vxpose.xlu0.b32.cont [10/16] 0.0, 128
          %2015 = vxpose.xlu0.b32.cont [11/16] 0.0, 128
          %2016 = vxpose.xlu0.b32.cont [12/16] 0.0, 128
          %2017 = vxpose.xlu0.b32.cont [13/16] 0.0, 128
          %2018 = vxpose.xlu0.b32.cont [14/16] 0.0, 128
          %2019 = vxpose.xlu0.b32.cont [15/16] 0.0, 128
          %2020 = vxpose.xlu0.b32.end [16/16] 0.0, 128
          %v2021 = vpop.trf.xlu0
          %v2022 = vpop.trf.xlu0
          %v2023 = vpop.trf.xlu0
          %v2024 = vpop.trf.xlu0
          %v2025 = vpop.trf.xlu0
          %v2026 = vpop.trf.xlu0
          %v2027 = vpop.trf.xlu0
          %v2028 = vpop.trf.xlu0
          %v2029 = vpop.trf.xlu0
          %v2030 = vpop.trf.xlu0
          %v2031 = vpop.trf.xlu0
          %v2032 = vpop.trf.xlu0
          %v2033 = vpop.trf.xlu0
          %v2034 = vpop.trf.xlu0
          %v2035 = vpop.trf.xlu0
          %v2036 = vpop.trf.xlu0
          %2037 = vxpose.xlu0.b32.start [1/16] %v1111, 128
          %2038 = vxpose.xlu0.b32.cont [2/16] %v1114, 128
          %2039 = vxpose.xlu0.b32.cont [3/16] 0.0, 128
          %2040 = vxpose.xlu0.b32.cont [4/16] 0.0, 128
          %2041 = vxpose.xlu0.b32.cont [5/16] 0.0, 128
          %2042 = vxpose.xlu0.b32.cont [6/16] 0.0, 128
          %2043 = vxpose.xlu0.b32.cont [7/16] 0.0, 128
          %2044 = vxpose.xlu0.b32.cont [8/16] 0.0, 128
          %2045 = vxpose.xlu0.b32.cont [9/16] 0.0, 128
          %2046 = vxpose.xlu0.b32.cont [10/16] 0.0, 128
          %2047 = vxpose.xlu0.b32.cont [11/16] 0.0, 128
          %2048 = vxpose.xlu0.b32.cont [12/16] 0.0, 128
          %2049 = vxpose.xlu0.b32.cont [13/16] 0.0, 128
          %2050 = vxpose.xlu0.b32.cont [14/16] 0.0, 128
          %2051 = vxpose.xlu0.b32.cont [15/16] 0.0, 128
          %2052 = vxpose.xlu0.b32.end [16/16] 0.0, 128
          %v2053 = vpop.trf.xlu0
          %v2054 = vpop.trf.xlu0
          %v2055 = vpop.trf.xlu0
          %v2056 = vpop.trf.xlu0
          %v2057 = vpop.trf.xlu0
          %v2058 = vpop.trf.xlu0
          %v2059 = vpop.trf.xlu0
          %v2060 = vpop.trf.xlu0
          %v2061 = vpop.trf.xlu0
          %v2062 = vpop.trf.xlu0
          %v2063 = vpop.trf.xlu0
          %v2064 = vpop.trf.xlu0
          %v2065 = vpop.trf.xlu0
          %v2066 = vpop.trf.xlu0
          %v2067 = vpop.trf.xlu0
          %v2068 = vpop.trf.xlu0
          %2069 = vxpose.xlu0.b32.start [1/16] %v1119, 128
          %2070 = vxpose.xlu0.b32.cont [2/16] %v1122, 128
          %2071 = vxpose.xlu0.b32.cont [3/16] 0.0, 128
          %2072 = vxpose.xlu0.b32.cont [4/16] 0.0, 128
          %2073 = vxpose.xlu0.b32.cont [5/16] 0.0, 128
          %2074 = vxpose.xlu0.b32.cont [6/16] 0.0, 128
          %2075 = vxpose.xlu0.b32.cont [7/16] 0.0, 128
          %2076 = vxpose.xlu0.b32.cont [8/16] 0.0, 128
          %2077 = vxpose.xlu0.b32.cont [9/16] 0.0, 128
          %2078 = vxpose.xlu0.b32.cont [10/16] 0.0, 128
          %2079 = vxpose.xlu0.b32.cont [11/16] 0.0, 128
          %2080 = vxpose.xlu0.b32.cont [12/16] 0.0, 128
          %2081 = vxpose.xlu0.b32.cont [13/16] 0.0, 128
          %2082 = vxpose.xlu0.b32.cont [14/16] 0.0, 128
          %2083 = vxpose.xlu0.b32.cont [15/16] 0.0, 128
          %2084 = vxpose.xlu0.b32.end [16/16] 0.0, 128
          %v2085 = vpop.trf.xlu0
          %v2086 = vpop.trf.xlu0
          %v2087 = vpop.trf.xlu0
          %v2088 = vpop.trf.xlu0
          %v2089 = vpop.trf.xlu0
          %v2090 = vpop.trf.xlu0
          %v2091 = vpop.trf.xlu0
          %v2092 = vpop.trf.xlu0
          %v2093 = vpop.trf.xlu0
          %v2094 = vpop.trf.xlu0
          %v2095 = vpop.trf.xlu0
          %v2096 = vpop.trf.xlu0
          %v2097 = vpop.trf.xlu0
          %v2098 = vpop.trf.xlu0
          %v2099 = vpop.trf.xlu0
          %v2100 = vpop.trf.xlu0
          %2101 = vxpose.xlu0.b32.start [1/16] %v1127, 128
          %2102 = vxpose.xlu0.b32.cont [2/16] %v1130, 128
          %2103 = vxpose.xlu0.b32.cont [3/16] 0.0, 128
          %2104 = vxpose.xlu0.b32.cont [4/16] 0.0, 128
          %2105 = vxpose.xlu0.b32.cont [5/16] 0.0, 128
          %2106 = vxpose.xlu0.b32.cont [6/16] 0.0, 128
          %2107 = vxpose.xlu0.b32.cont [7/16] 0.0, 128
          %2108 = vxpose.xlu0.b32.cont [8/16] 0.0, 128
          %2109 = vxpose.xlu0.b32.cont [9/16] 0.0, 128
          %2110 = vxpose.xlu0.b32.cont [10/16] 0.0, 128
          %2111 = vxpose.xlu0.b32.cont [11/16] 0.0, 128
          %2112 = vxpose.xlu0.b32.cont [12/16] 0.0, 128
          %2113 = vxpose.xlu0.b32.cont [13/16] 0.0, 128
          %2114 = vxpose.xlu0.b32.cont [14/16] 0.0, 128
          %2115 = vxpose.xlu0.b32.cont [15/16] 0.0, 128
          %2116 = vxpose.xlu0.b32.end [16/16] 0.0, 128
          %v2117 = vpop.trf.xlu0
          %v2118 = vpop.trf.xlu0
          %v2119 = vpop.trf.xlu0
          %v2120 = vpop.trf.xlu0
          %v2121 = vpop.trf.xlu0
          %v2122 = vpop.trf.xlu0
          %v2123 = vpop.trf.xlu0
          %v2124 = vpop.trf.xlu0
          %v2125 = vpop.trf.xlu0
          %v2126 = vpop.trf.xlu0
          %v2127 = vpop.trf.xlu0
          %v2128 = vpop.trf.xlu0
          %v2129 = vpop.trf.xlu0
          %v2130 = vpop.trf.xlu0
          %v2131 = vpop.trf.xlu0
          %v2132 = vpop.trf.xlu0
          %2133 = vxpose.xlu0.b32.start [1/16] %v1135, 128
          %2134 = vxpose.xlu0.b32.cont [2/16] %v1138, 128
          %2135 = vxpose.xlu0.b32.cont [3/16] 0.0, 128
          %2136 = vxpose.xlu0.b32.cont [4/16] 0.0, 128
          %2137 = vxpose.xlu0.b32.cont [5/16] 0.0, 128
          %2138 = vxpose.xlu0.b32.cont [6/16] 0.0, 128
          %2139 = vxpose.xlu0.b32.cont [7/16] 0.0, 128
          %2140 = vxpose.xlu0.b32.cont [8/16] 0.0, 128
          %2141 = vxpose.xlu0.b32.cont [9/16] 0.0, 128
          %2142 = vxpose.xlu0.b32.cont [10/16] 0.0, 128
          %2143 = vxpose.xlu0.b32.cont [11/16] 0.0, 128
          %2144 = vxpose.xlu0.b32.cont [12/16] 0.0, 128
          %2145 = vxpose.xlu0.b32.cont [13/16] 0.0, 128
          %2146 = vxpose.xlu0.b32.cont [14/16] 0.0, 128
          %2147 = vxpose.xlu0.b32.cont [15/16] 0.0, 128
          %2148 = vxpose.xlu0.b32.end [16/16] 0.0, 128
          %v2149 = vpop.trf.xlu0
          %v2150 = vpop.trf.xlu0
          %v2151 = vpop.trf.xlu0
          %v2152 = vpop.trf.xlu0
          %v2153 = vpop.trf.xlu0
          %v2154 = vpop.trf.xlu0
          %v2155 = vpop.trf.xlu0
          %v2156 = vpop.trf.xlu0
          %v2157 = vpop.trf.xlu0
          %v2158 = vpop.trf.xlu0
          %v2159 = vpop.trf.xlu0
          %v2160 = vpop.trf.xlu0
          %v2161 = vpop.trf.xlu0
          %v2162 = vpop.trf.xlu0
          %v2163 = vpop.trf.xlu0
          %v2164 = vpop.trf.xlu0
          %2165 = vxpose.xlu0.b32.start [1/16] %v1143, 128
          %2166 = vxpose.xlu0.b32.cont [2/16] %v1146, 128
          %2167 = vxpose.xlu0.b32.cont [3/16] 0.0, 128
          %2168 = vxpose.xlu0.b32.cont [4/16] 0.0, 128
          %2169 = vxpose.xlu0.b32.cont [5/16] 0.0, 128
          %2170 = vxpose.xlu0.b32.cont [6/16] 0.0, 128
          %2171 = vxpose.xlu0.b32.cont [7/16] 0.0, 128
          %2172 = vxpose.xlu0.b32.cont [8/16] 0.0, 128
          %2173 = vxpose.xlu0.b32.cont [9/16] 0.0, 128
          %2174 = vxpose.xlu0.b32.cont [10/16] 0.0, 128
          %2175 = vxpose.xlu0.b32.cont [11/16] 0.0, 128
          %2176 = vxpose.xlu0.b32.cont [12/16] 0.0, 128
          %2177 = vxpose.xlu0.b32.cont [13/16] 0.0, 128
          %2178 = vxpose.xlu0.b32.cont [14/16] 0.0, 128
          %2179 = vxpose.xlu0.b32.cont [15/16] 0.0, 128
          %2180 = vxpose.xlu0.b32.end [16/16] 0.0, 128
          %v2181 = vpop.trf.xlu0
          %v2182 = vpop.trf.xlu0
          %v2183 = vpop.trf.xlu0
          %v2184 = vpop.trf.xlu0
          %v2185 = vpop.trf.xlu0
          %v2186 = vpop.trf.xlu0
          %v2187 = vpop.trf.xlu0
          %v2188 = vpop.trf.xlu0
          %v2189 = vpop.trf.xlu0
          %v2190 = vpop.trf.xlu0
          %v2191 = vpop.trf.xlu0
          %v2192 = vpop.trf.xlu0
          %v2193 = vpop.trf.xlu0
          %v2194 = vpop.trf.xlu0
          %v2195 = vpop.trf.xlu0
          %v2196 = vpop.trf.xlu0
          %2197 = vxpose.xlu0.b32.start [1/16] %v1151, 128
          %2198 = vxpose.xlu0.b32.cont [2/16] %v1154, 128
          %2199 = vxpose.xlu0.b32.cont [3/16] 0.0, 128
          %2200 = vxpose.xlu0.b32.cont [4/16] 0.0, 128
          %2201 = vxpose.xlu0.b32.cont [5/16] 0.0, 128
          %2202 = vxpose.xlu0.b32.cont [6/16] 0.0, 128
          %2203 = vxpose.xlu0.b32.cont [7/16] 0.0, 128
          %2204 = vxpose.xlu0.b32.cont [8/16] 0.0, 128
          %2205 = vxpose.xlu0.b32.cont [9/16] 0.0, 128
          %2206 = vxpose.xlu0.b32.cont [10/16] 0.0, 128
          %2207 = vxpose.xlu0.b32.cont [11/16] 0.0, 128
          %2208 = vxpose.xlu0.b32.cont [12/16] 0.0, 128
          %2209 = vxpose.xlu0.b32.cont [13/16] 0.0, 128
          %2210 = vxpose.xlu0.b32.cont [14/16] 0.0, 128
          %2211 = vxpose.xlu0.b32.cont [15/16] 0.0, 128
          %2212 = vxpose.xlu0.b32.end [16/16] 0.0, 128
          %v2213 = vpop.trf.xlu0
          %v2214 = vpop.trf.xlu0
          %v2215 = vpop.trf.xlu0
          %v2216 = vpop.trf.xlu0
          %v2217 = vpop.trf.xlu0
          %v2218 = vpop.trf.xlu0
          %v2219 = vpop.trf.xlu0
          %v2220 = vpop.trf.xlu0
          %v2221 = vpop.trf.xlu0
          %v2222 = vpop.trf.xlu0
          %v2223 = vpop.trf.xlu0
          %v2224 = vpop.trf.xlu0
          %v2225 = vpop.trf.xlu0
          %v2226 = vpop.trf.xlu0
          %v2227 = vpop.trf.xlu0
          %v2228 = vpop.trf.xlu0
          %2229 = vxpose.xlu0.b32.start [1/16] %v1159, 128
          %2230 = vxpose.xlu0.b32.cont [2/16] %v1162, 128
          %2231 = vxpose.xlu0.b32.cont [3/16] 0.0, 128
          %2232 = vxpose.xlu0.b32.cont [4/16] 0.0, 128
          %2233 = vxpose.xlu0.b32.cont [5/16] 0.0, 128
          %2234 = vxpose.xlu0.b32.cont [6/16] 0.0, 128
          %2235 = vxpose.xlu0.b32.cont [7/16] 0.0, 128
          %2236 = vxpose.xlu0.b32.cont [8/16] 0.0, 128
          %2237 = vxpose.xlu0.b32.cont [9/16] 0.0, 128
          %2238 = vxpose.xlu0.b32.cont [10/16] 0.0, 128
          %2239 = vxpose.xlu0.b32.cont [11/16] 0.0, 128
          %2240 = vxpose.xlu0.b32.cont [12/16] 0.0, 128
          %2241 = vxpose.xlu0.b32.cont [13/16] 0.0, 128
          %2242 = vxpose.xlu0.b32.cont [14/16] 0.0, 128
          %2243 = vxpose.xlu0.b32.cont [15/16] 0.0, 128
          %2244 = vxpose.xlu0.b32.end [16/16] 0.0, 128
          %v2245 = vpop.trf.xlu0
          %v2246 = vpop.trf.xlu0
          %v2247 = vpop.trf.xlu0
          %v2248 = vpop.trf.xlu0
          %v2249 = vpop.trf.xlu0
          %v2250 = vpop.trf.xlu0
          %v2251 = vpop.trf.xlu0
          %v2252 = vpop.trf.xlu0
          %v2253 = vpop.trf.xlu0
          %v2254 = vpop.trf.xlu0
          %v2255 = vpop.trf.xlu0
          %v2256 = vpop.trf.xlu0
          %v2257 = vpop.trf.xlu0
          %v2258 = vpop.trf.xlu0
          %v2259 = vpop.trf.xlu0
          %v2260 = vpop.trf.xlu0
          %2261 = vxpose.xlu0.b32.start [1/16] %v1167, 128
          %2262 = vxpose.xlu0.b32.cont [2/16] %v1170, 128
          %2263 = vxpose.xlu0.b32.cont [3/16] 0.0, 128
          %2264 = vxpose.xlu0.b32.cont [4/16] 0.0, 128
          %2265 = vxpose.xlu0.b32.cont [5/16] 0.0, 128
          %2266 = vxpose.xlu0.b32.cont [6/16] 0.0, 128
          %2267 = vxpose.xlu0.b32.cont [7/16] 0.0, 128
          %2268 = vxpose.xlu0.b32.cont [8/16] 0.0, 128
          %2269 = vxpose.xlu0.b32.cont [9/16] 0.0, 128
          %2270 = vxpose.xlu0.b32.cont [10/16] 0.0, 128
          %2271 = vxpose.xlu0.b32.cont [11/16] 0.0, 128
          %2272 = vxpose.xlu0.b32.cont [12/16] 0.0, 128
          %2273 = vxpose.xlu0.b32.cont [13/16] 0.0, 128
          %2274 = vxpose.xlu0.b32.cont [14/16] 0.0, 128
          %2275 = vxpose.xlu0.b32.cont [15/16] 0.0, 128
          %2276 = vxpose.xlu0.b32.end [16/16] 0.0, 128
          %v2277 = vpop.trf.xlu0
          %v2278 = vpop.trf.xlu0
          %v2279 = vpop.trf.xlu0
          %v2280 = vpop.trf.xlu0
          %v2281 = vpop.trf.xlu0
          %v2282 = vpop.trf.xlu0
          %v2283 = vpop.trf.xlu0
          %v2284 = vpop.trf.xlu0
          %v2285 = vpop.trf.xlu0
          %v2286 = vpop.trf.xlu0
          %v2287 = vpop.trf.xlu0
          %v2288 = vpop.trf.xlu0
          %v2289 = vpop.trf.xlu0
          %v2290 = vpop.trf.xlu0
          %v2291 = vpop.trf.xlu0
          %v2292 = vpop.trf.xlu0
          %2293 = vxpose.xlu0.b32.start [1/16] %v1175, 128
          %2294 = vxpose.xlu0.b32.cont [2/16] %v1178, 128
          %2295 = vxpose.xlu0.b32.cont [3/16] 0.0, 128
          %2296 = vxpose.xlu0.b32.cont [4/16] 0.0, 128
          %2297 = vxpose.xlu0.b32.cont [5/16] 0.0, 128
          %2298 = vxpose.xlu0.b32.cont [6/16] 0.0, 128
          %2299 = vxpose.xlu0.b32.cont [7/16] 0.0, 128
          %2300 = vxpose.xlu0.b32.cont [8/16] 0.0, 128
          %2301 = vxpose.xlu0.b32.cont [9/16] 0.0, 128
          %2302 = vxpose.xlu0.b32.cont [10/16] 0.0, 128
          %2303 = vxpose.xlu0.b32.cont [11/16] 0.0, 128
          %2304 = vxpose.xlu0.b32.cont [12/16] 0.0, 128
          %2305 = vxpose.xlu0.b32.cont [13/16] 0.0, 128
          %2306 = vxpose.xlu0.b32.cont [14/16] 0.0, 128
          %2307 = vxpose.xlu0.b32.cont [15/16] 0.0, 128
          %2308 = vxpose.xlu0.b32.end [16/16] 0.0, 128
          %v2309 = vpop.trf.xlu0
          %v2310 = vpop.trf.xlu0
          %v2311 = vpop.trf.xlu0
          %v2312 = vpop.trf.xlu0
          %v2313 = vpop.trf.xlu0
          %v2314 = vpop.trf.xlu0
          %v2315 = vpop.trf.xlu0
          %v2316 = vpop.trf.xlu0
          %v2317 = vpop.trf.xlu0
          %v2318 = vpop.trf.xlu0
          %v2319 = vpop.trf.xlu0
          %v2320 = vpop.trf.xlu0
          %v2321 = vpop.trf.xlu0
          %v2322 = vpop.trf.xlu0
          %v2323 = vpop.trf.xlu0
          %v2324 = vpop.trf.xlu0
          %2325 = vxpose.xlu0.b32.start [1/16] %v1183, 128
          %2326 = vxpose.xlu0.b32.cont [2/16] %v1186, 128
          %2327 = vxpose.xlu0.b32.cont [3/16] 0.0, 128
          %2328 = vxpose.xlu0.b32.cont [4/16] 0.0, 128
          %2329 = vxpose.xlu0.b32.cont [5/16] 0.0, 128
          %2330 = vxpose.xlu0.b32.cont [6/16] 0.0, 128
          %2331 = vxpose.xlu0.b32.cont [7/16] 0.0, 128
          %2332 = vxpose.xlu0.b32.cont [8/16] 0.0, 128
          %2333 = vxpose.xlu0.b32.cont [9/16] 0.0, 128
          %2334 = vxpose.xlu0.b32.cont [10/16] 0.0, 128
          %2335 = vxpose.xlu0.b32.cont [11/16] 0.0, 128
          %2336 = vxpose.xlu0.b32.cont [12/16] 0.0, 128
          %2337 = vxpose.xlu0.b32.cont [13/16] 0.0, 128
          %2338 = vxpose.xlu0.b32.cont [14/16] 0.0, 128
          %2339 = vxpose.xlu0.b32.cont [15/16] 0.0, 128
          %2340 = vxpose.xlu0.b32.end [16/16] 0.0, 128
          %v2341 = vpop.trf.xlu0
          %v2342 = vpop.trf.xlu0
          %v2343 = vpop.trf.xlu0
          %v2344 = vpop.trf.xlu0
          %v2345 = vpop.trf.xlu0
          %v2346 = vpop.trf.xlu0
          %v2347 = vpop.trf.xlu0
          %v2348 = vpop.trf.xlu0
          %v2349 = vpop.trf.xlu0
          %v2350 = vpop.trf.xlu0
          %v2351 = vpop.trf.xlu0
          %v2352 = vpop.trf.xlu0
          %v2353 = vpop.trf.xlu0
          %v2354 = vpop.trf.xlu0
          %v2355 = vpop.trf.xlu0
          %v2356 = vpop.trf.xlu0
          %2357 = vxpose.xlu0.b32.start [1/16] %v1191, 128
          %2358 = vxpose.xlu0.b32.cont [2/16] %v1194, 128
          %2359 = vxpose.xlu0.b32.cont [3/16] 0.0, 128
          %2360 = vxpose.xlu0.b32.cont [4/16] 0.0, 128
          %2361 = vxpose.xlu0.b32.cont [5/16] 0.0, 128
          %2362 = vxpose.xlu0.b32.cont [6/16] 0.0, 128
          %2363 = vxpose.xlu0.b32.cont [7/16] 0.0, 128
          %2364 = vxpose.xlu0.b32.cont [8/16] 0.0, 128
          %2365 = vxpose.xlu0.b32.cont [9/16] 0.0, 128
          %2366 = vxpose.xlu0.b32.cont [10/16] 0.0, 128
          %2367 = vxpose.xlu0.b32.cont [11/16] 0.0, 128
          %2368 = vxpose.xlu0.b32.cont [12/16] 0.0, 128
          %2369 = vxpose.xlu0.b32.cont [13/16] 0.0, 128
          %2370 = vxpose.xlu0.b32.cont [14/16] 0.0, 128
          %2371 = vxpose.xlu0.b32.cont [15/16] 0.0, 128
          %2372 = vxpose.xlu0.b32.end [16/16] 0.0, 128
          %v2373 = vpop.trf.xlu0
          %v2374 = vpop.trf.xlu0
          %v2375 = vpop.trf.xlu0
          %v2376 = vpop.trf.xlu0
          %v2377 = vpop.trf.xlu0
          %v2378 = vpop.trf.xlu0
          %v2379 = vpop.trf.xlu0
          %v2380 = vpop.trf.xlu0
          %v2381 = vpop.trf.xlu0
          %v2382 = vpop.trf.xlu0
          %v2383 = vpop.trf.xlu0
          %v2384 = vpop.trf.xlu0
          %v2385 = vpop.trf.xlu0
          %v2386 = vpop.trf.xlu0
          %v2387 = vpop.trf.xlu0
          %v2388 = vpop.trf.xlu0
          %2389 = vxpose.xlu0.b32.start [1/16] %v1199, 128
          %2390 = vxpose.xlu0.b32.cont [2/16] %v1202, 128
          %2391 = vxpose.xlu0.b32.cont [3/16] 0.0, 128
          %2392 = vxpose.xlu0.b32.cont [4/16] 0.0, 128
          %2393 = vxpose.xlu0.b32.cont [5/16] 0.0, 128
          %2394 = vxpose.xlu0.b32.cont [6/16] 0.0, 128
          %2395 = vxpose.xlu0.b32.cont [7/16] 0.0, 128
          %2396 = vxpose.xlu0.b32.cont [8/16] 0.0, 128
          %2397 = vxpose.xlu0.b32.cont [9/16] 0.0, 128
          %2398 = vxpose.xlu0.b32.cont [10/16] 0.0, 128
          %2399 = vxpose.xlu0.b32.cont [11/16] 0.0, 128
          %2400 = vxpose.xlu0.b32.cont [12/16] 0.0, 128
          %2401 = vxpose.xlu0.b32.cont [13/16] 0.0, 128
          %2402 = vxpose.xlu0.b32.cont [14/16] 0.0, 128
          %2403 = vxpose.xlu0.b32.cont [15/16] 0.0, 128
          %2404 = vxpose.xlu0.b32.end [16/16] 0.0, 128
          %v2405 = vpop.trf.xlu0
          %v2406 = vpop.trf.xlu0
          %v2407 = vpop.trf.xlu0
          %v2408 = vpop.trf.xlu0
          %v2409 = vpop.trf.xlu0
          %v2410 = vpop.trf.xlu0
          %v2411 = vpop.trf.xlu0
          %v2412 = vpop.trf.xlu0
          %v2413 = vpop.trf.xlu0
          %v2414 = vpop.trf.xlu0
          %v2415 = vpop.trf.xlu0
          %v2416 = vpop.trf.xlu0
          %v2417 = vpop.trf.xlu0
          %v2418 = vpop.trf.xlu0
          %v2419 = vpop.trf.xlu0
          %v2420 = vpop.trf.xlu0
          %2421 = vxpose.xlu0.b32.start [1/16] %v1207, 128
          %2422 = vxpose.xlu0.b32.cont [2/16] %v1210, 128
          %2423 = vxpose.xlu0.b32.cont [3/16] 0.0, 128
          %2424 = vxpose.xlu0.b32.cont [4/16] 0.0, 128
          %2425 = vxpose.xlu0.b32.cont [5/16] 0.0, 128
          %2426 = vxpose.xlu0.b32.cont [6/16] 0.0, 128
          %2427 = vxpose.xlu0.b32.cont [7/16] 0.0, 128
          %2428 = vxpose.xlu0.b32.cont [8/16] 0.0, 128
          %2429 = vxpose.xlu0.b32.cont [9/16] 0.0, 128
          %2430 = vxpose.xlu0.b32.cont [10/16] 0.0, 128
          %2431 = vxpose.xlu0.b32.cont [11/16] 0.0, 128
          %2432 = vxpose.xlu0.b32.cont [12/16] 0.0, 128
          %2433 = vxpose.xlu0.b32.cont [13/16] 0.0, 128
          %2434 = vxpose.xlu0.b32.cont [14/16] 0.0, 128
          %2435 = vxpose.xlu0.b32.cont [15/16] 0.0, 128
          %2436 = vxpose.xlu0.b32.end [16/16] 0.0, 128
          %v2437 = vpop.trf.xlu0
          %v2438 = vpop.trf.xlu0
          %v2439 = vpop.trf.xlu0
          %v2440 = vpop.trf.xlu0
          %v2441 = vpop.trf.xlu0
          %v2442 = vpop.trf.xlu0
          %v2443 = vpop.trf.xlu0
          %v2444 = vpop.trf.xlu0
          %v2445 = vpop.trf.xlu0
          %v2446 = vpop.trf.xlu0
          %v2447 = vpop.trf.xlu0
          %v2448 = vpop.trf.xlu0
          %v2449 = vpop.trf.xlu0
          %v2450 = vpop.trf.xlu0
          %v2451 = vpop.trf.xlu0
          %v2452 = vpop.trf.xlu0
          %2453 = vxpose.xlu0.b32.start [1/16] %v1215, 128
          %2454 = vxpose.xlu0.b32.cont [2/16] %v1218, 128
          %2455 = vxpose.xlu0.b32.cont [3/16] 0.0, 128
          %2456 = vxpose.xlu0.b32.cont [4/16] 0.0, 128
          %2457 = vxpose.xlu0.b32.cont [5/16] 0.0, 128
          %2458 = vxpose.xlu0.b32.cont [6/16] 0.0, 128
          %2459 = vxpose.xlu0.b32.cont [7/16] 0.0, 128
          %2460 = vxpose.xlu0.b32.cont [8/16] 0.0, 128
          %2461 = vxpose.xlu0.b32.cont [9/16] 0.0, 128
          %2462 = vxpose.xlu0.b32.cont [10/16] 0.0, 128
          %2463 = vxpose.xlu0.b32.cont [11/16] 0.0, 128
          %2464 = vxpose.xlu0.b32.cont [12/16] 0.0, 128
          %2465 = vxpose.xlu0.b32.cont [13/16] 0.0, 128
          %2466 = vxpose.xlu0.b32.cont [14/16] 0.0, 128
          %2467 = vxpose.xlu0.b32.cont [15/16] 0.0, 128
          %2468 = vxpose.xlu0.b32.end [16/16] 0.0, 128
          %v2469 = vpop.trf.xlu0
          %v2470 = vpop.trf.xlu0
          %v2471 = vpop.trf.xlu0
          %v2472 = vpop.trf.xlu0
          %v2473 = vpop.trf.xlu0
          %v2474 = vpop.trf.xlu0
          %v2475 = vpop.trf.xlu0
          %v2476 = vpop.trf.xlu0
          %v2477 = vpop.trf.xlu0
          %v2478 = vpop.trf.xlu0
          %v2479 = vpop.trf.xlu0
          %v2480 = vpop.trf.xlu0
          %v2481 = vpop.trf.xlu0
          %v2482 = vpop.trf.xlu0
          %v2483 = vpop.trf.xlu0
          %v2484 = vpop.trf.xlu0
          %2485 = vxpose.xlu0.b32.start [1/16] %v1223, 128
          %2486 = vxpose.xlu0.b32.cont [2/16] %v1226, 128
          %2487 = vxpose.xlu0.b32.cont [3/16] 0.0, 128
          %2488 = vxpose.xlu0.b32.cont [4/16] 0.0, 128
          %2489 = vxpose.xlu0.b32.cont [5/16] 0.0, 128
          %2490 = vxpose.xlu0.b32.cont [6/16] 0.0, 128
          %2491 = vxpose.xlu0.b32.cont [7/16] 0.0, 128
          %2492 = vxpose.xlu0.b32.cont [8/16] 0.0, 128
          %2493 = vxpose.xlu0.b32.cont [9/16] 0.0, 128
          %2494 = vxpose.xlu0.b32.cont [10/16] 0.0, 128
          %2495 = vxpose.xlu0.b32.cont [11/16] 0.0, 128
          %2496 = vxpose.xlu0.b32.cont [12/16] 0.0, 128
          %2497 = vxpose.xlu0.b32.cont [13/16] 0.0, 128
          %2498 = vxpose.xlu0.b32.cont [14/16] 0.0, 128
          %2499 = vxpose.xlu0.b32.cont [15/16] 0.0, 128
          %2500 = vxpose.xlu0.b32.end [16/16] 0.0, 128
          %v2501 = vpop.trf.xlu0
          %v2502 = vpop.trf.xlu0
          %v2503 = vpop.trf.xlu0
          %v2504 = vpop.trf.xlu0
          %v2505 = vpop.trf.xlu0
          %v2506 = vpop.trf.xlu0
          %v2507 = vpop.trf.xlu0
          %v2508 = vpop.trf.xlu0
          %v2509 = vpop.trf.xlu0
          %v2510 = vpop.trf.xlu0
          %v2511 = vpop.trf.xlu0
          %v2512 = vpop.trf.xlu0
          %v2513 = vpop.trf.xlu0
          %v2514 = vpop.trf.xlu0
          %v2515 = vpop.trf.xlu0
          %v2516 = vpop.trf.xlu0
          %2517 = vxpose.xlu0.b32.start [1/16] %v1231, 128
          %2518 = vxpose.xlu0.b32.cont [2/16] %v1234, 128
          %2519 = vxpose.xlu0.b32.cont [3/16] 0.0, 128
          %2520 = vxpose.xlu0.b32.cont [4/16] 0.0, 128
          %2521 = vxpose.xlu0.b32.cont [5/16] 0.0, 128
          %2522 = vxpose.xlu0.b32.cont [6/16] 0.0, 128
          %2523 = vxpose.xlu0.b32.cont [7/16] 0.0, 128
          %2524 = vxpose.xlu0.b32.cont [8/16] 0.0, 128
          %2525 = vxpose.xlu0.b32.cont [9/16] 0.0, 128
          %2526 = vxpose.xlu0.b32.cont [10/16] 0.0, 128
          %2527 = vxpose.xlu0.b32.cont [11/16] 0.0, 128
          %2528 = vxpose.xlu0.b32.cont [12/16] 0.0, 128
          %2529 = vxpose.xlu0.b32.cont [13/16] 0.0, 128
          %2530 = vxpose.xlu0.b32.cont [14/16] 0.0, 128
          %2531 = vxpose.xlu0.b32.cont [15/16] 0.0, 128
          %2532 = vxpose.xlu0.b32.end [16/16] 0.0, 128
          %v2533 = vpop.trf.xlu0
          %v2534 = vpop.trf.xlu0
          %v2535 = vpop.trf.xlu0
          %v2536 = vpop.trf.xlu0
          %v2537 = vpop.trf.xlu0
          %v2538 = vpop.trf.xlu0
          %v2539 = vpop.trf.xlu0
          %v2540 = vpop.trf.xlu0
          %v2541 = vpop.trf.xlu0
          %v2542 = vpop.trf.xlu0
          %v2543 = vpop.trf.xlu0
          %v2544 = vpop.trf.xlu0
          %v2545 = vpop.trf.xlu0
          %v2546 = vpop.trf.xlu0
          %v2547 = vpop.trf.xlu0
          %v2548 = vpop.trf.xlu0
          %2549 = vxpose.xlu0.b32.start [1/16] %v1239, 128
          %2550 = vxpose.xlu0.b32.cont [2/16] %v1242, 128
          %2551 = vxpose.xlu0.b32.cont [3/16] 0.0, 128
          %2552 = vxpose.xlu0.b32.cont [4/16] 0.0, 128
          %2553 = vxpose.xlu0.b32.cont [5/16] 0.0, 128
          %2554 = vxpose.xlu0.b32.cont [6/16] 0.0, 128
          %2555 = vxpose.xlu0.b32.cont [7/16] 0.0, 128
          %2556 = vxpose.xlu0.b32.cont [8/16] 0.0, 128
          %2557 = vxpose.xlu0.b32.cont [9/16] 0.0, 128
          %2558 = vxpose.xlu0.b32.cont [10/16] 0.0, 128
          %2559 = vxpose.xlu0.b32.cont [11/16] 0.0, 128
          %2560 = vxpose.xlu0.b32.cont [12/16] 0.0, 128
          %2561 = vxpose.xlu0.b32.cont [13/16] 0.0, 128
          %2562 = vxpose.xlu0.b32.cont [14/16] 0.0, 128
          %2563 = vxpose.xlu0.b32.cont [15/16] 0.0, 128
          %2564 = vxpose.xlu0.b32.end [16/16] 0.0, 128
          %v2565 = vpop.trf.xlu0
          %v2566 = vpop.trf.xlu0
          %v2567 = vpop.trf.xlu0
          %v2568 = vpop.trf.xlu0
          %v2569 = vpop.trf.xlu0
          %v2570 = vpop.trf.xlu0
          %v2571 = vpop.trf.xlu0
          %v2572 = vpop.trf.xlu0
          %v2573 = vpop.trf.xlu0
          %v2574 = vpop.trf.xlu0
          %v2575 = vpop.trf.xlu0
          %v2576 = vpop.trf.xlu0
          %v2577 = vpop.trf.xlu0
          %v2578 = vpop.trf.xlu0
          %v2579 = vpop.trf.xlu0
          %v2580 = vpop.trf.xlu0
          %2581 = vxpose.xlu0.b32.start [1/16] %v1247, 128
          %2582 = vxpose.xlu0.b32.cont [2/16] %v1250, 128
          %2583 = vxpose.xlu0.b32.cont [3/16] 0.0, 128
          %2584 = vxpose.xlu0.b32.cont [4/16] 0.0, 128
          %2585 = vxpose.xlu0.b32.cont [5/16] 0.0, 128
          %2586 = vxpose.xlu0.b32.cont [6/16] 0.0, 128
          %2587 = vxpose.xlu0.b32.cont [7/16] 0.0, 128
          %2588 = vxpose.xlu0.b32.cont [8/16] 0.0, 128
          %2589 = vxpose.xlu0.b32.cont [9/16] 0.0, 128
          %2590 = vxpose.xlu0.b32.cont [10/16] 0.0, 128
          %2591 = vxpose.xlu0.b32.cont [11/16] 0.0, 128
          %2592 = vxpose.xlu0.b32.cont [12/16] 0.0, 128
          %2593 = vxpose.xlu0.b32.cont [13/16] 0.0, 128
          %2594 = vxpose.xlu0.b32.cont [14/16] 0.0, 128
          %2595 = vxpose.xlu0.b32.cont [15/16] 0.0, 128
          %2596 = vxpose.xlu0.b32.end [16/16] 0.0, 128
          %v2597 = vpop.trf.xlu0
          %v2598 = vpop.trf.xlu0
          %v2599 = vpop.trf.xlu0
          %v2600 = vpop.trf.xlu0
          %v2601 = vpop.trf.xlu0
          %v2602 = vpop.trf.xlu0
          %v2603 = vpop.trf.xlu0
          %v2604 = vpop.trf.xlu0
          %v2605 = vpop.trf.xlu0
          %v2606 = vpop.trf.xlu0
          %v2607 = vpop.trf.xlu0
          %v2608 = vpop.trf.xlu0
          %v2609 = vpop.trf.xlu0
          %v2610 = vpop.trf.xlu0
          %v2611 = vpop.trf.xlu0
          %v2612 = vpop.trf.xlu0
          %2613 = vxpose.xlu0.b32.start [1/16] %v1255, 128
          %2614 = vxpose.xlu0.b32.cont [2/16] %v1258, 128
          %2615 = vxpose.xlu0.b32.cont [3/16] 0.0, 128
          %2616 = vxpose.xlu0.b32.cont [4/16] 0.0, 128
          %2617 = vxpose.xlu0.b32.cont [5/16] 0.0, 128
          %2618 = vxpose.xlu0.b32.cont [6/16] 0.0, 128
          %2619 = vxpose.xlu0.b32.cont [7/16] 0.0, 128
          %2620 = vxpose.xlu0.b32.cont [8/16] 0.0, 128
          %2621 = vxpose.xlu0.b32.cont [9/16] 0.0, 128
          %2622 = vxpose.xlu0.b32.cont [10/16] 0.0, 128
          %2623 = vxpose.xlu0.b32.cont [11/16] 0.0, 128
          %2624 = vxpose.xlu0.b32.cont [12/16] 0.0, 128
          %2625 = vxpose.xlu0.b32.cont [13/16] 0.0, 128
          %2626 = vxpose.xlu0.b32.cont [14/16] 0.0, 128
          %2627 = vxpose.xlu0.b32.cont [15/16] 0.0, 128
          %2628 = vxpose.xlu0.b32.end [16/16] 0.0, 128
          %v2629 = vpop.trf.xlu0
          %v2630 = vpop.trf.xlu0
          %v2631 = vpop.trf.xlu0
          %v2632 = vpop.trf.xlu0
          %v2633 = vpop.trf.xlu0
          %v2634 = vpop.trf.xlu0
          %v2635 = vpop.trf.xlu0
          %v2636 = vpop.trf.xlu0
          %v2637 = vpop.trf.xlu0
          %v2638 = vpop.trf.xlu0
          %v2639 = vpop.trf.xlu0
          %v2640 = vpop.trf.xlu0
          %v2641 = vpop.trf.xlu0
          %v2642 = vpop.trf.xlu0
          %v2643 = vpop.trf.xlu0
          %v2644 = vpop.trf.xlu0
          %2645 = vxpose.xlu0.b32.start [1/16] %v1263, 128
          %2646 = vxpose.xlu0.b32.cont [2/16] %v1266, 128
          %2647 = vxpose.xlu0.b32.cont [3/16] 0.0, 128
          %2648 = vxpose.xlu0.b32.cont [4/16] 0.0, 128
          %2649 = vxpose.xlu0.b32.cont [5/16] 0.0, 128
          %2650 = vxpose.xlu0.b32.cont [6/16] 0.0, 128
          %2651 = vxpose.xlu0.b32.cont [7/16] 0.0, 128
          %2652 = vxpose.xlu0.b32.cont [8/16] 0.0, 128
          %2653 = vxpose.xlu0.b32.cont [9/16] 0.0, 128
          %2654 = vxpose.xlu0.b32.cont [10/16] 0.0, 128
          %2655 = vxpose.xlu0.b32.cont [11/16] 0.0, 128
          %2656 = vxpose.xlu0.b32.cont [12/16] 0.0, 128
          %2657 = vxpose.xlu0.b32.cont [13/16] 0.0, 128
          %2658 = vxpose.xlu0.b32.cont [14/16] 0.0, 128
          %2659 = vxpose.xlu0.b32.cont [15/16] 0.0, 128
          %2660 = vxpose.xlu0.b32.end [16/16] 0.0, 128
          %v2661 = vpop.trf.xlu0
          %v2662 = vpop.trf.xlu0
          %v2663 = vpop.trf.xlu0
          %v2664 = vpop.trf.xlu0
          %v2665 = vpop.trf.xlu0
          %v2666 = vpop.trf.xlu0
          %v2667 = vpop.trf.xlu0
          %v2668 = vpop.trf.xlu0
          %v2669 = vpop.trf.xlu0
          %v2670 = vpop.trf.xlu0
          %v2671 = vpop.trf.xlu0
          %v2672 = vpop.trf.xlu0
          %v2673 = vpop.trf.xlu0
          %v2674 = vpop.trf.xlu0
          %v2675 = vpop.trf.xlu0
          %v2676 = vpop.trf.xlu0
          %2677 = vxpose.xlu0.b32.start [1/16] %v1271, 128
          %2678 = vxpose.xlu0.b32.cont [2/16] %v1274, 128
          %2679 = vxpose.xlu0.b32.cont [3/16] 0.0, 128
          %2680 = vxpose.xlu0.b32.cont [4/16] 0.0, 128
          %2681 = vxpose.xlu0.b32.cont [5/16] 0.0, 128
          %2682 = vxpose.xlu0.b32.cont [6/16] 0.0, 128
          %2683 = vxpose.xlu0.b32.cont [7/16] 0.0, 128
          %2684 = vxpose.xlu0.b32.cont [8/16] 0.0, 128
          %2685 = vxpose.xlu0.b32.cont [9/16] 0.0, 128
          %2686 = vxpose.xlu0.b32.cont [10/16] 0.0, 128
          %2687 = vxpose.xlu0.b32.cont [11/16] 0.0, 128
          %2688 = vxpose.xlu0.b32.cont [12/16] 0.0, 128
          %2689 = vxpose.xlu0.b32.cont [13/16] 0.0, 128
          %2690 = vxpose.xlu0.b32.cont [14/16] 0.0, 128
          %2691 = vxpose.xlu0.b32.cont [15/16] 0.0, 128
          %2692 = vxpose.xlu0.b32.end [16/16] 0.0, 128
          %v2693 = vpop.trf.xlu0
          %v2694 = vpop.trf.xlu0
          %v2695 = vpop.trf.xlu0
          %v2696 = vpop.trf.xlu0
          %v2697 = vpop.trf.xlu0
          %v2698 = vpop.trf.xlu0
          %v2699 = vpop.trf.xlu0
          %v2700 = vpop.trf.xlu0
          %v2701 = vpop.trf.xlu0
          %v2702 = vpop.trf.xlu0
          %v2703 = vpop.trf.xlu0
          %v2704 = vpop.trf.xlu0
          %v2705 = vpop.trf.xlu0
          %v2706 = vpop.trf.xlu0
          %v2707 = vpop.trf.xlu0
          %v2708 = vpop.trf.xlu0
          %2709 = vxpose.xlu0.b32.start [1/16] %v1279, 128
          %2710 = vxpose.xlu0.b32.cont [2/16] %v1282, 128
          %2711 = vxpose.xlu0.b32.cont [3/16] 0.0, 128
          %2712 = vxpose.xlu0.b32.cont [4/16] 0.0, 128
          %2713 = vxpose.xlu0.b32.cont [5/16] 0.0, 128
          %2714 = vxpose.xlu0.b32.cont [6/16] 0.0, 128
          %2715 = vxpose.xlu0.b32.cont [7/16] 0.0, 128
          %2716 = vxpose.xlu0.b32.cont [8/16] 0.0, 128
          %2717 = vxpose.xlu0.b32.cont [9/16] 0.0, 128
          %2718 = vxpose.xlu0.b32.cont [10/16] 0.0, 128
          %2719 = vxpose.xlu0.b32.cont [11/16] 0.0, 128
          %2720 = vxpose.xlu0.b32.cont [12/16] 0.0, 128
          %2721 = vxpose.xlu0.b32.cont [13/16] 0.0, 128
          %2722 = vxpose.xlu0.b32.cont [14/16] 0.0, 128
          %2723 = vxpose.xlu0.b32.cont [15/16] 0.0, 128
          %2724 = vxpose.xlu0.b32.end [16/16] 0.0, 128
          %v2725 = vpop.trf.xlu0
          %v2726 = vpop.trf.xlu0
          %v2727 = vpop.trf.xlu0
          %v2728 = vpop.trf.xlu0
          %v2729 = vpop.trf.xlu0
          %v2730 = vpop.trf.xlu0
          %v2731 = vpop.trf.xlu0
          %v2732 = vpop.trf.xlu0
          %v2733 = vpop.trf.xlu0
          %v2734 = vpop.trf.xlu0
          %v2735 = vpop.trf.xlu0
          %v2736 = vpop.trf.xlu0
          %v2737 = vpop.trf.xlu0
          %v2738 = vpop.trf.xlu0
          %v2739 = vpop.trf.xlu0
          %v2740 = vpop.trf.xlu0
          %2741 = vxpose.xlu0.b32.start [1/16] %v1287, 128
          %2742 = vxpose.xlu0.b32.cont [2/16] %v1290, 128
          %2743 = vxpose.xlu0.b32.cont [3/16] 0.0, 128
          %2744 = vxpose.xlu0.b32.cont [4/16] 0.0, 128
          %2745 = vxpose.xlu0.b32.cont [5/16] 0.0, 128
          %2746 = vxpose.xlu0.b32.cont [6/16] 0.0, 128
          %2747 = vxpose.xlu0.b32.cont [7/16] 0.0, 128
          %2748 = vxpose.xlu0.b32.cont [8/16] 0.0, 128
          %2749 = vxpose.xlu0.b32.cont [9/16] 0.0, 128
          %2750 = vxpose.xlu0.b32.cont [10/16] 0.0, 128
          %2751 = vxpose.xlu0.b32.cont [11/16] 0.0, 128
          %2752 = vxpose.xlu0.b32.cont [12/16] 0.0, 128
          %2753 = vxpose.xlu0.b32.cont [13/16] 0.0, 128
          %2754 = vxpose.xlu0.b32.cont [14/16] 0.0, 128
          %2755 = vxpose.xlu0.b32.cont [15/16] 0.0, 128
          %2756 = vxpose.xlu0.b32.end [16/16] 0.0, 128
          %v2757 = vpop.trf.xlu0
          %v2758 = vpop.trf.xlu0
          %v2759 = vpop.trf.xlu0
          %v2760 = vpop.trf.xlu0
          %v2761 = vpop.trf.xlu0
          %v2762 = vpop.trf.xlu0
          %v2763 = vpop.trf.xlu0
          %v2764 = vpop.trf.xlu0
          %v2765 = vpop.trf.xlu0
          %v2766 = vpop.trf.xlu0
          %v2767 = vpop.trf.xlu0
          %v2768 = vpop.trf.xlu0
          %v2769 = vpop.trf.xlu0
          %v2770 = vpop.trf.xlu0
          %v2771 = vpop.trf.xlu0
          %v2772 = vpop.trf.xlu0
          %2773 = vxpose.xlu0.b32.start [1/16] %v1295, 128
          %2774 = vxpose.xlu0.b32.cont [2/16] %v1298, 128
          %2775 = vxpose.xlu0.b32.cont [3/16] 0.0, 128
          %2776 = vxpose.xlu0.b32.cont [4/16] 0.0, 128
          %2777 = vxpose.xlu0.b32.cont [5/16] 0.0, 128
          %2778 = vxpose.xlu0.b32.cont [6/16] 0.0, 128
          %2779 = vxpose.xlu0.b32.cont [7/16] 0.0, 128
          %2780 = vxpose.xlu0.b32.cont [8/16] 0.0, 128
          %2781 = vxpose.xlu0.b32.cont [9/16] 0.0, 128
          %2782 = vxpose.xlu0.b32.cont [10/16] 0.0, 128
          %2783 = vxpose.xlu0.b32.cont [11/16] 0.0, 128
          %2784 = vxpose.xlu0.b32.cont [12/16] 0.0, 128
          %2785 = vxpose.xlu0.b32.cont [13/16] 0.0, 128
          %2786 = vxpose.xlu0.b32.cont [14/16] 0.0, 128
          %2787 = vxpose.xlu0.b32.cont [15/16] 0.0, 128
          %2788 = vxpose.xlu0.b32.end [16/16] 0.0, 128
          %v2789 = vpop.trf.xlu0
          %v2790 = vpop.trf.xlu0
          %v2791 = vpop.trf.xlu0
          %v2792 = vpop.trf.xlu0
          %v2793 = vpop.trf.xlu0
          %v2794 = vpop.trf.xlu0
          %v2795 = vpop.trf.xlu0
          %v2796 = vpop.trf.xlu0
          %v2797 = vpop.trf.xlu0
          %v2798 = vpop.trf.xlu0
          %v2799 = vpop.trf.xlu0
          %v2800 = vpop.trf.xlu0
          %v2801 = vpop.trf.xlu0
          %v2802 = vpop.trf.xlu0
          %v2803 = vpop.trf.xlu0
          %v2804 = vpop.trf.xlu0
          %2805 = vxpose.xlu0.b32.start [1/16] %v1303, 128
          %2806 = vxpose.xlu0.b32.cont [2/16] %v1306, 128
          %2807 = vxpose.xlu0.b32.cont [3/16] 0.0, 128
          %2808 = vxpose.xlu0.b32.cont [4/16] 0.0, 128
          %2809 = vxpose.xlu0.b32.cont [5/16] 0.0, 128
          %2810 = vxpose.xlu0.b32.cont [6/16] 0.0, 128
          %2811 = vxpose.xlu0.b32.cont [7/16] 0.0, 128
          %2812 = vxpose.xlu0.b32.cont [8/16] 0.0, 128
          %2813 = vxpose.xlu0.b32.cont [9/16] 0.0, 128
          %2814 = vxpose.xlu0.b32.cont [10/16] 0.0, 128
          %2815 = vxpose.xlu0.b32.cont [11/16] 0.0, 128
          %2816 = vxpose.xlu0.b32.cont [12/16] 0.0, 128
          %2817 = vxpose.xlu0.b32.cont [13/16] 0.0, 128
          %2818 = vxpose.xlu0.b32.cont [14/16] 0.0, 128
          %2819 = vxpose.xlu0.b32.cont [15/16] 0.0, 128
          %2820 = vxpose.xlu0.b32.end [16/16] 0.0, 128
          %v2821 = vpop.trf.xlu0
          %v2822 = vpop.trf.xlu0
          %v2823 = vpop.trf.xlu0
          %v2824 = vpop.trf.xlu0
          %v2825 = vpop.trf.xlu0
          %v2826 = vpop.trf.xlu0
          %v2827 = vpop.trf.xlu0
          %v2828 = vpop.trf.xlu0
          %v2829 = vpop.trf.xlu0
          %v2830 = vpop.trf.xlu0
          %v2831 = vpop.trf.xlu0
          %v2832 = vpop.trf.xlu0
          %v2833 = vpop.trf.xlu0
          %v2834 = vpop.trf.xlu0
          %v2835 = vpop.trf.xlu0
          %v2836 = vpop.trf.xlu0
          %2837 = vxpose.xlu0.b32.start [1/16] %v1311, 128
          %2838 = vxpose.xlu0.b32.cont [2/16] %v1314, 128
          %2839 = vxpose.xlu0.b32.cont [3/16] 0.0, 128
          %2840 = vxpose.xlu0.b32.cont [4/16] 0.0, 128
          %2841 = vxpose.xlu0.b32.cont [5/16] 0.0, 128
          %2842 = vxpose.xlu0.b32.cont [6/16] 0.0, 128
          %2843 = vxpose.xlu0.b32.cont [7/16] 0.0, 128
          %2844 = vxpose.xlu0.b32.cont [8/16] 0.0, 128
          %2845 = vxpose.xlu0.b32.cont [9/16] 0.0, 128
          %2846 = vxpose.xlu0.b32.cont [10/16] 0.0, 128
          %2847 = vxpose.xlu0.b32.cont [11/16] 0.0, 128
          %2848 = vxpose.xlu0.b32.cont [12/16] 0.0, 128
          %2849 = vxpose.xlu0.b32.cont [13/16] 0.0, 128
          %2850 = vxpose.xlu0.b32.cont [14/16] 0.0, 128
          %2851 = vxpose.xlu0.b32.cont [15/16] 0.0, 128
          %2852 = vxpose.xlu0.b32.end [16/16] 0.0, 128
          %v2853 = vpop.trf.xlu0
          %v2854 = vpop.trf.xlu0
          %v2855 = vpop.trf.xlu0
          %v2856 = vpop.trf.xlu0
          %v2857 = vpop.trf.xlu0
          %v2858 = vpop.trf.xlu0
          %v2859 = vpop.trf.xlu0
          %v2860 = vpop.trf.xlu0
          %v2861 = vpop.trf.xlu0
          %v2862 = vpop.trf.xlu0
          %v2863 = vpop.trf.xlu0
          %v2864 = vpop.trf.xlu0
          %v2865 = vpop.trf.xlu0
          %v2866 = vpop.trf.xlu0
          %v2867 = vpop.trf.xlu0
          %v2868 = vpop.trf.xlu0
          %2869 = vxpose.xlu0.b32.start [1/16] %v1319, 128
          %2870 = vxpose.xlu0.b32.cont [2/16] %v1322, 128
          %2871 = vxpose.xlu0.b32.cont [3/16] 0.0, 128
          %2872 = vxpose.xlu0.b32.cont [4/16] 0.0, 128
          %2873 = vxpose.xlu0.b32.cont [5/16] 0.0, 128
          %2874 = vxpose.xlu0.b32.cont [6/16] 0.0, 128
          %2875 = vxpose.xlu0.b32.cont [7/16] 0.0, 128
          %2876 = vxpose.xlu0.b32.cont [8/16] 0.0, 128
          %2877 = vxpose.xlu0.b32.cont [9/16] 0.0, 128
          %2878 = vxpose.xlu0.b32.cont [10/16] 0.0, 128
          %2879 = vxpose.xlu0.b32.cont [11/16] 0.0, 128
          %2880 = vxpose.xlu0.b32.cont [12/16] 0.0, 128
          %2881 = vxpose.xlu0.b32.cont [13/16] 0.0, 128
          %2882 = vxpose.xlu0.b32.cont [14/16] 0.0, 128
          %2883 = vxpose.xlu0.b32.cont [15/16] 0.0, 128
          %2884 = vxpose.xlu0.b32.end [16/16] 0.0, 128
          %v2885 = vpop.trf.xlu0
          %v2886 = vpop.trf.xlu0
          %v2887 = vpop.trf.xlu0
          %v2888 = vpop.trf.xlu0
          %v2889 = vpop.trf.xlu0
          %v2890 = vpop.trf.xlu0
          %v2891 = vpop.trf.xlu0
          %v2892 = vpop.trf.xlu0
          %v2893 = vpop.trf.xlu0
          %v2894 = vpop.trf.xlu0
          %v2895 = vpop.trf.xlu0
          %v2896 = vpop.trf.xlu0
          %v2897 = vpop.trf.xlu0
          %v2898 = vpop.trf.xlu0
          %v2899 = vpop.trf.xlu0
          %v2900 = vpop.trf.xlu0
          %2901 = vxpose.xlu0.b32.start [1/16] %v1327, 128
          %2902 = vxpose.xlu0.b32.cont [2/16] %v1330, 128
          %2903 = vxpose.xlu0.b32.cont [3/16] 0.0, 128
          %2904 = vxpose.xlu0.b32.cont [4/16] 0.0, 128
          %2905 = vxpose.xlu0.b32.cont [5/16] 0.0, 128
          %2906 = vxpose.xlu0.b32.cont [6/16] 0.0, 128
          %2907 = vxpose.xlu0.b32.cont [7/16] 0.0, 128
          %2908 = vxpose.xlu0.b32.cont [8/16] 0.0, 128
          %2909 = vxpose.xlu0.b32.cont [9/16] 0.0, 128
          %2910 = vxpose.xlu0.b32.cont [10/16] 0.0, 128
          %2911 = vxpose.xlu0.b32.cont [11/16] 0.0, 128
          %2912 = vxpose.xlu0.b32.cont [12/16] 0.0, 128
          %2913 = vxpose.xlu0.b32.cont [13/16] 0.0, 128
          %2914 = vxpose.xlu0.b32.cont [14/16] 0.0, 128
          %2915 = vxpose.xlu0.b32.cont [15/16] 0.0, 128
          %2916 = vxpose.xlu0.b32.end [16/16] 0.0, 128
          %v2917 = vpop.trf.xlu0
          %v2918 = vpop.trf.xlu0
          %v2919 = vpop.trf.xlu0
          %v2920 = vpop.trf.xlu0
          %v2921 = vpop.trf.xlu0
          %v2922 = vpop.trf.xlu0
          %v2923 = vpop.trf.xlu0
          %v2924 = vpop.trf.xlu0
          %v2925 = vpop.trf.xlu0
          %v2926 = vpop.trf.xlu0
          %v2927 = vpop.trf.xlu0
          %v2928 = vpop.trf.xlu0
          %v2929 = vpop.trf.xlu0
          %v2930 = vpop.trf.xlu0
          %v2931 = vpop.trf.xlu0
          %v2932 = vpop.trf.xlu0
          %2933 = vxpose.xlu0.b32.start [1/16] %v1335, 128
          %2934 = vxpose.xlu0.b32.cont [2/16] %v1338, 128
          %2935 = vxpose.xlu0.b32.cont [3/16] 0.0, 128
          %2936 = vxpose.xlu0.b32.cont [4/16] 0.0, 128
          %2937 = vxpose.xlu0.b32.cont [5/16] 0.0, 128
          %2938 = vxpose.xlu0.b32.cont [6/16] 0.0, 128
          %2939 = vxpose.xlu0.b32.cont [7/16] 0.0, 128
          %2940 = vxpose.xlu0.b32.cont [8/16] 0.0, 128
          %2941 = vxpose.xlu0.b32.cont [9/16] 0.0, 128
          %2942 = vxpose.xlu0.b32.cont [10/16] 0.0, 128
          %2943 = vxpose.xlu0.b32.cont [11/16] 0.0, 128
          %2944 = vxpose.xlu0.b32.cont [12/16] 0.0, 128
          %2945 = vxpose.xlu0.b32.cont [13/16] 0.0, 128
          %2946 = vxpose.xlu0.b32.cont [14/16] 0.0, 128
          %2947 = vxpose.xlu0.b32.cont [15/16] 0.0, 128
          %2948 = vxpose.xlu0.b32.end [16/16] 0.0, 128
          %v2949 = vpop.trf.xlu0
          %v2950 = vpop.trf.xlu0
          %v2951 = vpop.trf.xlu0
          %v2952 = vpop.trf.xlu0
          %v2953 = vpop.trf.xlu0
          %v2954 = vpop.trf.xlu0
          %v2955 = vpop.trf.xlu0
          %v2956 = vpop.trf.xlu0
          %v2957 = vpop.trf.xlu0
          %v2958 = vpop.trf.xlu0
          %v2959 = vpop.trf.xlu0
          %v2960 = vpop.trf.xlu0
          %v2961 = vpop.trf.xlu0
          %v2962 = vpop.trf.xlu0
          %v2963 = vpop.trf.xlu0
          %v2964 = vpop.trf.xlu0
          %2965 = vxpose.xlu0.b32.start [1/16] %v1343, 128
          %2966 = vxpose.xlu0.b32.cont [2/16] %v1346, 128
          %2967 = vxpose.xlu0.b32.cont [3/16] 0.0, 128
          %2968 = vxpose.xlu0.b32.cont [4/16] 0.0, 128
          %2969 = vxpose.xlu0.b32.cont [5/16] 0.0, 128
          %2970 = vxpose.xlu0.b32.cont [6/16] 0.0, 128
          %2971 = vxpose.xlu0.b32.cont [7/16] 0.0, 128
          %2972 = vxpose.xlu0.b32.cont [8/16] 0.0, 128
          %2973 = vxpose.xlu0.b32.cont [9/16] 0.0, 128
          %2974 = vxpose.xlu0.b32.cont [10/16] 0.0, 128
          %2975 = vxpose.xlu0.b32.cont [11/16] 0.0, 128
          %2976 = vxpose.xlu0.b32.cont [12/16] 0.0, 128
          %2977 = vxpose.xlu0.b32.cont [13/16] 0.0, 128
          %2978 = vxpose.xlu0.b32.cont [14/16] 0.0, 128
          %2979 = vxpose.xlu0.b32.cont [15/16] 0.0, 128
          %2980 = vxpose.xlu0.b32.end [16/16] 0.0, 128
          %v2981 = vpop.trf.xlu0
          %v2982 = vpop.trf.xlu0
          %v2983 = vpop.trf.xlu0
          %v2984 = vpop.trf.xlu0
          %v2985 = vpop.trf.xlu0
          %v2986 = vpop.trf.xlu0
          %v2987 = vpop.trf.xlu0
          %v2988 = vpop.trf.xlu0
          %v2989 = vpop.trf.xlu0
          %v2990 = vpop.trf.xlu0
          %v2991 = vpop.trf.xlu0
          %v2992 = vpop.trf.xlu0
          %v2993 = vpop.trf.xlu0
          %v2994 = vpop.trf.xlu0
          %v2995 = vpop.trf.xlu0
          %v2996 = vpop.trf.xlu0
          %2997 = vxpose.xlu0.b32.start [1/16] %v1351, 128
          %2998 = vxpose.xlu0.b32.cont [2/16] %v1354, 128
          %2999 = vxpose.xlu0.b32.cont [3/16] 0.0, 128
          %3000 = vxpose.xlu0.b32.cont [4/16] 0.0, 128
          %3001 = vxpose.xlu0.b32.cont [5/16] 0.0, 128
          %3002 = vxpose.xlu0.b32.cont [6/16] 0.0, 128
          %3003 = vxpose.xlu0.b32.cont [7/16] 0.0, 128
          %3004 = vxpose.xlu0.b32.cont [8/16] 0.0, 128
          %3005 = vxpose.xlu0.b32.cont [9/16] 0.0, 128
          %3006 = vxpose.xlu0.b32.cont [10/16] 0.0, 128
          %3007 = vxpose.xlu0.b32.cont [11/16] 0.0, 128
          %3008 = vxpose.xlu0.b32.cont [12/16] 0.0, 128
          %3009 = vxpose.xlu0.b32.cont [13/16] 0.0, 128
          %3010 = vxpose.xlu0.b32.cont [14/16] 0.0, 128
          %3011 = vxpose.xlu0.b32.cont [15/16] 0.0, 128
          %3012 = vxpose.xlu0.b32.end [16/16] 0.0, 128
          %v3013 = vpop.trf.xlu0
          %v3014 = vpop.trf.xlu0
          %v3015 = vpop.trf.xlu0
          %v3016 = vpop.trf.xlu0
          %v3017 = vpop.trf.xlu0
          %v3018 = vpop.trf.xlu0
          %v3019 = vpop.trf.xlu0
          %v3020 = vpop.trf.xlu0
          %v3021 = vpop.trf.xlu0
          %v3022 = vpop.trf.xlu0
          %v3023 = vpop.trf.xlu0
          %v3024 = vpop.trf.xlu0
          %v3025 = vpop.trf.xlu0
          %v3026 = vpop.trf.xlu0
          %v3027 = vpop.trf.xlu0
          %v3028 = vpop.trf.xlu0
          %3029 = vxpose.xlu0.b32.start [1/16] %v1359, 128
          %3030 = vxpose.xlu0.b32.cont [2/16] %v1362, 128
          %3031 = vxpose.xlu0.b32.cont [3/16] 0.0, 128
          %3032 = vxpose.xlu0.b32.cont [4/16] 0.0, 128
          %3033 = vxpose.xlu0.b32.cont [5/16] 0.0, 128
          %3034 = vxpose.xlu0.b32.cont [6/16] 0.0, 128
          %3035 = vxpose.xlu0.b32.cont [7/16] 0.0, 128
          %3036 = vxpose.xlu0.b32.cont [8/16] 0.0, 128
          %3037 = vxpose.xlu0.b32.cont [9/16] 0.0, 128
          %3038 = vxpose.xlu0.b32.cont [10/16] 0.0, 128
          %3039 = vxpose.xlu0.b32.cont [11/16] 0.0, 128
          %3040 = vxpose.xlu0.b32.cont [12/16] 0.0, 128
          %3041 = vxpose.xlu0.b32.cont [13/16] 0.0, 128
          %3042 = vxpose.xlu0.b32.cont [14/16] 0.0, 128
          %3043 = vxpose.xlu0.b32.cont [15/16] 0.0, 128
          %3044 = vxpose.xlu0.b32.end [16/16] 0.0, 128
          %v3045 = vpop.trf.xlu0
          %v3046 = vpop.trf.xlu0
          %v3047 = vpop.trf.xlu0
          %v3048 = vpop.trf.xlu0
          %v3049 = vpop.trf.xlu0
          %v3050 = vpop.trf.xlu0
          %v3051 = vpop.trf.xlu0
          %v3052 = vpop.trf.xlu0
          %v3053 = vpop.trf.xlu0
          %v3054 = vpop.trf.xlu0
          %v3055 = vpop.trf.xlu0
          %v3056 = vpop.trf.xlu0
          %v3057 = vpop.trf.xlu0
          %v3058 = vpop.trf.xlu0
          %v3059 = vpop.trf.xlu0
          %v3060 = vpop.trf.xlu0
          %3061 = vxpose.xlu0.b32.start [1/16] %v1367, 128
          %3062 = vxpose.xlu0.b32.cont [2/16] %v1370, 128
          %3063 = vxpose.xlu0.b32.cont [3/16] 0.0, 128
          %3064 = vxpose.xlu0.b32.cont [4/16] 0.0, 128
          %3065 = vxpose.xlu0.b32.cont [5/16] 0.0, 128
          %3066 = vxpose.xlu0.b32.cont [6/16] 0.0, 128
          %3067 = vxpose.xlu0.b32.cont [7/16] 0.0, 128
          %3068 = vxpose.xlu0.b32.cont [8/16] 0.0, 128
          %3069 = vxpose.xlu0.b32.cont [9/16] 0.0, 128
          %3070 = vxpose.xlu0.b32.cont [10/16] 0.0, 128
          %3071 = vxpose.xlu0.b32.cont [11/16] 0.0, 128
          %3072 = vxpose.xlu0.b32.cont [12/16] 0.0, 128
          %3073 = vxpose.xlu0.b32.cont [13/16] 0.0, 128
          %3074 = vxpose.xlu0.b32.cont [14/16] 0.0, 128
          %3075 = vxpose.xlu0.b32.cont [15/16] 0.0, 128
          %3076 = vxpose.xlu0.b32.end [16/16] 0.0, 128
          %v3077 = vpop.trf.xlu0
          %v3078 = vpop.trf.xlu0
          %v3079 = vpop.trf.xlu0
          %v3080 = vpop.trf.xlu0
          %v3081 = vpop.trf.xlu0
          %v3082 = vpop.trf.xlu0
          %v3083 = vpop.trf.xlu0
          %v3084 = vpop.trf.xlu0
          %v3085 = vpop.trf.xlu0
          %v3086 = vpop.trf.xlu0
          %v3087 = vpop.trf.xlu0
          %v3088 = vpop.trf.xlu0
          %v3089 = vpop.trf.xlu0
          %v3090 = vpop.trf.xlu0
          %v3091 = vpop.trf.xlu0
          %v3092 = vpop.trf.xlu0
          %3093 = vxpose.xlu0.b32.start [1/16] %v1375, 128
          %3094 = vxpose.xlu0.b32.cont [2/16] %v1378, 128
          %3095 = vxpose.xlu0.b32.cont [3/16] 0.0, 128
          %3096 = vxpose.xlu0.b32.cont [4/16] 0.0, 128
          %3097 = vxpose.xlu0.b32.cont [5/16] 0.0, 128
          %3098 = vxpose.xlu0.b32.cont [6/16] 0.0, 128
          %3099 = vxpose.xlu0.b32.cont [7/16] 0.0, 128
          %3100 = vxpose.xlu0.b32.cont [8/16] 0.0, 128
          %3101 = vxpose.xlu0.b32.cont [9/16] 0.0, 128
          %3102 = vxpose.xlu0.b32.cont [10/16] 0.0, 128
          %3103 = vxpose.xlu0.b32.cont [11/16] 0.0, 128
          %3104 = vxpose.xlu0.b32.cont [12/16] 0.0, 128
          %3105 = vxpose.xlu0.b32.cont [13/16] 0.0, 128
          %3106 = vxpose.xlu0.b32.cont [14/16] 0.0, 128
          %3107 = vxpose.xlu0.b32.cont [15/16] 0.0, 128
          %3108 = vxpose.xlu0.b32.end [16/16] 0.0, 128
          %v3109 = vpop.trf.xlu0
          %v3110 = vpop.trf.xlu0
          %v3111 = vpop.trf.xlu0
          %v3112 = vpop.trf.xlu0
          %v3113 = vpop.trf.xlu0
          %v3114 = vpop.trf.xlu0
          %v3115 = vpop.trf.xlu0
          %v3116 = vpop.trf.xlu0
          %v3117 = vpop.trf.xlu0
          %v3118 = vpop.trf.xlu0
          %v3119 = vpop.trf.xlu0
          %v3120 = vpop.trf.xlu0
          %v3121 = vpop.trf.xlu0
          %v3122 = vpop.trf.xlu0
          %v3123 = vpop.trf.xlu0
          %v3124 = vpop.trf.xlu0
          %3125 = vxpose.xlu0.b32.start [1/16] %v1383, 128
          %3126 = vxpose.xlu0.b32.cont [2/16] %v1386, 128
          %3127 = vxpose.xlu0.b32.cont [3/16] 0.0, 128
          %3128 = vxpose.xlu0.b32.cont [4/16] 0.0, 128
          %3129 = vxpose.xlu0.b32.cont [5/16] 0.0, 128
          %3130 = vxpose.xlu0.b32.cont [6/16] 0.0, 128
          %3131 = vxpose.xlu0.b32.cont [7/16] 0.0, 128
          %3132 = vxpose.xlu0.b32.cont [8/16] 0.0, 128
          %3133 = vxpose.xlu0.b32.cont [9/16] 0.0, 128
          %3134 = vxpose.xlu0.b32.cont [10/16] 0.0, 128
          %3135 = vxpose.xlu0.b32.cont [11/16] 0.0, 128
          %3136 = vxpose.xlu0.b32.cont [12/16] 0.0, 128
          %3137 = vxpose.xlu0.b32.cont [13/16] 0.0, 128
          %3138 = vxpose.xlu0.b32.cont [14/16] 0.0, 128
          %3139 = vxpose.xlu0.b32.cont [15/16] 0.0, 128
          %3140 = vxpose.xlu0.b32.end [16/16] 0.0, 128
          %v3141 = vpop.trf.xlu0
          %v3142 = vpop.trf.xlu0
          %v3143 = vpop.trf.xlu0
          %v3144 = vpop.trf.xlu0
          %v3145 = vpop.trf.xlu0
          %v3146 = vpop.trf.xlu0
          %v3147 = vpop.trf.xlu0
          %v3148 = vpop.trf.xlu0
          %v3149 = vpop.trf.xlu0
          %v3150 = vpop.trf.xlu0
          %v3151 = vpop.trf.xlu0
          %v3152 = vpop.trf.xlu0
          %v3153 = vpop.trf.xlu0
          %v3154 = vpop.trf.xlu0
          %v3155 = vpop.trf.xlu0
          %v3156 = vpop.trf.xlu0
          %3157 = vxpose.xlu0.b32.start [1/16] %v1391, 128
          %3158 = vxpose.xlu0.b32.cont [2/16] %v1394, 128
          %3159 = vxpose.xlu0.b32.cont [3/16] 0.0, 128
          %3160 = vxpose.xlu0.b32.cont [4/16] 0.0, 128
          %3161 = vxpose.xlu0.b32.cont [5/16] 0.0, 128
          %3162 = vxpose.xlu0.b32.cont [6/16] 0.0, 128
          %3163 = vxpose.xlu0.b32.cont [7/16] 0.0, 128
          %3164 = vxpose.xlu0.b32.cont [8/16] 0.0, 128
          %3165 = vxpose.xlu0.b32.cont [9/16] 0.0, 128
          %3166 = vxpose.xlu0.b32.cont [10/16] 0.0, 128
          %3167 = vxpose.xlu0.b32.cont [11/16] 0.0, 128
          %3168 = vxpose.xlu0.b32.cont [12/16] 0.0, 128
          %3169 = vxpose.xlu0.b32.cont [13/16] 0.0, 128
          %3170 = vxpose.xlu0.b32.cont [14/16] 0.0, 128
          %3171 = vxpose.xlu0.b32.cont [15/16] 0.0, 128
          %3172 = vxpose.xlu0.b32.end [16/16] 0.0, 128
          %v3173 = vpop.trf.xlu0
          %v3174 = vpop.trf.xlu0
          %v3175 = vpop.trf.xlu0
          %v3176 = vpop.trf.xlu0
          %v3177 = vpop.trf.xlu0
          %v3178 = vpop.trf.xlu0
          %v3179 = vpop.trf.xlu0
          %v3180 = vpop.trf.xlu0
          %v3181 = vpop.trf.xlu0
          %v3182 = vpop.trf.xlu0
          %v3183 = vpop.trf.xlu0
          %v3184 = vpop.trf.xlu0
          %v3185 = vpop.trf.xlu0
          %v3186 = vpop.trf.xlu0
          %v3187 = vpop.trf.xlu0
          %v3188 = vpop.trf.xlu0
          %3189 = vxpose.xlu0.b32.start [1/16] %v1399, 128
          %3190 = vxpose.xlu0.b32.cont [2/16] %v1402, 128
          %3191 = vxpose.xlu0.b32.cont [3/16] 0.0, 128
          %3192 = vxpose.xlu0.b32.cont [4/16] 0.0, 128
          %3193 = vxpose.xlu0.b32.cont [5/16] 0.0, 128
          %3194 = vxpose.xlu0.b32.cont [6/16] 0.0, 128
          %3195 = vxpose.xlu0.b32.cont [7/16] 0.0, 128
          %3196 = vxpose.xlu0.b32.cont [8/16] 0.0, 128
          %3197 = vxpose.xlu0.b32.cont [9/16] 0.0, 128
          %3198 = vxpose.xlu0.b32.cont [10/16] 0.0, 128
          %3199 = vxpose.xlu0.b32.cont [11/16] 0.0, 128
          %3200 = vxpose.xlu0.b32.cont [12/16] 0.0, 128
          %3201 = vxpose.xlu0.b32.cont [13/16] 0.0, 128
          %3202 = vxpose.xlu0.b32.cont [14/16] 0.0, 128
          %3203 = vxpose.xlu0.b32.cont [15/16] 0.0, 128
          %3204 = vxpose.xlu0.b32.end [16/16] 0.0, 128
          %v3205 = vpop.trf.xlu0
          %v3206 = vpop.trf.xlu0
          %v3207 = vpop.trf.xlu0
          %v3208 = vpop.trf.xlu0
          %v3209 = vpop.trf.xlu0
          %v3210 = vpop.trf.xlu0
          %v3211 = vpop.trf.xlu0
          %v3212 = vpop.trf.xlu0
          %v3213 = vpop.trf.xlu0
          %v3214 = vpop.trf.xlu0
          %v3215 = vpop.trf.xlu0
          %v3216 = vpop.trf.xlu0
          %v3217 = vpop.trf.xlu0
          %v3218 = vpop.trf.xlu0
          %v3219 = vpop.trf.xlu0
          %v3220 = vpop.trf.xlu0
          %3221 = vxpose.xlu0.b32.start [1/16] %v1407, 128
          %3222 = vxpose.xlu0.b32.cont [2/16] %v1410, 128
          %3223 = vxpose.xlu0.b32.cont [3/16] 0.0, 128
          %3224 = vxpose.xlu0.b32.cont [4/16] 0.0, 128
          %3225 = vxpose.xlu0.b32.cont [5/16] 0.0, 128
          %3226 = vxpose.xlu0.b32.cont [6/16] 0.0, 128
          %3227 = vxpose.xlu0.b32.cont [7/16] 0.0, 128
          %3228 = vxpose.xlu0.b32.cont [8/16] 0.0, 128
          %3229 = vxpose.xlu0.b32.cont [9/16] 0.0, 128
          %3230 = vxpose.xlu0.b32.cont [10/16] 0.0, 128
          %3231 = vxpose.xlu0.b32.cont [11/16] 0.0, 128
          %3232 = vxpose.xlu0.b32.cont [12/16] 0.0, 128
          %3233 = vxpose.xlu0.b32.cont [13/16] 0.0, 128
          %3234 = vxpose.xlu0.b32.cont [14/16] 0.0, 128
          %3235 = vxpose.xlu0.b32.cont [15/16] 0.0, 128
          %3236 = vxpose.xlu0.b32.end [16/16] 0.0, 128
          %v3237 = vpop.trf.xlu0
          %v3238 = vpop.trf.xlu0
          %v3239 = vpop.trf.xlu0
          %v3240 = vpop.trf.xlu0
          %v3241 = vpop.trf.xlu0
          %v3242 = vpop.trf.xlu0
          %v3243 = vpop.trf.xlu0
          %v3244 = vpop.trf.xlu0
          %v3245 = vpop.trf.xlu0
          %v3246 = vpop.trf.xlu0
          %v3247 = vpop.trf.xlu0
          %v3248 = vpop.trf.xlu0
          %v3249 = vpop.trf.xlu0
          %v3250 = vpop.trf.xlu0
          %v3251 = vpop.trf.xlu0
          %v3252 = vpop.trf.xlu0
          %3253 = vxpose.xlu0.b32.start [1/16] %v1415, 128
          %3254 = vxpose.xlu0.b32.cont [2/16] %v1418, 128
          %3255 = vxpose.xlu0.b32.cont [3/16] 0.0, 128
          %3256 = vxpose.xlu0.b32.cont [4/16] 0.0, 128
          %3257 = vxpose.xlu0.b32.cont [5/16] 0.0, 128
          %3258 = vxpose.xlu0.b32.cont [6/16] 0.0, 128
          %3259 = vxpose.xlu0.b32.cont [7/16] 0.0, 128
          %3260 = vxpose.xlu0.b32.cont [8/16] 0.0, 128
          %3261 = vxpose.xlu0.b32.cont [9/16] 0.0, 128
          %3262 = vxpose.xlu0.b32.cont [10/16] 0.0, 128
          %3263 = vxpose.xlu0.b32.cont [11/16] 0.0, 128
          %3264 = vxpose.xlu0.b32.cont [12/16] 0.0, 128
          %3265 = vxpose.xlu0.b32.cont [13/16] 0.0, 128
          %3266 = vxpose.xlu0.b32.cont [14/16] 0.0, 128
          %3267 = vxpose.xlu0.b32.cont [15/16] 0.0, 128
          %3268 = vxpose.xlu0.b32.end [16/16] 0.0, 128
          %v3269 = vpop.trf.xlu0
          %v3270 = vpop.trf.xlu0
          %v3271 = vpop.trf.xlu0
          %v3272 = vpop.trf.xlu0
          %v3273 = vpop.trf.xlu0
          %v3274 = vpop.trf.xlu0
          %v3275 = vpop.trf.xlu0
          %v3276 = vpop.trf.xlu0
          %v3277 = vpop.trf.xlu0
          %v3278 = vpop.trf.xlu0
          %v3279 = vpop.trf.xlu0
          %v3280 = vpop.trf.xlu0
          %v3281 = vpop.trf.xlu0
          %v3282 = vpop.trf.xlu0
          %v3283 = vpop.trf.xlu0
          %v3284 = vpop.trf.xlu0
          %3285 = vxpose.xlu0.b32.start [1/16] %v1423, 128
          %3286 = vxpose.xlu0.b32.cont [2/16] %v1426, 128
          %3287 = vxpose.xlu0.b32.cont [3/16] 0.0, 128
          %3288 = vxpose.xlu0.b32.cont [4/16] 0.0, 128
          %3289 = vxpose.xlu0.b32.cont [5/16] 0.0, 128
          %3290 = vxpose.xlu0.b32.cont [6/16] 0.0, 128
          %3291 = vxpose.xlu0.b32.cont [7/16] 0.0, 128
          %3292 = vxpose.xlu0.b32.cont [8/16] 0.0, 128
          %3293 = vxpose.xlu0.b32.cont [9/16] 0.0, 128
          %3294 = vxpose.xlu0.b32.cont [10/16] 0.0, 128
          %3295 = vxpose.xlu0.b32.cont [11/16] 0.0, 128
          %3296 = vxpose.xlu0.b32.cont [12/16] 0.0, 128
          %3297 = vxpose.xlu0.b32.cont [13/16] 0.0, 128
          %3298 = vxpose.xlu0.b32.cont [14/16] 0.0, 128
          %3299 = vxpose.xlu0.b32.cont [15/16] 0.0, 128
          %3300 = vxpose.xlu0.b32.end [16/16] 0.0, 128
          %v3301 = vpop.trf.xlu0
          %v3302 = vpop.trf.xlu0
          %v3303 = vpop.trf.xlu0
          %v3304 = vpop.trf.xlu0
          %v3305 = vpop.trf.xlu0
          %v3306 = vpop.trf.xlu0
          %v3307 = vpop.trf.xlu0
          %v3308 = vpop.trf.xlu0
          %v3309 = vpop.trf.xlu0
          %v3310 = vpop.trf.xlu0
          %v3311 = vpop.trf.xlu0
          %v3312 = vpop.trf.xlu0
          %v3313 = vpop.trf.xlu0
          %v3314 = vpop.trf.xlu0
          %v3315 = vpop.trf.xlu0
          %v3316 = vpop.trf.xlu0
          %3317 = vxpose.xlu0.b32.start [1/16] %v1431, 128
          %3318 = vxpose.xlu0.b32.cont [2/16] %v1434, 128
          %3319 = vxpose.xlu0.b32.cont [3/16] 0.0, 128
          %3320 = vxpose.xlu0.b32.cont [4/16] 0.0, 128
          %3321 = vxpose.xlu0.b32.cont [5/16] 0.0, 128
          %3322 = vxpose.xlu0.b32.cont [6/16] 0.0, 128
          %3323 = vxpose.xlu0.b32.cont [7/16] 0.0, 128
          %3324 = vxpose.xlu0.b32.cont [8/16] 0.0, 128
          %3325 = vxpose.xlu0.b32.cont [9/16] 0.0, 128
          %3326 = vxpose.xlu0.b32.cont [10/16] 0.0, 128
          %3327 = vxpose.xlu0.b32.cont [11/16] 0.0, 128
          %3328 = vxpose.xlu0.b32.cont [12/16] 0.0, 128
          %3329 = vxpose.xlu0.b32.cont [13/16] 0.0, 128
          %3330 = vxpose.xlu0.b32.cont [14/16] 0.0, 128
          %3331 = vxpose.xlu0.b32.cont [15/16] 0.0, 128
          %3332 = vxpose.xlu0.b32.end [16/16] 0.0, 128
          %v3333 = vpop.trf.xlu0
          %v3334 = vpop.trf.xlu0
          %v3335 = vpop.trf.xlu0
          %v3336 = vpop.trf.xlu0
          %v3337 = vpop.trf.xlu0
          %v3338 = vpop.trf.xlu0
          %v3339 = vpop.trf.xlu0
          %v3340 = vpop.trf.xlu0
          %v3341 = vpop.trf.xlu0
          %v3342 = vpop.trf.xlu0
          %v3343 = vpop.trf.xlu0
          %v3344 = vpop.trf.xlu0
          %v3345 = vpop.trf.xlu0
          %v3346 = vpop.trf.xlu0
          %v3347 = vpop.trf.xlu0
          %v3348 = vpop.trf.xlu0
          %3349 = vxpose.xlu0.b32.start [1/16] %v1439, 128
          %3350 = vxpose.xlu0.b32.cont [2/16] %v1442, 128
          %3351 = vxpose.xlu0.b32.cont [3/16] 0.0, 128
          %3352 = vxpose.xlu0.b32.cont [4/16] 0.0, 128
          %3353 = vxpose.xlu0.b32.cont [5/16] 0.0, 128
          %3354 = vxpose.xlu0.b32.cont [6/16] 0.0, 128
          %3355 = vxpose.xlu0.b32.cont [7/16] 0.0, 128
          %3356 = vxpose.xlu0.b32.cont [8/16] 0.0, 128
          %3357 = vxpose.xlu0.b32.cont [9/16] 0.0, 128
          %3358 = vxpose.xlu0.b32.cont [10/16] 0.0, 128
          %3359 = vxpose.xlu0.b32.cont [11/16] 0.0, 128
          %3360 = vxpose.xlu0.b32.cont [12/16] 0.0, 128
          %3361 = vxpose.xlu0.b32.cont [13/16] 0.0, 128
          %3362 = vxpose.xlu0.b32.cont [14/16] 0.0, 128
          %3363 = vxpose.xlu0.b32.cont [15/16] 0.0, 128
          %3364 = vxpose.xlu0.b32.end [16/16] 0.0, 128
          %v3365 = vpop.trf.xlu0
          %v3366 = vpop.trf.xlu0
          %v3367 = vpop.trf.xlu0
          %v3368 = vpop.trf.xlu0
          %v3369 = vpop.trf.xlu0
          %v3370 = vpop.trf.xlu0
          %v3371 = vpop.trf.xlu0
          %v3372 = vpop.trf.xlu0
          %v3373 = vpop.trf.xlu0
          %v3374 = vpop.trf.xlu0
          %v3375 = vpop.trf.xlu0
          %v3376 = vpop.trf.xlu0
          %v3377 = vpop.trf.xlu0
          %v3378 = vpop.trf.xlu0
          %v3379 = vpop.trf.xlu0
          %v3380 = vpop.trf.xlu0
          %3381 = vxpose.xlu0.b32.start [1/16] %v1447, 128
          %3382 = vxpose.xlu0.b32.cont [2/16] %v1450, 128
          %3383 = vxpose.xlu0.b32.cont [3/16] 0.0, 128
          %3384 = vxpose.xlu0.b32.cont [4/16] 0.0, 128
          %3385 = vxpose.xlu0.b32.cont [5/16] 0.0, 128
          %3386 = vxpose.xlu0.b32.cont [6/16] 0.0, 128
          %3387 = vxpose.xlu0.b32.cont [7/16] 0.0, 128
          %3388 = vxpose.xlu0.b32.cont [8/16] 0.0, 128
          %3389 = vxpose.xlu0.b32.cont [9/16] 0.0, 128
          %3390 = vxpose.xlu0.b32.cont [10/16] 0.0, 128
          %3391 = vxpose.xlu0.b32.cont [11/16] 0.0, 128
          %3392 = vxpose.xlu0.b32.cont [12/16] 0.0, 128
          %3393 = vxpose.xlu0.b32.cont [13/16] 0.0, 128
          %3394 = vxpose.xlu0.b32.cont [14/16] 0.0, 128
          %3395 = vxpose.xlu0.b32.cont [15/16] 0.0, 128
          %3396 = vxpose.xlu0.b32.end [16/16] 0.0, 128
          %v3397 = vpop.trf.xlu0
          %v3398 = vpop.trf.xlu0
          %v3399 = vpop.trf.xlu0
          %v3400 = vpop.trf.xlu0
          %v3401 = vpop.trf.xlu0
          %v3402 = vpop.trf.xlu0
          %v3403 = vpop.trf.xlu0
          %v3404 = vpop.trf.xlu0
          %v3405 = vpop.trf.xlu0
          %v3406 = vpop.trf.xlu0
          %v3407 = vpop.trf.xlu0
          %v3408 = vpop.trf.xlu0
          %v3409 = vpop.trf.xlu0
          %v3410 = vpop.trf.xlu0
          %v3411 = vpop.trf.xlu0
          %v3412 = vpop.trf.xlu0
          %3413 = vxpose.xlu0.b32.start [1/16] %v1455, 128
          %3414 = vxpose.xlu0.b32.cont [2/16] %v1458, 128
          %3415 = vxpose.xlu0.b32.cont [3/16] 0.0, 128
          %3416 = vxpose.xlu0.b32.cont [4/16] 0.0, 128
          %3417 = vxpose.xlu0.b32.cont [5/16] 0.0, 128
          %3418 = vxpose.xlu0.b32.cont [6/16] 0.0, 128
          %3419 = vxpose.xlu0.b32.cont [7/16] 0.0, 128
          %3420 = vxpose.xlu0.b32.cont [8/16] 0.0, 128
          %3421 = vxpose.xlu0.b32.cont [9/16] 0.0, 128
          %3422 = vxpose.xlu0.b32.cont [10/16] 0.0, 128
          %3423 = vxpose.xlu0.b32.cont [11/16] 0.0, 128
          %3424 = vxpose.xlu0.b32.cont [12/16] 0.0, 128
          %3425 = vxpose.xlu0.b32.cont [13/16] 0.0, 128
          %3426 = vxpose.xlu0.b32.cont [14/16] 0.0, 128
          %3427 = vxpose.xlu0.b32.cont [15/16] 0.0, 128
          %3428 = vxpose.xlu0.b32.end [16/16] 0.0, 128
          %v3429 = vpop.trf.xlu0
          %v3430 = vpop.trf.xlu0
          %v3431 = vpop.trf.xlu0
          %v3432 = vpop.trf.xlu0
          %v3433 = vpop.trf.xlu0
          %v3434 = vpop.trf.xlu0
          %v3435 = vpop.trf.xlu0
          %v3436 = vpop.trf.xlu0
          %v3437 = vpop.trf.xlu0
          %v3438 = vpop.trf.xlu0
          %v3439 = vpop.trf.xlu0
          %v3440 = vpop.trf.xlu0
          %v3441 = vpop.trf.xlu0
          %v3442 = vpop.trf.xlu0
          %v3443 = vpop.trf.xlu0
          %v3444 = vpop.trf.xlu0
          %3445 = vxpose.xlu0.b32.start [1/16] %v1463, 128
          %3446 = vxpose.xlu0.b32.cont [2/16] %v1466, 128
          %3447 = vxpose.xlu0.b32.cont [3/16] 0.0, 128
          %3448 = vxpose.xlu0.b32.cont [4/16] 0.0, 128
          %3449 = vxpose.xlu0.b32.cont [5/16] 0.0, 128
          %3450 = vxpose.xlu0.b32.cont [6/16] 0.0, 128
          %3451 = vxpose.xlu0.b32.cont [7/16] 0.0, 128
          %3452 = vxpose.xlu0.b32.cont [8/16] 0.0, 128
          %3453 = vxpose.xlu0.b32.cont [9/16] 0.0, 128
          %3454 = vxpose.xlu0.b32.cont [10/16] 0.0, 128
          %3455 = vxpose.xlu0.b32.cont [11/16] 0.0, 128
          %3456 = vxpose.xlu0.b32.cont [12/16] 0.0, 128
          %3457 = vxpose.xlu0.b32.cont [13/16] 0.0, 128
          %3458 = vxpose.xlu0.b32.cont [14/16] 0.0, 128
          %3459 = vxpose.xlu0.b32.cont [15/16] 0.0, 128
          %3460 = vxpose.xlu0.b32.end [16/16] 0.0, 128
          %v3461 = vpop.trf.xlu0
          %v3462 = vpop.trf.xlu0
          %v3463 = vpop.trf.xlu0
          %v3464 = vpop.trf.xlu0
          %v3465 = vpop.trf.xlu0
          %v3466 = vpop.trf.xlu0
          %v3467 = vpop.trf.xlu0
          %v3468 = vpop.trf.xlu0
          %v3469 = vpop.trf.xlu0
          %v3470 = vpop.trf.xlu0
          %v3471 = vpop.trf.xlu0
          %v3472 = vpop.trf.xlu0
          %v3473 = vpop.trf.xlu0
          %v3474 = vpop.trf.xlu0
          %v3475 = vpop.trf.xlu0
          %v3476 = vpop.trf.xlu0
          %3477 = vxpose.xlu0.b32.start [1/16] %v1471, 128
          %3478 = vxpose.xlu0.b32.cont [2/16] %v1474, 128
          %3479 = vxpose.xlu0.b32.cont [3/16] 0.0, 128
          %3480 = vxpose.xlu0.b32.cont [4/16] 0.0, 128
          %3481 = vxpose.xlu0.b32.cont [5/16] 0.0, 128
          %3482 = vxpose.xlu0.b32.cont [6/16] 0.0, 128
          %3483 = vxpose.xlu0.b32.cont [7/16] 0.0, 128
          %3484 = vxpose.xlu0.b32.cont [8/16] 0.0, 128
          %3485 = vxpose.xlu0.b32.cont [9/16] 0.0, 128
          %3486 = vxpose.xlu0.b32.cont [10/16] 0.0, 128
          %3487 = vxpose.xlu0.b32.cont [11/16] 0.0, 128
          %3488 = vxpose.xlu0.b32.cont [12/16] 0.0, 128
          %3489 = vxpose.xlu0.b32.cont [13/16] 0.0, 128
          %3490 = vxpose.xlu0.b32.cont [14/16] 0.0, 128
          %3491 = vxpose.xlu0.b32.cont [15/16] 0.0, 128
          %3492 = vxpose.xlu0.b32.end [16/16] 0.0, 128
          %v3493 = vpop.trf.xlu0
          %v3494 = vpop.trf.xlu0
          %v3495 = vpop.trf.xlu0
          %v3496 = vpop.trf.xlu0
          %v3497 = vpop.trf.xlu0
          %v3498 = vpop.trf.xlu0
          %v3499 = vpop.trf.xlu0
          %v3500 = vpop.trf.xlu0
          %v3501 = vpop.trf.xlu0
          %v3502 = vpop.trf.xlu0
          %v3503 = vpop.trf.xlu0
          %v3504 = vpop.trf.xlu0
          %v3505 = vpop.trf.xlu0
          %v3506 = vpop.trf.xlu0
          %v3507 = vpop.trf.xlu0
          %v3508 = vpop.trf.xlu0
          %3509 = vxpose.xlu0.b32.start [1/16] %v1479, 128
          %3510 = vxpose.xlu0.b32.cont [2/16] %v1482, 128
          %3511 = vxpose.xlu0.b32.cont [3/16] 0.0, 128
          %3512 = vxpose.xlu0.b32.cont [4/16] 0.0, 128
          %3513 = vxpose.xlu0.b32.cont [5/16] 0.0, 128
          %3514 = vxpose.xlu0.b32.cont [6/16] 0.0, 128
          %3515 = vxpose.xlu0.b32.cont [7/16] 0.0, 128
          %3516 = vxpose.xlu0.b32.cont [8/16] 0.0, 128
          %3517 = vxpose.xlu0.b32.cont [9/16] 0.0, 128
          %3518 = vxpose.xlu0.b32.cont [10/16] 0.0, 128
          %3519 = vxpose.xlu0.b32.cont [11/16] 0.0, 128
          %3520 = vxpose.xlu0.b32.cont [12/16] 0.0, 128
          %3521 = vxpose.xlu0.b32.cont [13/16] 0.0, 128
          %3522 = vxpose.xlu0.b32.cont [14/16] 0.0, 128
          %3523 = vxpose.xlu0.b32.cont [15/16] 0.0, 128
          %3524 = vxpose.xlu0.b32.end [16/16] 0.0, 128
          %v3525 = vpop.trf.xlu0
          %v3526 = vpop.trf.xlu0
          %v3527 = vpop.trf.xlu0
          %v3528 = vpop.trf.xlu0
          %v3529 = vpop.trf.xlu0
          %v3530 = vpop.trf.xlu0
          %v3531 = vpop.trf.xlu0
          %v3532 = vpop.trf.xlu0
          %v3533 = vpop.trf.xlu0
          %v3534 = vpop.trf.xlu0
          %v3535 = vpop.trf.xlu0
          %v3536 = vpop.trf.xlu0
          %v3537 = vpop.trf.xlu0
          %v3538 = vpop.trf.xlu0
          %v3539 = vpop.trf.xlu0
          %v3540 = vpop.trf.xlu0
          %3541 = vxpose.xlu0.b32.start [1/16] %v1487, 128
          %3542 = vxpose.xlu0.b32.cont [2/16] %v1490, 128
          %3543 = vxpose.xlu0.b32.cont [3/16] 0.0, 128
          %3544 = vxpose.xlu0.b32.cont [4/16] 0.0, 128
          %3545 = vxpose.xlu0.b32.cont [5/16] 0.0, 128
          %3546 = vxpose.xlu0.b32.cont [6/16] 0.0, 128
          %3547 = vxpose.xlu0.b32.cont [7/16] 0.0, 128
          %3548 = vxpose.xlu0.b32.cont [8/16] 0.0, 128
          %3549 = vxpose.xlu0.b32.cont [9/16] 0.0, 128
          %3550 = vxpose.xlu0.b32.cont [10/16] 0.0, 128
          %3551 = vxpose.xlu0.b32.cont [11/16] 0.0, 128
          %3552 = vxpose.xlu0.b32.cont [12/16] 0.0, 128
          %3553 = vxpose.xlu0.b32.cont [13/16] 0.0, 128
          %3554 = vxpose.xlu0.b32.cont [14/16] 0.0, 128
          %3555 = vxpose.xlu0.b32.cont [15/16] 0.0, 128
          %3556 = vxpose.xlu0.b32.end [16/16] 0.0, 128
          %v3557 = vpop.trf.xlu0
          %v3558 = vpop.trf.xlu0
          %v3559 = vpop.trf.xlu0
          %v3560 = vpop.trf.xlu0
          %v3561 = vpop.trf.xlu0
          %v3562 = vpop.trf.xlu0
          %v3563 = vpop.trf.xlu0
          %v3564 = vpop.trf.xlu0
          %v3565 = vpop.trf.xlu0
          %v3566 = vpop.trf.xlu0
          %v3567 = vpop.trf.xlu0
          %v3568 = vpop.trf.xlu0
          %v3569 = vpop.trf.xlu0
          %v3570 = vpop.trf.xlu0
          %v3571 = vpop.trf.xlu0
          %v3572 = vpop.trf.xlu0
          %3573 = vxpose.xlu0.b32.start [1/16] %v1495, 128
          %3574 = vxpose.xlu0.b32.cont [2/16] %v1498, 128
          %3575 = vxpose.xlu0.b32.cont [3/16] 0.0, 128
          %3576 = vxpose.xlu0.b32.cont [4/16] 0.0, 128
          %3577 = vxpose.xlu0.b32.cont [5/16] 0.0, 128
          %3578 = vxpose.xlu0.b32.cont [6/16] 0.0, 128
          %3579 = vxpose.xlu0.b32.cont [7/16] 0.0, 128
          %3580 = vxpose.xlu0.b32.cont [8/16] 0.0, 128
          %3581 = vxpose.xlu0.b32.cont [9/16] 0.0, 128
          %3582 = vxpose.xlu0.b32.cont [10/16] 0.0, 128
          %3583 = vxpose.xlu0.b32.cont [11/16] 0.0, 128
          %3584 = vxpose.xlu0.b32.cont [12/16] 0.0, 128
          %3585 = vxpose.xlu0.b32.cont [13/16] 0.0, 128
          %3586 = vxpose.xlu0.b32.cont [14/16] 0.0, 128
          %3587 = vxpose.xlu0.b32.cont [15/16] 0.0, 128
          %3588 = vxpose.xlu0.b32.end [16/16] 0.0, 128
          %v3589 = vpop.trf.xlu0
          %v3590 = vpop.trf.xlu0
          %v3591 = vpop.trf.xlu0
          %v3592 = vpop.trf.xlu0
          %v3593 = vpop.trf.xlu0
          %v3594 = vpop.trf.xlu0
          %v3595 = vpop.trf.xlu0
          %v3596 = vpop.trf.xlu0
          %v3597 = vpop.trf.xlu0
          %v3598 = vpop.trf.xlu0
          %v3599 = vpop.trf.xlu0
          %v3600 = vpop.trf.xlu0
          %v3601 = vpop.trf.xlu0
          %v3602 = vpop.trf.xlu0
          %v3603 = vpop.trf.xlu0
          %v3604 = vpop.trf.xlu0
          %3605 = vxpose.xlu0.b32.start [1/16] %v1503, 128
          %3606 = vxpose.xlu0.b32.cont [2/16] %v1506, 128
          %3607 = vxpose.xlu0.b32.cont [3/16] 0.0, 128
          %3608 = vxpose.xlu0.b32.cont [4/16] 0.0, 128
          %3609 = vxpose.xlu0.b32.cont [5/16] 0.0, 128
          %3610 = vxpose.xlu0.b32.cont [6/16] 0.0, 128
          %3611 = vxpose.xlu0.b32.cont [7/16] 0.0, 128
          %3612 = vxpose.xlu0.b32.cont [8/16] 0.0, 128
          %3613 = vxpose.xlu0.b32.cont [9/16] 0.0, 128
          %3614 = vxpose.xlu0.b32.cont [10/16] 0.0, 128
          %3615 = vxpose.xlu0.b32.cont [11/16] 0.0, 128
          %3616 = vxpose.xlu0.b32.cont [12/16] 0.0, 128
          %3617 = vxpose.xlu0.b32.cont [13/16] 0.0, 128
          %3618 = vxpose.xlu0.b32.cont [14/16] 0.0, 128
          %3619 = vxpose.xlu0.b32.cont [15/16] 0.0, 128
          %3620 = vxpose.xlu0.b32.end [16/16] 0.0, 128
          %v3621 = vpop.trf.xlu0
          %v3622 = vpop.trf.xlu0
          %v3623 = vpop.trf.xlu0
          %v3624 = vpop.trf.xlu0
          %v3625 = vpop.trf.xlu0
          %v3626 = vpop.trf.xlu0
          %v3627 = vpop.trf.xlu0
          %v3628 = vpop.trf.xlu0
          %v3629 = vpop.trf.xlu0
          %v3630 = vpop.trf.xlu0
          %v3631 = vpop.trf.xlu0
          %v3632 = vpop.trf.xlu0
          %v3633 = vpop.trf.xlu0
          %v3634 = vpop.trf.xlu0
          %v3635 = vpop.trf.xlu0
          %v3636 = vpop.trf.xlu0
          %3637 = vxpose.xlu0.b32.start [1/16] %v1511, 128
          %3638 = vxpose.xlu0.b32.cont [2/16] %v1514, 128
          %3639 = vxpose.xlu0.b32.cont [3/16] 0.0, 128
          %3640 = vxpose.xlu0.b32.cont [4/16] 0.0, 128
          %3641 = vxpose.xlu0.b32.cont [5/16] 0.0, 128
          %3642 = vxpose.xlu0.b32.cont [6/16] 0.0, 128
          %3643 = vxpose.xlu0.b32.cont [7/16] 0.0, 128
          %3644 = vxpose.xlu0.b32.cont [8/16] 0.0, 128
          %3645 = vxpose.xlu0.b32.cont [9/16] 0.0, 128
          %3646 = vxpose.xlu0.b32.cont [10/16] 0.0, 128
          %3647 = vxpose.xlu0.b32.cont [11/16] 0.0, 128
          %3648 = vxpose.xlu0.b32.cont [12/16] 0.0, 128
          %3649 = vxpose.xlu0.b32.cont [13/16] 0.0, 128
          %3650 = vxpose.xlu0.b32.cont [14/16] 0.0, 128
          %3651 = vxpose.xlu0.b32.cont [15/16] 0.0, 128
          %3652 = vxpose.xlu0.b32.end [16/16] 0.0, 128
          %v3653 = vpop.trf.xlu0
          %v3654 = vpop.trf.xlu0
          %v3655 = vpop.trf.xlu0
          %v3656 = vpop.trf.xlu0
          %v3657 = vpop.trf.xlu0
          %v3658 = vpop.trf.xlu0
          %v3659 = vpop.trf.xlu0
          %v3660 = vpop.trf.xlu0
          %v3661 = vpop.trf.xlu0
          %v3662 = vpop.trf.xlu0
          %v3663 = vpop.trf.xlu0
          %v3664 = vpop.trf.xlu0
          %v3665 = vpop.trf.xlu0
          %v3666 = vpop.trf.xlu0
          %v3667 = vpop.trf.xlu0
          %v3668 = vpop.trf.xlu0
          %3669 = vxpose.xlu0.b32.start [1/16] %v1519, 128
          %3670 = vxpose.xlu0.b32.cont [2/16] %v1522, 128
          %3671 = vxpose.xlu0.b32.cont [3/16] 0.0, 128
          %3672 = vxpose.xlu0.b32.cont [4/16] 0.0, 128
          %3673 = vxpose.xlu0.b32.cont [5/16] 0.0, 128
          %3674 = vxpose.xlu0.b32.cont [6/16] 0.0, 128
          %3675 = vxpose.xlu0.b32.cont [7/16] 0.0, 128
          %3676 = vxpose.xlu0.b32.cont [8/16] 0.0, 128
          %3677 = vxpose.xlu0.b32.cont [9/16] 0.0, 128
          %3678 = vxpose.xlu0.b32.cont [10/16] 0.0, 128
          %3679 = vxpose.xlu0.b32.cont [11/16] 0.0, 128
          %3680 = vxpose.xlu0.b32.cont [12/16] 0.0, 128
          %3681 = vxpose.xlu0.b32.cont [13/16] 0.0, 128
          %3682 = vxpose.xlu0.b32.cont [14/16] 0.0, 128
          %3683 = vxpose.xlu0.b32.cont [15/16] 0.0, 128
          %3684 = vxpose.xlu0.b32.end [16/16] 0.0, 128
          %v3685 = vpop.trf.xlu0
          %v3686 = vpop.trf.xlu0
          %v3687 = vpop.trf.xlu0
          %v3688 = vpop.trf.xlu0
          %v3689 = vpop.trf.xlu0
          %v3690 = vpop.trf.xlu0
          %v3691 = vpop.trf.xlu0
          %v3692 = vpop.trf.xlu0
          %v3693 = vpop.trf.xlu0
          %v3694 = vpop.trf.xlu0
          %v3695 = vpop.trf.xlu0
          %v3696 = vpop.trf.xlu0
          %v3697 = vpop.trf.xlu0
          %v3698 = vpop.trf.xlu0
          %v3699 = vpop.trf.xlu0
          %v3700 = vpop.trf.xlu0
          %3701 = vxpose.xlu0.b32.start [1/16] %v1527, 128
          %3702 = vxpose.xlu0.b32.cont [2/16] %v1530, 128
          %3703 = vxpose.xlu0.b32.cont [3/16] 0.0, 128
          %3704 = vxpose.xlu0.b32.cont [4/16] 0.0, 128
          %3705 = vxpose.xlu0.b32.cont [5/16] 0.0, 128
          %3706 = vxpose.xlu0.b32.cont [6/16] 0.0, 128
          %3707 = vxpose.xlu0.b32.cont [7/16] 0.0, 128
          %3708 = vxpose.xlu0.b32.cont [8/16] 0.0, 128
          %3709 = vxpose.xlu0.b32.cont [9/16] 0.0, 128
          %3710 = vxpose.xlu0.b32.cont [10/16] 0.0, 128
          %3711 = vxpose.xlu0.b32.cont [11/16] 0.0, 128
          %3712 = vxpose.xlu0.b32.cont [12/16] 0.0, 128
          %3713 = vxpose.xlu0.b32.cont [13/16] 0.0, 128
          %3714 = vxpose.xlu0.b32.cont [14/16] 0.0, 128
          %3715 = vxpose.xlu0.b32.cont [15/16] 0.0, 128
          %3716 = vxpose.xlu0.b32.end [16/16] 0.0, 128
          %v3717 = vpop.trf.xlu0
          %v3718 = vpop.trf.xlu0
          %v3719 = vpop.trf.xlu0
          %v3720 = vpop.trf.xlu0
          %v3721 = vpop.trf.xlu0
          %v3722 = vpop.trf.xlu0
          %v3723 = vpop.trf.xlu0
          %v3724 = vpop.trf.xlu0
          %v3725 = vpop.trf.xlu0
          %v3726 = vpop.trf.xlu0
          %v3727 = vpop.trf.xlu0
          %v3728 = vpop.trf.xlu0
          %v3729 = vpop.trf.xlu0
          %v3730 = vpop.trf.xlu0
          %v3731 = vpop.trf.xlu0
          %v3732 = vpop.trf.xlu0
          %3733 = vxpose.xlu0.b32.start [1/16] %v1535, 128
          %3734 = vxpose.xlu0.b32.cont [2/16] %v1538, 128
          %3735 = vxpose.xlu0.b32.cont [3/16] 0.0, 128
          %3736 = vxpose.xlu0.b32.cont [4/16] 0.0, 128
          %3737 = vxpose.xlu0.b32.cont [5/16] 0.0, 128
          %3738 = vxpose.xlu0.b32.cont [6/16] 0.0, 128
          %3739 = vxpose.xlu0.b32.cont [7/16] 0.0, 128
          %3740 = vxpose.xlu0.b32.cont [8/16] 0.0, 128
          %3741 = vxpose.xlu0.b32.cont [9/16] 0.0, 128
          %3742 = vxpose.xlu0.b32.cont [10/16] 0.0, 128
          %3743 = vxpose.xlu0.b32.cont [11/16] 0.0, 128
          %3744 = vxpose.xlu0.b32.cont [12/16] 0.0, 128
          %3745 = vxpose.xlu0.b32.cont [13/16] 0.0, 128
          %3746 = vxpose.xlu0.b32.cont [14/16] 0.0, 128
          %3747 = vxpose.xlu0.b32.cont [15/16] 0.0, 128
          %3748 = vxpose.xlu0.b32.end [16/16] 0.0, 128
          %v3749 = vpop.trf.xlu0
          %v3750 = vpop.trf.xlu0
          %v3751 = vpop.trf.xlu0
          %v3752 = vpop.trf.xlu0
          %v3753 = vpop.trf.xlu0
          %v3754 = vpop.trf.xlu0
          %v3755 = vpop.trf.xlu0
          %v3756 = vpop.trf.xlu0
          %v3757 = vpop.trf.xlu0
          %v3758 = vpop.trf.xlu0
          %v3759 = vpop.trf.xlu0
          %v3760 = vpop.trf.xlu0
          %v3761 = vpop.trf.xlu0
          %v3762 = vpop.trf.xlu0
          %v3763 = vpop.trf.xlu0
          %v3764 = vpop.trf.xlu0
          %3765 = vxpose.xlu0.b32.start [1/16] %v1543, 128
          %3766 = vxpose.xlu0.b32.cont [2/16] %v1546, 128
          %3767 = vxpose.xlu0.b32.cont [3/16] 0.0, 128
          %3768 = vxpose.xlu0.b32.cont [4/16] 0.0, 128
          %3769 = vxpose.xlu0.b32.cont [5/16] 0.0, 128
          %3770 = vxpose.xlu0.b32.cont [6/16] 0.0, 128
          %3771 = vxpose.xlu0.b32.cont [7/16] 0.0, 128
          %3772 = vxpose.xlu0.b32.cont [8/16] 0.0, 128
          %3773 = vxpose.xlu0.b32.cont [9/16] 0.0, 128
          %3774 = vxpose.xlu0.b32.cont [10/16] 0.0, 128
          %3775 = vxpose.xlu0.b32.cont [11/16] 0.0, 128
          %3776 = vxpose.xlu0.b32.cont [12/16] 0.0, 128
          %3777 = vxpose.xlu0.b32.cont [13/16] 0.0, 128
          %3778 = vxpose.xlu0.b32.cont [14/16] 0.0, 128
          %3779 = vxpose.xlu0.b32.cont [15/16] 0.0, 128
          %3780 = vxpose.xlu0.b32.end [16/16] 0.0, 128
          %v3781 = vpop.trf.xlu0
          %v3782 = vpop.trf.xlu0
          %v3783 = vpop.trf.xlu0
          %v3784 = vpop.trf.xlu0
          %v3785 = vpop.trf.xlu0
          %v3786 = vpop.trf.xlu0
          %v3787 = vpop.trf.xlu0
          %v3788 = vpop.trf.xlu0
          %v3789 = vpop.trf.xlu0
          %v3790 = vpop.trf.xlu0
          %v3791 = vpop.trf.xlu0
          %v3792 = vpop.trf.xlu0
          %v3793 = vpop.trf.xlu0
          %v3794 = vpop.trf.xlu0
          %v3795 = vpop.trf.xlu0
          %v3796 = vpop.trf.xlu0
          %3797 = vxpose.xlu0.b32.start [1/16] %v1551, 128
          %3798 = vxpose.xlu0.b32.cont [2/16] %v1554, 128
          %3799 = vxpose.xlu0.b32.cont [3/16] 0.0, 128
          %3800 = vxpose.xlu0.b32.cont [4/16] 0.0, 128
          %3801 = vxpose.xlu0.b32.cont [5/16] 0.0, 128
          %3802 = vxpose.xlu0.b32.cont [6/16] 0.0, 128
          %3803 = vxpose.xlu0.b32.cont [7/16] 0.0, 128
          %3804 = vxpose.xlu0.b32.cont [8/16] 0.0, 128
          %3805 = vxpose.xlu0.b32.cont [9/16] 0.0, 128
          %3806 = vxpose.xlu0.b32.cont [10/16] 0.0, 128
          %3807 = vxpose.xlu0.b32.cont [11/16] 0.0, 128
          %3808 = vxpose.xlu0.b32.cont [12/16] 0.0, 128
          %3809 = vxpose.xlu0.b32.cont [13/16] 0.0, 128
          %3810 = vxpose.xlu0.b32.cont [14/16] 0.0, 128
          %3811 = vxpose.xlu0.b32.cont [15/16] 0.0, 128
          %3812 = vxpose.xlu0.b32.end [16/16] 0.0, 128
          %v3813 = vpop.trf.xlu0
          %v3814 = vpop.trf.xlu0
          %v3815 = vpop.trf.xlu0
          %v3816 = vpop.trf.xlu0
          %v3817 = vpop.trf.xlu0
          %v3818 = vpop.trf.xlu0
          %v3819 = vpop.trf.xlu0
          %v3820 = vpop.trf.xlu0
          %v3821 = vpop.trf.xlu0
          %v3822 = vpop.trf.xlu0
          %v3823 = vpop.trf.xlu0
          %v3824 = vpop.trf.xlu0
          %v3825 = vpop.trf.xlu0
          %v3826 = vpop.trf.xlu0
          %v3827 = vpop.trf.xlu0
          %v3828 = vpop.trf.xlu0
          %3829 = vxpose.xlu0.b32.start [1/16] %v1559, 128
          %3830 = vxpose.xlu0.b32.cont [2/16] %v1562, 128
          %3831 = vxpose.xlu0.b32.cont [3/16] 0.0, 128
          %3832 = vxpose.xlu0.b32.cont [4/16] 0.0, 128
          %3833 = vxpose.xlu0.b32.cont [5/16] 0.0, 128
          %3834 = vxpose.xlu0.b32.cont [6/16] 0.0, 128
          %3835 = vxpose.xlu0.b32.cont [7/16] 0.0, 128
          %3836 = vxpose.xlu0.b32.cont [8/16] 0.0, 128
          %3837 = vxpose.xlu0.b32.cont [9/16] 0.0, 128
          %3838 = vxpose.xlu0.b32.cont [10/16] 0.0, 128
          %3839 = vxpose.xlu0.b32.cont [11/16] 0.0, 128
          %3840 = vxpose.xlu0.b32.cont [12/16] 0.0, 128
          %3841 = vxpose.xlu0.b32.cont [13/16] 0.0, 128
          %3842 = vxpose.xlu0.b32.cont [14/16] 0.0, 128
          %3843 = vxpose.xlu0.b32.cont [15/16] 0.0, 128
          %3844 = vxpose.xlu0.b32.end [16/16] 0.0, 128
          %v3845 = vpop.trf.xlu0
          %v3846 = vpop.trf.xlu0
          %v3847 = vpop.trf.xlu0
          %v3848 = vpop.trf.xlu0
          %v3849 = vpop.trf.xlu0
          %v3850 = vpop.trf.xlu0
          %v3851 = vpop.trf.xlu0
          %v3852 = vpop.trf.xlu0
          %v3853 = vpop.trf.xlu0
          %v3854 = vpop.trf.xlu0
          %v3855 = vpop.trf.xlu0
          %v3856 = vpop.trf.xlu0
          %v3857 = vpop.trf.xlu0
          %v3858 = vpop.trf.xlu0
          %v3859 = vpop.trf.xlu0
          %v3860 = vpop.trf.xlu0
          %3861 = vxpose.xlu0.b32.start [1/16] %v1567, 128
          %3862 = vxpose.xlu0.b32.cont [2/16] %v1570, 128
          %3863 = vxpose.xlu0.b32.cont [3/16] 0.0, 128
          %3864 = vxpose.xlu0.b32.cont [4/16] 0.0, 128
          %3865 = vxpose.xlu0.b32.cont [5/16] 0.0, 128
          %3866 = vxpose.xlu0.b32.cont [6/16] 0.0, 128
          %3867 = vxpose.xlu0.b32.cont [7/16] 0.0, 128
          %3868 = vxpose.xlu0.b32.cont [8/16] 0.0, 128
          %3869 = vxpose.xlu0.b32.cont [9/16] 0.0, 128
          %3870 = vxpose.xlu0.b32.cont [10/16] 0.0, 128
          %3871 = vxpose.xlu0.b32.cont [11/16] 0.0, 128
          %3872 = vxpose.xlu0.b32.cont [12/16] 0.0, 128
          %3873 = vxpose.xlu0.b32.cont [13/16] 0.0, 128
          %3874 = vxpose.xlu0.b32.cont [14/16] 0.0, 128
          %3875 = vxpose.xlu0.b32.cont [15/16] 0.0, 128
          %3876 = vxpose.xlu0.b32.end [16/16] 0.0, 128
          %v3877 = vpop.trf.xlu0
          %v3878 = vpop.trf.xlu0
          %v3879 = vpop.trf.xlu0
          %v3880 = vpop.trf.xlu0
          %v3881 = vpop.trf.xlu0
          %v3882 = vpop.trf.xlu0
          %v3883 = vpop.trf.xlu0
          %v3884 = vpop.trf.xlu0
          %v3885 = vpop.trf.xlu0
          %v3886 = vpop.trf.xlu0
          %v3887 = vpop.trf.xlu0
          %v3888 = vpop.trf.xlu0
          %v3889 = vpop.trf.xlu0
          %v3890 = vpop.trf.xlu0
          %v3891 = vpop.trf.xlu0
          %v3892 = vpop.trf.xlu0
          %3893 = vxpose.xlu0.b32.start [1/16] %v1575, 128
          %3894 = vxpose.xlu0.b32.cont [2/16] %v1578, 128
          %3895 = vxpose.xlu0.b32.cont [3/16] 0.0, 128
          %3896 = vxpose.xlu0.b32.cont [4/16] 0.0, 128
          %3897 = vxpose.xlu0.b32.cont [5/16] 0.0, 128
          %3898 = vxpose.xlu0.b32.cont [6/16] 0.0, 128
          %3899 = vxpose.xlu0.b32.cont [7/16] 0.0, 128
          %3900 = vxpose.xlu0.b32.cont [8/16] 0.0, 128
          %3901 = vxpose.xlu0.b32.cont [9/16] 0.0, 128
          %3902 = vxpose.xlu0.b32.cont [10/16] 0.0, 128
          %3903 = vxpose.xlu0.b32.cont [11/16] 0.0, 128
          %3904 = vxpose.xlu0.b32.cont [12/16] 0.0, 128
          %3905 = vxpose.xlu0.b32.cont [13/16] 0.0, 128
          %3906 = vxpose.xlu0.b32.cont [14/16] 0.0, 128
          %3907 = vxpose.xlu0.b32.cont [15/16] 0.0, 128
          %3908 = vxpose.xlu0.b32.end [16/16] 0.0, 128
          %v3909 = vpop.trf.xlu0
          %v3910 = vpop.trf.xlu0
          %v3911 = vpop.trf.xlu0
          %v3912 = vpop.trf.xlu0
          %v3913 = vpop.trf.xlu0
          %v3914 = vpop.trf.xlu0
          %v3915 = vpop.trf.xlu0
          %v3916 = vpop.trf.xlu0
          %v3917 = vpop.trf.xlu0
          %v3918 = vpop.trf.xlu0
          %v3919 = vpop.trf.xlu0
          %v3920 = vpop.trf.xlu0
          %v3921 = vpop.trf.xlu0
          %v3922 = vpop.trf.xlu0
          %v3923 = vpop.trf.xlu0
          %v3924 = vpop.trf.xlu0
          %3925 = vxpose.xlu0.b32.start [1/16] %v1583, 128
          %3926 = vxpose.xlu0.b32.cont [2/16] %v1586, 128
          %3927 = vxpose.xlu0.b32.cont [3/16] 0.0, 128
          %3928 = vxpose.xlu0.b32.cont [4/16] 0.0, 128
          %3929 = vxpose.xlu0.b32.cont [5/16] 0.0, 128
          %3930 = vxpose.xlu0.b32.cont [6/16] 0.0, 128
          %3931 = vxpose.xlu0.b32.cont [7/16] 0.0, 128
          %3932 = vxpose.xlu0.b32.cont [8/16] 0.0, 128
          %3933 = vxpose.xlu0.b32.cont [9/16] 0.0, 128
          %3934 = vxpose.xlu0.b32.cont [10/16] 0.0, 128
          %3935 = vxpose.xlu0.b32.cont [11/16] 0.0, 128
          %3936 = vxpose.xlu0.b32.cont [12/16] 0.0, 128
          %3937 = vxpose.xlu0.b32.cont [13/16] 0.0, 128
          %3938 = vxpose.xlu0.b32.cont [14/16] 0.0, 128
          %3939 = vxpose.xlu0.b32.cont [15/16] 0.0, 128
          %3940 = vxpose.xlu0.b32.end [16/16] 0.0, 128
          %v3941 = vpop.trf.xlu0
          %v3942 = vpop.trf.xlu0
          %v3943 = vpop.trf.xlu0
          %v3944 = vpop.trf.xlu0
          %v3945 = vpop.trf.xlu0
          %v3946 = vpop.trf.xlu0
          %v3947 = vpop.trf.xlu0
          %v3948 = vpop.trf.xlu0
          %v3949 = vpop.trf.xlu0
          %v3950 = vpop.trf.xlu0
          %v3951 = vpop.trf.xlu0
          %v3952 = vpop.trf.xlu0
          %v3953 = vpop.trf.xlu0
          %v3954 = vpop.trf.xlu0
          %v3955 = vpop.trf.xlu0
          %v3956 = vpop.trf.xlu0
          %3957 = vxpose.xlu0.b32.start [1/16] %v1591, 128
          %3958 = vxpose.xlu0.b32.cont [2/16] %v1594, 128
          %3959 = vxpose.xlu0.b32.cont [3/16] 0.0, 128
          %3960 = vxpose.xlu0.b32.cont [4/16] 0.0, 128
          %3961 = vxpose.xlu0.b32.cont [5/16] 0.0, 128
          %3962 = vxpose.xlu0.b32.cont [6/16] 0.0, 128
          %3963 = vxpose.xlu0.b32.cont [7/16] 0.0, 128
          %3964 = vxpose.xlu0.b32.cont [8/16] 0.0, 128
          %3965 = vxpose.xlu0.b32.cont [9/16] 0.0, 128
          %3966 = vxpose.xlu0.b32.cont [10/16] 0.0, 128
          %3967 = vxpose.xlu0.b32.cont [11/16] 0.0, 128
          %3968 = vxpose.xlu0.b32.cont [12/16] 0.0, 128
          %3969 = vxpose.xlu0.b32.cont [13/16] 0.0, 128
          %3970 = vxpose.xlu0.b32.cont [14/16] 0.0, 128
          %3971 = vxpose.xlu0.b32.cont [15/16] 0.0, 128
          %3972 = vxpose.xlu0.b32.end [16/16] 0.0, 128
          %v3973 = vpop.trf.xlu0
          %v3974 = vpop.trf.xlu0
          %v3975 = vpop.trf.xlu0
          %v3976 = vpop.trf.xlu0
          %v3977 = vpop.trf.xlu0
          %v3978 = vpop.trf.xlu0
          %v3979 = vpop.trf.xlu0
          %v3980 = vpop.trf.xlu0
          %v3981 = vpop.trf.xlu0
          %v3982 = vpop.trf.xlu0
          %v3983 = vpop.trf.xlu0
          %v3984 = vpop.trf.xlu0
          %v3985 = vpop.trf.xlu0
          %v3986 = vpop.trf.xlu0
          %v3987 = vpop.trf.xlu0
          %v3988 = vpop.trf.xlu0
          %3989 = vxpose.xlu0.b32.start [1/16] %v1599, 128
          %3990 = vxpose.xlu0.b32.cont [2/16] %v1602, 128
          %3991 = vxpose.xlu0.b32.cont [3/16] 0.0, 128
          %3992 = vxpose.xlu0.b32.cont [4/16] 0.0, 128
          %3993 = vxpose.xlu0.b32.cont [5/16] 0.0, 128
          %3994 = vxpose.xlu0.b32.cont [6/16] 0.0, 128
          %3995 = vxpose.xlu0.b32.cont [7/16] 0.0, 128
          %3996 = vxpose.xlu0.b32.cont [8/16] 0.0, 128
          %3997 = vxpose.xlu0.b32.cont [9/16] 0.0, 128
          %3998 = vxpose.xlu0.b32.cont [10/16] 0.0, 128
          %3999 = vxpose.xlu0.b32.cont [11/16] 0.0, 128
          %4000 = vxpose.xlu0.b32.cont [12/16] 0.0, 128
          %4001 = vxpose.xlu0.b32.cont [13/16] 0.0, 128
          %4002 = vxpose.xlu0.b32.cont [14/16] 0.0, 128
          %4003 = vxpose.xlu0.b32.cont [15/16] 0.0, 128
          %4004 = vxpose.xlu0.b32.end [16/16] 0.0, 128
          %v4005 = vpop.trf.xlu0
          %v4006 = vpop.trf.xlu0
          %v4007 = vpop.trf.xlu0
          %v4008 = vpop.trf.xlu0
          %v4009 = vpop.trf.xlu0
          %v4010 = vpop.trf.xlu0
          %v4011 = vpop.trf.xlu0
          %v4012 = vpop.trf.xlu0
          %v4013 = vpop.trf.xlu0
          %v4014 = vpop.trf.xlu0
          %v4015 = vpop.trf.xlu0
          %v4016 = vpop.trf.xlu0
          %v4017 = vpop.trf.xlu0
          %v4018 = vpop.trf.xlu0
          %v4019 = vpop.trf.xlu0
          %v4020 = vpop.trf.xlu0
          %4021 = vxpose.xlu0.b32.start [1/16] %v1607, 128
          %4022 = vxpose.xlu0.b32.cont [2/16] %v1610, 128
          %4023 = vxpose.xlu0.b32.cont [3/16] 0.0, 128
          %4024 = vxpose.xlu0.b32.cont [4/16] 0.0, 128
          %4025 = vxpose.xlu0.b32.cont [5/16] 0.0, 128
          %4026 = vxpose.xlu0.b32.cont [6/16] 0.0, 128
          %4027 = vxpose.xlu0.b32.cont [7/16] 0.0, 128
          %4028 = vxpose.xlu0.b32.cont [8/16] 0.0, 128
          %4029 = vxpose.xlu0.b32.cont [9/16] 0.0, 128
          %4030 = vxpose.xlu0.b32.cont [10/16] 0.0, 128
          %4031 = vxpose.xlu0.b32.cont [11/16] 0.0, 128
          %4032 = vxpose.xlu0.b32.cont [12/16] 0.0, 128
          %4033 = vxpose.xlu0.b32.cont [13/16] 0.0, 128
          %4034 = vxpose.xlu0.b32.cont [14/16] 0.0, 128
          %4035 = vxpose.xlu0.b32.cont [15/16] 0.0, 128
          %4036 = vxpose.xlu0.b32.end [16/16] 0.0, 128
          %v4037 = vpop.trf.xlu0
          %v4038 = vpop.trf.xlu0
          %v4039 = vpop.trf.xlu0
          %v4040 = vpop.trf.xlu0
          %v4041 = vpop.trf.xlu0
          %v4042 = vpop.trf.xlu0
          %v4043 = vpop.trf.xlu0
          %v4044 = vpop.trf.xlu0
          %v4045 = vpop.trf.xlu0
          %v4046 = vpop.trf.xlu0
          %v4047 = vpop.trf.xlu0
          %v4048 = vpop.trf.xlu0
          %v4049 = vpop.trf.xlu0
          %v4050 = vpop.trf.xlu0
          %v4051 = vpop.trf.xlu0
          %v4052 = vpop.trf.xlu0
          %4053 = vxpose.xlu0.b32.start [1/16] %v1615, 128
          %4054 = vxpose.xlu0.b32.cont [2/16] %v1618, 128
          %4055 = vxpose.xlu0.b32.cont [3/16] 0.0, 128
          %4056 = vxpose.xlu0.b32.cont [4/16] 0.0, 128
          %4057 = vxpose.xlu0.b32.cont [5/16] 0.0, 128
          %4058 = vxpose.xlu0.b32.cont [6/16] 0.0, 128
          %4059 = vxpose.xlu0.b32.cont [7/16] 0.0, 128
          %4060 = vxpose.xlu0.b32.cont [8/16] 0.0, 128
          %4061 = vxpose.xlu0.b32.cont [9/16] 0.0, 128
          %4062 = vxpose.xlu0.b32.cont [10/16] 0.0, 128
          %4063 = vxpose.xlu0.b32.cont [11/16] 0.0, 128
          %4064 = vxpose.xlu0.b32.cont [12/16] 0.0, 128
          %4065 = vxpose.xlu0.b32.cont [13/16] 0.0, 128
          %4066 = vxpose.xlu0.b32.cont [14/16] 0.0, 128
          %4067 = vxpose.xlu0.b32.cont [15/16] 0.0, 128
          %4068 = vxpose.xlu0.b32.end [16/16] 0.0, 128
          %v4069 = vpop.trf.xlu0
          %v4070 = vpop.trf.xlu0
          %v4071 = vpop.trf.xlu0
          %v4072 = vpop.trf.xlu0
          %v4073 = vpop.trf.xlu0
          %v4074 = vpop.trf.xlu0
          %v4075 = vpop.trf.xlu0
          %v4076 = vpop.trf.xlu0
          %v4077 = vpop.trf.xlu0
          %v4078 = vpop.trf.xlu0
          %v4079 = vpop.trf.xlu0
          %v4080 = vpop.trf.xlu0
          %v4081 = vpop.trf.xlu0
          %v4082 = vpop.trf.xlu0
          %v4083 = vpop.trf.xlu0
          %v4084 = vpop.trf.xlu0
          %4085 = vxpose.xlu0.b32.start [1/16] %v1623, 128
          %4086 = vxpose.xlu0.b32.cont [2/16] %v1626, 128
          %4087 = vxpose.xlu0.b32.cont [3/16] 0.0, 128
          %4088 = vxpose.xlu0.b32.cont [4/16] 0.0, 128
          %4089 = vxpose.xlu0.b32.cont [5/16] 0.0, 128
          %4090 = vxpose.xlu0.b32.cont [6/16] 0.0, 128
          %4091 = vxpose.xlu0.b32.cont [7/16] 0.0, 128
          %4092 = vxpose.xlu0.b32.cont [8/16] 0.0, 128
          %4093 = vxpose.xlu0.b32.cont [9/16] 0.0, 128
          %4094 = vxpose.xlu0.b32.cont [10/16] 0.0, 128
          %4095 = vxpose.xlu0.b32.cont [11/16] 0.0, 128
          %4096 = vxpose.xlu0.b32.cont [12/16] 0.0, 128
          %4097 = vxpose.xlu0.b32.cont [13/16] 0.0, 128
          %4098 = vxpose.xlu0.b32.cont [14/16] 0.0, 128
          %4099 = vxpose.xlu0.b32.cont [15/16] 0.0, 128
          %4100 = vxpose.xlu0.b32.end [16/16] 0.0, 128
          %v4101 = vpop.trf.xlu0
          %v4102 = vpop.trf.xlu0
          %v4103 = vpop.trf.xlu0
          %v4104 = vpop.trf.xlu0
          %v4105 = vpop.trf.xlu0
          %v4106 = vpop.trf.xlu0
          %v4107 = vpop.trf.xlu0
          %v4108 = vpop.trf.xlu0
          %v4109 = vpop.trf.xlu0
          %v4110 = vpop.trf.xlu0
          %v4111 = vpop.trf.xlu0
          %v4112 = vpop.trf.xlu0
          %v4113 = vpop.trf.xlu0
          %v4114 = vpop.trf.xlu0
          %v4115 = vpop.trf.xlu0
          %v4116 = vpop.trf.xlu0
          %4117 = vxpose.xlu0.b32.start [1/16] %v1631, 128
          %4118 = vxpose.xlu0.b32.cont [2/16] %v1634, 128
          %4119 = vxpose.xlu0.b32.cont [3/16] 0.0, 128
          %4120 = vxpose.xlu0.b32.cont [4/16] 0.0, 128
          %4121 = vxpose.xlu0.b32.cont [5/16] 0.0, 128
          %4122 = vxpose.xlu0.b32.cont [6/16] 0.0, 128
          %4123 = vxpose.xlu0.b32.cont [7/16] 0.0, 128
          %4124 = vxpose.xlu0.b32.cont [8/16] 0.0, 128
          %4125 = vxpose.xlu0.b32.cont [9/16] 0.0, 128
          %4126 = vxpose.xlu0.b32.cont [10/16] 0.0, 128
          %4127 = vxpose.xlu0.b32.cont [11/16] 0.0, 128
          %4128 = vxpose.xlu0.b32.cont [12/16] 0.0, 128
          %4129 = vxpose.xlu0.b32.cont [13/16] 0.0, 128
          %4130 = vxpose.xlu0.b32.cont [14/16] 0.0, 128
          %4131 = vxpose.xlu0.b32.cont [15/16] 0.0, 128
          %4132 = vxpose.xlu0.b32.end [16/16] 0.0, 128
          %v4133 = vpop.trf.xlu0
          %v4134 = vpop.trf.xlu0
          %v4135 = vpop.trf.xlu0
          %v4136 = vpop.trf.xlu0
          %v4137 = vpop.trf.xlu0
          %v4138 = vpop.trf.xlu0
          %v4139 = vpop.trf.xlu0
          %v4140 = vpop.trf.xlu0
          %v4141 = vpop.trf.xlu0
          %v4142 = vpop.trf.xlu0
          %v4143 = vpop.trf.xlu0
          %v4144 = vpop.trf.xlu0
          %v4145 = vpop.trf.xlu0
          %v4146 = vpop.trf.xlu0
          %v4147 = vpop.trf.xlu0
          %v4148 = vpop.trf.xlu0
          %4149 = vxpose.xlu0.b32.start [1/16] %v1639, 128
          %4150 = vxpose.xlu0.b32.cont [2/16] %v1642, 128
          %4151 = vxpose.xlu0.b32.cont [3/16] 0.0, 128
          %4152 = vxpose.xlu0.b32.cont [4/16] 0.0, 128
          %4153 = vxpose.xlu0.b32.cont [5/16] 0.0, 128
          %4154 = vxpose.xlu0.b32.cont [6/16] 0.0, 128
          %4155 = vxpose.xlu0.b32.cont [7/16] 0.0, 128
          %4156 = vxpose.xlu0.b32.cont [8/16] 0.0, 128
          %4157 = vxpose.xlu0.b32.cont [9/16] 0.0, 128
          %4158 = vxpose.xlu0.b32.cont [10/16] 0.0, 128
          %4159 = vxpose.xlu0.b32.cont [11/16] 0.0, 128
          %4160 = vxpose.xlu0.b32.cont [12/16] 0.0, 128
          %4161 = vxpose.xlu0.b32.cont [13/16] 0.0, 128
          %4162 = vxpose.xlu0.b32.cont [14/16] 0.0, 128
          %4163 = vxpose.xlu0.b32.cont [15/16] 0.0, 128
          %4164 = vxpose.xlu0.b32.end [16/16] 0.0, 128
          %v4165 = vpop.trf.xlu0
          %v4166 = vpop.trf.xlu0
          %v4167 = vpop.trf.xlu0
          %v4168 = vpop.trf.xlu0
          %v4169 = vpop.trf.xlu0
          %v4170 = vpop.trf.xlu0
          %v4171 = vpop.trf.xlu0
          %v4172 = vpop.trf.xlu0
          %v4173 = vpop.trf.xlu0
          %v4174 = vpop.trf.xlu0
          %v4175 = vpop.trf.xlu0
          %v4176 = vpop.trf.xlu0
          %v4177 = vpop.trf.xlu0
          %v4178 = vpop.trf.xlu0
          %v4179 = vpop.trf.xlu0
          %v4180 = vpop.trf.xlu0
          %4181 = vxpose.xlu0.b32.start [1/16] %v1647, 128
          %4182 = vxpose.xlu0.b32.cont [2/16] %v1650, 128
          %4183 = vxpose.xlu0.b32.cont [3/16] 0.0, 128
          %4184 = vxpose.xlu0.b32.cont [4/16] 0.0, 128
          %4185 = vxpose.xlu0.b32.cont [5/16] 0.0, 128
          %4186 = vxpose.xlu0.b32.cont [6/16] 0.0, 128
          %4187 = vxpose.xlu0.b32.cont [7/16] 0.0, 128
          %4188 = vxpose.xlu0.b32.cont [8/16] 0.0, 128
          %4189 = vxpose.xlu0.b32.cont [9/16] 0.0, 128
          %4190 = vxpose.xlu0.b32.cont [10/16] 0.0, 128
          %4191 = vxpose.xlu0.b32.cont [11/16] 0.0, 128
          %4192 = vxpose.xlu0.b32.cont [12/16] 0.0, 128
          %4193 = vxpose.xlu0.b32.cont [13/16] 0.0, 128
          %4194 = vxpose.xlu0.b32.cont [14/16] 0.0, 128
          %4195 = vxpose.xlu0.b32.cont [15/16] 0.0, 128
          %4196 = vxpose.xlu0.b32.end [16/16] 0.0, 128
          %v4197 = vpop.trf.xlu0
          %v4198 = vpop.trf.xlu0
          %v4199 = vpop.trf.xlu0
          %v4200 = vpop.trf.xlu0
          %v4201 = vpop.trf.xlu0
          %v4202 = vpop.trf.xlu0
          %v4203 = vpop.trf.xlu0
          %v4204 = vpop.trf.xlu0
          %v4205 = vpop.trf.xlu0
          %v4206 = vpop.trf.xlu0
          %v4207 = vpop.trf.xlu0
          %v4208 = vpop.trf.xlu0
          %v4209 = vpop.trf.xlu0
          %v4210 = vpop.trf.xlu0
          %v4211 = vpop.trf.xlu0
          %v4212 = vpop.trf.xlu0
          %v4213 = vpack.c.bf16 %v1670, %v1669
          %v4214 = vpack.c.bf16 %v1702, %v1701
          %v4215 = vpack.c.bf16 %v1734, %v1733
          %v4216 = vpack.c.bf16 %v1766, %v1765
          %v4217 = vpack.c.bf16 %v1798, %v1797
          %v4218 = vpack.c.bf16 %v1830, %v1829
          %v4219 = vpack.c.bf16 %v1862, %v1861
          %v4220 = vpack.c.bf16 %v1894, %v1893
          %v4221 = vpack.c.bf16 %v1926, %v1925
          %v4222 = vpack.c.bf16 %v1958, %v1957
          %v4223 = vpack.c.bf16 %v1990, %v1989
          %v4224 = vpack.c.bf16 %v2022, %v2021
          %v4225 = vpack.c.bf16 %v2054, %v2053
          %v4226 = vpack.c.bf16 %v2086, %v2085
          %v4227 = vpack.c.bf16 %v2118, %v2117
          %v4228 = vpack.c.bf16 %v2150, %v2149
          %v4229 = vpack.c.bf16 %v2182, %v2181
          %v4230 = vpack.c.bf16 %v2214, %v2213
          %v4231 = vpack.c.bf16 %v2246, %v2245
          %v4232 = vpack.c.bf16 %v2278, %v2277
          %v4233 = vpack.c.bf16 %v2310, %v2309
          %v4234 = vpack.c.bf16 %v2342, %v2341
          %v4235 = vpack.c.bf16 %v2374, %v2373
          %v4236 = vpack.c.bf16 %v2406, %v2405
          %v4237 = vpack.c.bf16 %v2438, %v2437
          %v4238 = vpack.c.bf16 %v2470, %v2469
          %v4239 = vpack.c.bf16 %v2502, %v2501
          %v4240 = vpack.c.bf16 %v2534, %v2533
          %v4241 = vpack.c.bf16 %v2566, %v2565
          %v4242 = vpack.c.bf16 %v2598, %v2597
          %v4243 = vpack.c.bf16 %v2630, %v2629
          %v4244 = vpack.c.bf16 %v2662, %v2661
          %v4245 = vpack.c.bf16 %v2694, %v2693
          %v4246 = vpack.c.bf16 %v2726, %v2725
          %v4247 = vpack.c.bf16 %v2758, %v2757
          %v4248 = vpack.c.bf16 %v2790, %v2789
          %v4249 = vpack.c.bf16 %v2822, %v2821
          %v4250 = vpack.c.bf16 %v2854, %v2853
          %v4251 = vpack.c.bf16 %v2886, %v2885
          %v4252 = vpack.c.bf16 %v2918, %v2917
          %v4253 = vpack.c.bf16 %v2950, %v2949
          %v4254 = vpack.c.bf16 %v2982, %v2981
          %v4255 = vpack.c.bf16 %v3014, %v3013
          %v4256 = vpack.c.bf16 %v3046, %v3045
          %v4257 = vpack.c.bf16 %v3078, %v3077
          %v4258 = vpack.c.bf16 %v3110, %v3109
          %v4259 = vpack.c.bf16 %v3142, %v3141
          %v4260 = vpack.c.bf16 %v3174, %v3173
          %v4261 = vpack.c.bf16 %v3206, %v3205
          %v4262 = vpack.c.bf16 %v3238, %v3237
          %v4263 = vpack.c.bf16 %v3270, %v3269
          %v4264 = vpack.c.bf16 %v3302, %v3301
          %v4265 = vpack.c.bf16 %v3334, %v3333
          %v4266 = vpack.c.bf16 %v3366, %v3365
          %v4267 = vpack.c.bf16 %v3398, %v3397
          %v4268 = vpack.c.bf16 %v3430, %v3429
          %v4269 = vpack.c.bf16 %v3462, %v3461
          %v4270 = vpack.c.bf16 %v3494, %v3493
          %v4271 = vpack.c.bf16 %v3526, %v3525
          %v4272 = vpack.c.bf16 %v3558, %v3557
          %v4273 = vpack.c.bf16 %v3590, %v3589
          %v4274 = vpack.c.bf16 %v3622, %v3621
          %v4275 = vpack.c.bf16 %v3654, %v3653
          %v4276 = vpack.c.bf16 %v3686, %v3685
          %v4277 = vpack.c.bf16 %v3718, %v3717
          %v4278 = vpack.c.bf16 %v3750, %v3749
          %v4279 = vpack.c.bf16 %v3782, %v3781
          %v4280 = vpack.c.bf16 %v3814, %v3813
          %v4281 = vpack.c.bf16 %v3846, %v3845
          %v4282 = vpack.c.bf16 %v3878, %v3877
          %v4283 = vpack.c.bf16 %v3910, %v3909
          %v4284 = vpack.c.bf16 %v3942, %v3941
          %v4285 = vpack.c.bf16 %v3974, %v3973
          %v4286 = vpack.c.bf16 %v4006, %v4005
          %v4287 = vpack.c.bf16 %v4038, %v4037
          %v4288 = vpack.c.bf16 %v4070, %v4069
          %v4289 = vpack.c.bf16 %v4102, %v4101
          %v4290 = vpack.c.bf16 %v4134, %v4133
          %v4291 = vpack.c.bf16 %v4166, %v4165
          %v4292 = vpack.c.bf16 %v4198, %v4197
          %v4295 = vunpack.c.l.b16 %v556
          %v4296 = vunpack.c.l.b16 %v557
          %v4297 = vpack.c.b16 %v4296, %v4295
          %v4300 = vsel %vm473, %v4213, 0
          %v4303 = vsel %vm473, %v4214, 0
          %v4306 = vsel %vm473, %v4215, 0
          %v4309 = vsel %vm473, %v4216, 0
          %v4312 = vsel %vm473, %v4217, 0
          %v4315 = vsel %vm473, %v4218, 0
          %v4318 = vsel %vm473, %v4219, 0
          %v4321 = vsel %vm473, %v4220, 0
          %v4324 = vsel %vm473, %v4221, 0
          %v4327 = vsel %vm473, %v4222, 0
          %v4330 = vsel %vm473, %v4223, 0
          %v4333 = vsel %vm473, %v4224, 0
          %v4336 = vsel %vm473, %v4225, 0
          %v4339 = vsel %vm473, %v4226, 0
          %v4342 = vsel %vm473, %v4227, 0
          %v4345 = vsel %vm473, %v4228, 0
          %v4348 = vsel %vm473, %v4229, 0
          %v4351 = vsel %vm473, %v4230, 0
          %v4354 = vsel %vm473, %v4231, 0
          %v4357 = vsel %vm473, %v4232, 0
          %v4360 = vsel %vm473, %v4233, 0
          %v4363 = vsel %vm473, %v4234, 0
          %v4366 = vsel %vm473, %v4235, 0
          %v4369 = vsel %vm473, %v4236, 0
          %v4372 = vsel %vm473, %v4237, 0
          %v4375 = vsel %vm473, %v4238, 0
          %v4378 = vsel %vm473, %v4239, 0
          %v4381 = vsel %vm473, %v4240, 0
          %v4384 = vsel %vm473, %v4241, 0
          %v4387 = vsel %vm473, %v4242, 0
          %v4390 = vsel %vm473, %v4243, 0
          %v4393 = vsel %vm473, %v4244, 0
          %v4396 = vsel %vm473, %v4245, 0
          %v4399 = vsel %vm473, %v4246, 0
          %v4402 = vsel %vm473, %v4247, 0
          %v4405 = vsel %vm473, %v4248, 0
          %v4408 = vsel %vm473, %v4249, 0
          %v4411 = vsel %vm473, %v4250, 0
          %v4414 = vsel %vm473, %v4251, 0
          %v4417 = vsel %vm473, %v4252, 0
          %v4420 = vsel %vm473, %v4253, 0
          %v4423 = vsel %vm473, %v4254, 0
          %v4426 = vsel %vm473, %v4255, 0
          %v4429 = vsel %vm473, %v4256, 0
          %v4432 = vsel %vm473, %v4257, 0
          %v4435 = vsel %vm473, %v4258, 0
          %v4438 = vsel %vm473, %v4259, 0
          %v4441 = vsel %vm473, %v4260, 0
          %v4444 = vsel %vm473, %v4261, 0
          %v4447 = vsel %vm473, %v4262, 0
          %v4450 = vsel %vm473, %v4263, 0
          %v4453 = vsel %vm473, %v4264, 0
          %v4456 = vsel %vm473, %v4265, 0
          %v4459 = vsel %vm473, %v4266, 0
          %v4462 = vsel %vm473, %v4267, 0
          %v4465 = vsel %vm473, %v4268, 0
          %v4468 = vsel %vm473, %v4269, 0
          %v4471 = vsel %vm473, %v4270, 0
          %v4474 = vsel %vm473, %v4271, 0
          %v4477 = vsel %vm473, %v4272, 0
          %v4480 = vsel %vm473, %v4273, 0
          %v4483 = vsel %vm473, %v4274, 0
          %v4486 = vsel %vm473, %v4275, 0
          %v4489 = vsel %vm473, %v4276, 0
          %v4492 = vsel %vm473, %v4277, 0
          %v4495 = vsel %vm473, %v4278, 0
          %v4498 = vsel %vm473, %v4279, 0
          %v4501 = vsel %vm473, %v4280, 0
          %v4504 = vsel %vm473, %v4281, 0
          %v4507 = vsel %vm473, %v4282, 0
          %v4510 = vsel %vm473, %v4283, 0
          %v4513 = vsel %vm473, %v4284, 0
          %v4516 = vsel %vm473, %v4285, 0
          %v4519 = vsel %vm473, %v4286, 0
          %v4522 = vsel %vm473, %v4287, 0
          %v4525 = vsel %vm473, %v4288, 0
          %v4528 = vsel %vm473, %v4289, 0
          %v4531 = vsel %vm473, %v4290, 0
          %v4534 = vsel %vm473, %v4291, 0
          %v4537 = vsel %vm473, %v4292, 0
          %4539 = vmatprep.subr.bf16.mxu0 0
          %4540 = vmatpush1.bf16.msra.mxu0 %v4297
          %4541 = vmatprep.subr.bf16.mxu0 0
          %4542 = vmatpush1.bf16.msra.mxu0 0
          %4543 = vmatprep.subr.bf16.mxu0 0
          %4544 = vmatpush1.bf16.msra.mxu0 0
          %4545 = vmatprep.subr.bf16.mxu0 0
          %4546 = vmatpush1.bf16.msra.mxu0 0
          %4547 = vmatprep.subr.bf16.mxu0 0
          %4548 = vmatpush1.bf16.msra.mxu0 0
          %4549 = vmatprep.subr.bf16.mxu0 0
          %4550 = vmatpush1.bf16.msra.mxu0 0
          %4551 = vmatprep.subr.bf16.mxu0 0
          %4552 = vmatpush1.bf16.msra.mxu0 0
          %4553 = vmatprep.subr.bf16.mxu0 0
          %4554 = vmatpush1.bf16.msra.mxu0 0
          %4555 = vmatprep.subr.bf16.mxu0 0
          %4556 = vmatpush1.bf16.msra.mxu0 0
          %4557 = vmatprep.subr.bf16.mxu0 0
          %4558 = vmatpush1.bf16.msra.mxu0 0
          %4559 = vmatprep.subr.bf16.mxu0 0
          %4560 = vmatpush1.bf16.msra.mxu0 0
          %4561 = vmatprep.subr.bf16.mxu0 0
          %4562 = vmatpush1.bf16.msra.mxu0 0
          %4563 = vmatprep.subr.bf16.mxu0 0
          %4564 = vmatpush1.bf16.msra.mxu0 0
          %4565 = vmatprep.subr.bf16.mxu0 0
          %4566 = vmatpush1.bf16.msra.mxu0 0
          %4567 = vmatprep.subr.bf16.mxu0 0
          %4568 = vmatpush1.bf16.msra.mxu0 0
          %4569 = vmatprep.subr.bf16.mxu0 0
          %4570 = vmatpush1.bf16.msra.mxu0 0
          %4571 = vmatprep.mubr.bf16.mxu0 0
          %4572 = vmatmul.mubr.bf16.gmra.mrb[0].mxu0 %v4300
          %v4573 = vpop.f32.mrb[0].mxu0
          %v4574 = vadd.f32 0.0, %v4573
          %v4575 = vpop.f32.mrb[0].mxu0
          %v4576 = vpop.f32.mrb[0].mxu0
          %v4577 = vadd.f32 0.0, %v4576
          %v4578 = vpop.f32.mrb[0].mxu0
          %4579 = vmatprep.mubr.bf16.mxu0 0
          %4580 = vmatmul.mubr.bf16.gmra.mrb[0].mxu0 %v4303
          %v4581 = vpop.f32.mrb[0].mxu0
          %v4582 = vadd.f32 0.0, %v4581
          %v4583 = vpop.f32.mrb[0].mxu0
          %v4584 = vpop.f32.mrb[0].mxu0
          %v4585 = vadd.f32 0.0, %v4584
          %v4586 = vpop.f32.mrb[0].mxu0
          %4587 = vmatprep.mubr.bf16.mxu0 0
          %4588 = vmatmul.mubr.bf16.gmra.mrb[0].mxu0 %v4306
          %v4589 = vpop.f32.mrb[0].mxu0
          %v4590 = vadd.f32 0.0, %v4589
          %v4591 = vpop.f32.mrb[0].mxu0
          %v4592 = vpop.f32.mrb[0].mxu0
          %v4593 = vadd.f32 0.0, %v4592
          %v4594 = vpop.f32.mrb[0].mxu0
          %4595 = vmatprep.mubr.bf16.mxu0 0
          %4596 = vmatmul.mubr.bf16.gmra.mrb[0].mxu0 %v4309
          %v4597 = vpop.f32.mrb[0].mxu0
          %v4598 = vadd.f32 0.0, %v4597
          %v4599 = vpop.f32.mrb[0].mxu0
          %v4600 = vpop.f32.mrb[0].mxu0
          %v4601 = vadd.f32 0.0, %v4600
          %v4602 = vpop.f32.mrb[0].mxu0
          %4603 = vmatprep.mubr.bf16.mxu0 0
          %4604 = vmatmul.mubr.bf16.gmra.mrb[0].mxu0 %v4312
          %v4605 = vpop.f32.mrb[0].mxu0
          %v4606 = vadd.f32 0.0, %v4605
          %v4607 = vpop.f32.mrb[0].mxu0
          %v4608 = vpop.f32.mrb[0].mxu0
          %v4609 = vadd.f32 0.0, %v4608
          %v4610 = vpop.f32.mrb[0].mxu0
          %4611 = vmatprep.mubr.bf16.mxu0 0
          %4612 = vmatmul.mubr.bf16.gmra.mrb[0].mxu0 %v4315
          %v4613 = vpop.f32.mrb[0].mxu0
          %v4614 = vadd.f32 0.0, %v4613
          %v4615 = vpop.f32.mrb[0].mxu0
          %v4616 = vpop.f32.mrb[0].mxu0
          %v4617 = vadd.f32 0.0, %v4616
          %v4618 = vpop.f32.mrb[0].mxu0
          %4619 = vmatprep.mubr.bf16.mxu0 0
          %4620 = vmatmul.mubr.bf16.gmra.mrb[0].mxu0 %v4318
          %v4621 = vpop.f32.mrb[0].mxu0
          %v4622 = vadd.f32 0.0, %v4621
          %v4623 = vpop.f32.mrb[0].mxu0
          %v4624 = vpop.f32.mrb[0].mxu0
          %v4625 = vadd.f32 0.0, %v4624
          %v4626 = vpop.f32.mrb[0].mxu0
          %4627 = vmatprep.mubr.bf16.mxu0 0
          %4628 = vmatmul.mubr.bf16.gmra.mrb[0].mxu0 %v4321
          %v4629 = vpop.f32.mrb[0].mxu0
          %v4630 = vadd.f32 0.0, %v4629
          %v4631 = vpop.f32.mrb[0].mxu0
          %v4632 = vpop.f32.mrb[0].mxu0
          %v4633 = vadd.f32 0.0, %v4632
          %v4634 = vpop.f32.mrb[0].mxu0
          %4635 = vmatprep.mubr.bf16.mxu0 0
          %4636 = vmatmul.mubr.bf16.gmra.mrb[0].mxu0 %v4324
          %v4637 = vpop.f32.mrb[0].mxu0
          %v4638 = vadd.f32 0.0, %v4637
          %v4639 = vpop.f32.mrb[0].mxu0
          %v4640 = vpop.f32.mrb[0].mxu0
          %v4641 = vadd.f32 0.0, %v4640
          %v4642 = vpop.f32.mrb[0].mxu0
          %4643 = vmatprep.mubr.bf16.mxu0 0
          %4644 = vmatmul.mubr.bf16.gmra.mrb[0].mxu0 %v4327
          %v4645 = vpop.f32.mrb[0].mxu0
          %v4646 = vadd.f32 0.0, %v4645
          %v4647 = vpop.f32.mrb[0].mxu0
          %v4648 = vpop.f32.mrb[0].mxu0
          %v4649 = vadd.f32 0.0, %v4648
          %v4650 = vpop.f32.mrb[0].mxu0
          %4651 = vmatprep.mubr.bf16.mxu0 0
          %4652 = vmatmul.mubr.bf16.gmra.mrb[0].mxu0 %v4330
          %v4653 = vpop.f32.mrb[0].mxu0
          %v4654 = vadd.f32 0.0, %v4653
          %v4655 = vpop.f32.mrb[0].mxu0
          %v4656 = vpop.f32.mrb[0].mxu0
          %v4657 = vadd.f32 0.0, %v4656
          %v4658 = vpop.f32.mrb[0].mxu0
          %4659 = vmatprep.mubr.bf16.mxu0 0
          %4660 = vmatmul.mubr.bf16.gmra.mrb[0].mxu0 %v4333
          %v4661 = vpop.f32.mrb[0].mxu0
          %v4662 = vadd.f32 0.0, %v4661
          %v4663 = vpop.f32.mrb[0].mxu0
          %v4664 = vpop.f32.mrb[0].mxu0
          %v4665 = vadd.f32 0.0, %v4664
          %v4666 = vpop.f32.mrb[0].mxu0
          %4667 = vmatprep.mubr.bf16.mxu0 0
          %4668 = vmatmul.mubr.bf16.gmra.mrb[0].mxu0 %v4336
          %v4669 = vpop.f32.mrb[0].mxu0
          %v4670 = vadd.f32 0.0, %v4669
          %v4671 = vpop.f32.mrb[0].mxu0
          %v4672 = vpop.f32.mrb[0].mxu0
          %v4673 = vadd.f32 0.0, %v4672
          %v4674 = vpop.f32.mrb[0].mxu0
          %4675 = vmatprep.mubr.bf16.mxu0 0
          %4676 = vmatmul.mubr.bf16.gmra.mrb[0].mxu0 %v4339
          %v4677 = vpop.f32.mrb[0].mxu0
          %v4678 = vadd.f32 0.0, %v4677
          %v4679 = vpop.f32.mrb[0].mxu0
          %v4680 = vpop.f32.mrb[0].mxu0
          %v4681 = vadd.f32 0.0, %v4680
          %v4682 = vpop.f32.mrb[0].mxu0
          %4683 = vmatprep.mubr.bf16.mxu0 0
          %4684 = vmatmul.mubr.bf16.gmra.mrb[0].mxu0 %v4342
          %v4685 = vpop.f32.mrb[0].mxu0
          %v4686 = vadd.f32 0.0, %v4685
          %v4687 = vpop.f32.mrb[0].mxu0
          %v4688 = vpop.f32.mrb[0].mxu0
          %v4689 = vadd.f32 0.0, %v4688
          %v4690 = vpop.f32.mrb[0].mxu0
          %4691 = vmatprep.mubr.bf16.mxu0 0
          %4692 = vmatmul.mubr.bf16.gmra.mrb[0].mxu0 %v4345
          %v4693 = vpop.f32.mrb[0].mxu0
          %v4694 = vadd.f32 0.0, %v4693
          %v4695 = vpop.f32.mrb[0].mxu0
          %v4696 = vpop.f32.mrb[0].mxu0
          %v4697 = vadd.f32 0.0, %v4696
          %v4698 = vpop.f32.mrb[0].mxu0
          %4699 = vmatprep.mubr.bf16.mxu0 0
          %4700 = vmatmul.mubr.bf16.gmra.mrb[0].mxu0 %v4348
          %v4701 = vpop.f32.mrb[0].mxu0
          %v4702 = vadd.f32 0.0, %v4701
          %v4703 = vpop.f32.mrb[0].mxu0
          %v4704 = vpop.f32.mrb[0].mxu0
          %v4705 = vadd.f32 0.0, %v4704
          %v4706 = vpop.f32.mrb[0].mxu0
          %4707 = vmatprep.mubr.bf16.mxu0 0
          %4708 = vmatmul.mubr.bf16.gmra.mrb[0].mxu0 %v4351
          %v4709 = vpop.f32.mrb[0].mxu0
          %v4710 = vadd.f32 0.0, %v4709
          %v4711 = vpop.f32.mrb[0].mxu0
          %v4712 = vpop.f32.mrb[0].mxu0
          %v4713 = vadd.f32 0.0, %v4712
          %v4714 = vpop.f32.mrb[0].mxu0
          %4715 = vmatprep.mubr.bf16.mxu0 0
          %4716 = vmatmul.mubr.bf16.gmra.mrb[0].mxu0 %v4354
          %v4717 = vpop.f32.mrb[0].mxu0
          %v4718 = vadd.f32 0.0, %v4717
          %v4719 = vpop.f32.mrb[0].mxu0
          %v4720 = vpop.f32.mrb[0].mxu0
          %v4721 = vadd.f32 0.0, %v4720
          %v4722 = vpop.f32.mrb[0].mxu0
          %4723 = vmatprep.mubr.bf16.mxu0 0
          %4724 = vmatmul.mubr.bf16.gmra.mrb[0].mxu0 %v4357
          %v4725 = vpop.f32.mrb[0].mxu0
          %v4726 = vadd.f32 0.0, %v4725
          %v4727 = vpop.f32.mrb[0].mxu0
          %v4728 = vpop.f32.mrb[0].mxu0
          %v4729 = vadd.f32 0.0, %v4728
          %v4730 = vpop.f32.mrb[0].mxu0
          %4731 = vmatprep.mubr.bf16.mxu0 0
          %4732 = vmatmul.mubr.bf16.gmra.mrb[0].mxu0 %v4360
          %v4733 = vpop.f32.mrb[0].mxu0
          %v4734 = vadd.f32 0.0, %v4733
          %v4735 = vpop.f32.mrb[0].mxu0
          %v4736 = vpop.f32.mrb[0].mxu0
          %v4737 = vadd.f32 0.0, %v4736
          %v4738 = vpop.f32.mrb[0].mxu0
          %4739 = vmatprep.mubr.bf16.mxu0 0
          %4740 = vmatmul.mubr.bf16.gmra.mrb[0].mxu0 %v4363
          %v4741 = vpop.f32.mrb[0].mxu0
          %v4742 = vadd.f32 0.0, %v4741
          %v4743 = vpop.f32.mrb[0].mxu0
          %v4744 = vpop.f32.mrb[0].mxu0
          %v4745 = vadd.f32 0.0, %v4744
          %v4746 = vpop.f32.mrb[0].mxu0
          %4747 = vmatprep.mubr.bf16.mxu0 0
          %4748 = vmatmul.mubr.bf16.gmra.mrb[0].mxu0 %v4366
          %v4749 = vpop.f32.mrb[0].mxu0
          %v4750 = vadd.f32 0.0, %v4749
          %v4751 = vpop.f32.mrb[0].mxu0
          %v4752 = vpop.f32.mrb[0].mxu0
          %v4753 = vadd.f32 0.0, %v4752
          %v4754 = vpop.f32.mrb[0].mxu0
          %4755 = vmatprep.mubr.bf16.mxu0 0
          %4756 = vmatmul.mubr.bf16.gmra.mrb[0].mxu0 %v4369
          %v4757 = vpop.f32.mrb[0].mxu0
          %v4758 = vadd.f32 0.0, %v4757
          %v4759 = vpop.f32.mrb[0].mxu0
          %v4760 = vpop.f32.mrb[0].mxu0
          %v4761 = vadd.f32 0.0, %v4760
          %v4762 = vpop.f32.mrb[0].mxu0
          %4763 = vmatprep.mubr.bf16.mxu0 0
          %4764 = vmatmul.mubr.bf16.gmra.mrb[0].mxu0 %v4372
          %v4765 = vpop.f32.mrb[0].mxu0
          %v4766 = vadd.f32 0.0, %v4765
          %v4767 = vpop.f32.mrb[0].mxu0
          %v4768 = vpop.f32.mrb[0].mxu0
          %v4769 = vadd.f32 0.0, %v4768
          %v4770 = vpop.f32.mrb[0].mxu0
          %4771 = vmatprep.mubr.bf16.mxu0 0
          %4772 = vmatmul.mubr.bf16.gmra.mrb[0].mxu0 %v4375
          %v4773 = vpop.f32.mrb[0].mxu0
          %v4774 = vadd.f32 0.0, %v4773
          %v4775 = vpop.f32.mrb[0].mxu0
          %v4776 = vpop.f32.mrb[0].mxu0
          %v4777 = vadd.f32 0.0, %v4776
          %v4778 = vpop.f32.mrb[0].mxu0
          %4779 = vmatprep.mubr.bf16.mxu0 0
          %4780 = vmatmul.mubr.bf16.gmra.mrb[0].mxu0 %v4378
          %v4781 = vpop.f32.mrb[0].mxu0
          %v4782 = vadd.f32 0.0, %v4781
          %v4783 = vpop.f32.mrb[0].mxu0
          %v4784 = vpop.f32.mrb[0].mxu0
          %v4785 = vadd.f32 0.0, %v4784
          %v4786 = vpop.f32.mrb[0].mxu0
          %4787 = vmatprep.mubr.bf16.mxu0 0
          %4788 = vmatmul.mubr.bf16.gmra.mrb[0].mxu0 %v4381
          %v4789 = vpop.f32.mrb[0].mxu0
          %v4790 = vadd.f32 0.0, %v4789
          %v4791 = vpop.f32.mrb[0].mxu0
          %v4792 = vpop.f32.mrb[0].mxu0
          %v4793 = vadd.f32 0.0, %v4792
          %v4794 = vpop.f32.mrb[0].mxu0
          %4795 = vmatprep.mubr.bf16.mxu0 0
          %4796 = vmatmul.mubr.bf16.gmra.mrb[0].mxu0 %v4384
          %v4797 = vpop.f32.mrb[0].mxu0
          %v4798 = vadd.f32 0.0, %v4797
          %v4799 = vpop.f32.mrb[0].mxu0
          %v4800 = vpop.f32.mrb[0].mxu0
          %v4801 = vadd.f32 0.0, %v4800
          %v4802 = vpop.f32.mrb[0].mxu0
          %4803 = vmatprep.mubr.bf16.mxu0 0
          %4804 = vmatmul.mubr.bf16.gmra.mrb[0].mxu0 %v4387
          %v4805 = vpop.f32.mrb[0].mxu0
          %v4806 = vadd.f32 0.0, %v4805
          %v4807 = vpop.f32.mrb[0].mxu0
          %v4808 = vpop.f32.mrb[0].mxu0
          %v4809 = vadd.f32 0.0, %v4808
          %v4810 = vpop.f32.mrb[0].mxu0
          %4811 = vmatprep.mubr.bf16.mxu0 0
          %4812 = vmatmul.mubr.bf16.gmra.mrb[0].mxu0 %v4390
          %v4813 = vpop.f32.mrb[0].mxu0
          %v4814 = vadd.f32 0.0, %v4813
          %v4815 = vpop.f32.mrb[0].mxu0
          %v4816 = vpop.f32.mrb[0].mxu0
          %v4817 = vadd.f32 0.0, %v4816
          %v4818 = vpop.f32.mrb[0].mxu0
          %4819 = vmatprep.mubr.bf16.mxu0 0
          %4820 = vmatmul.mubr.bf16.gmra.mrb[0].mxu0 %v4393
          %v4821 = vpop.f32.mrb[0].mxu0
          %v4822 = vadd.f32 0.0, %v4821
          %v4823 = vpop.f32.mrb[0].mxu0
          %v4824 = vpop.f32.mrb[0].mxu0
          %v4825 = vadd.f32 0.0, %v4824
          %v4826 = vpop.f32.mrb[0].mxu0
          %4827 = vmatprep.mubr.bf16.mxu0 0
          %4828 = vmatmul.mubr.bf16.gmra.mrb[0].mxu0 %v4396
          %v4829 = vpop.f32.mrb[0].mxu0
          %v4830 = vadd.f32 0.0, %v4829
          %v4831 = vpop.f32.mrb[0].mxu0
          %v4832 = vpop.f32.mrb[0].mxu0
          %v4833 = vadd.f32 0.0, %v4832
          %v4834 = vpop.f32.mrb[0].mxu0
          %4835 = vmatprep.mubr.bf16.mxu0 0
          %4836 = vmatmul.mubr.bf16.gmra.mrb[0].mxu0 %v4399
          %v4837 = vpop.f32.mrb[0].mxu0
          %v4838 = vadd.f32 0.0, %v4837
          %v4839 = vpop.f32.mrb[0].mxu0
          %v4840 = vpop.f32.mrb[0].mxu0
          %v4841 = vadd.f32 0.0, %v4840
          %v4842 = vpop.f32.mrb[0].mxu0
          %4843 = vmatprep.mubr.bf16.mxu0 0
          %4844 = vmatmul.mubr.bf16.gmra.mrb[0].mxu0 %v4402
          %v4845 = vpop.f32.mrb[0].mxu0
          %v4846 = vadd.f32 0.0, %v4845
          %v4847 = vpop.f32.mrb[0].mxu0
          %v4848 = vpop.f32.mrb[0].mxu0
          %v4849 = vadd.f32 0.0, %v4848
          %v4850 = vpop.f32.mrb[0].mxu0
          %4851 = vmatprep.mubr.bf16.mxu0 0
          %4852 = vmatmul.mubr.bf16.gmra.mrb[0].mxu0 %v4405
          %v4853 = vpop.f32.mrb[0].mxu0
          %v4854 = vadd.f32 0.0, %v4853
          %v4855 = vpop.f32.mrb[0].mxu0
          %v4856 = vpop.f32.mrb[0].mxu0
          %v4857 = vadd.f32 0.0, %v4856
          %v4858 = vpop.f32.mrb[0].mxu0
          %4859 = vmatprep.mubr.bf16.mxu0 0
          %4860 = vmatmul.mubr.bf16.gmra.mrb[0].mxu0 %v4408
          %v4861 = vpop.f32.mrb[0].mxu0
          %v4862 = vadd.f32 0.0, %v4861
          %v4863 = vpop.f32.mrb[0].mxu0
          %v4864 = vpop.f32.mrb[0].mxu0
          %v4865 = vadd.f32 0.0, %v4864
          %v4866 = vpop.f32.mrb[0].mxu0
          %4867 = vmatprep.mubr.bf16.mxu0 0
          %4868 = vmatmul.mubr.bf16.gmra.mrb[0].mxu0 %v4411
          %v4869 = vpop.f32.mrb[0].mxu0
          %v4870 = vadd.f32 0.0, %v4869
          %v4871 = vpop.f32.mrb[0].mxu0
          %v4872 = vpop.f32.mrb[0].mxu0
          %v4873 = vadd.f32 0.0, %v4872
          %v4874 = vpop.f32.mrb[0].mxu0
          %4875 = vmatprep.mubr.bf16.mxu0 0
          %4876 = vmatmul.mubr.bf16.gmra.mrb[0].mxu0 %v4414
          %v4877 = vpop.f32.mrb[0].mxu0
          %v4878 = vadd.f32 0.0, %v4877
          %v4879 = vpop.f32.mrb[0].mxu0
          %v4880 = vpop.f32.mrb[0].mxu0
          %v4881 = vadd.f32 0.0, %v4880
          %v4882 = vpop.f32.mrb[0].mxu0
          %4883 = vmatprep.mubr.bf16.mxu0 0
          %4884 = vmatmul.mubr.bf16.gmra.mrb[0].mxu0 %v4417
          %v4885 = vpop.f32.mrb[0].mxu0
          %v4886 = vadd.f32 0.0, %v4885
          %v4887 = vpop.f32.mrb[0].mxu0
          %v4888 = vpop.f32.mrb[0].mxu0
          %v4889 = vadd.f32 0.0, %v4888
          %v4890 = vpop.f32.mrb[0].mxu0
          %4891 = vmatprep.mubr.bf16.mxu0 0
          %4892 = vmatmul.mubr.bf16.gmra.mrb[0].mxu0 %v4420
          %v4893 = vpop.f32.mrb[0].mxu0
          %v4894 = vadd.f32 0.0, %v4893
          %v4895 = vpop.f32.mrb[0].mxu0
          %v4896 = vpop.f32.mrb[0].mxu0
          %v4897 = vadd.f32 0.0, %v4896
          %v4898 = vpop.f32.mrb[0].mxu0
          %4899 = vmatprep.mubr.bf16.mxu0 0
          %4900 = vmatmul.mubr.bf16.gmra.mrb[0].mxu0 %v4423
          %v4901 = vpop.f32.mrb[0].mxu0
          %v4902 = vadd.f32 0.0, %v4901
          %v4903 = vpop.f32.mrb[0].mxu0
          %v4904 = vpop.f32.mrb[0].mxu0
          %v4905 = vadd.f32 0.0, %v4904
          %v4906 = vpop.f32.mrb[0].mxu0
          %4907 = vmatprep.mubr.bf16.mxu0 0
          %4908 = vmatmul.mubr.bf16.gmra.mrb[0].mxu0 %v4426
          %v4909 = vpop.f32.mrb[0].mxu0
          %v4910 = vadd.f32 0.0, %v4909
          %v4911 = vpop.f32.mrb[0].mxu0
          %v4912 = vpop.f32.mrb[0].mxu0
          %v4913 = vadd.f32 0.0, %v4912
          %v4914 = vpop.f32.mrb[0].mxu0
          %4915 = vmatprep.mubr.bf16.mxu0 0
          %4916 = vmatmul.mubr.bf16.gmra.mrb[0].mxu0 %v4429
          %v4917 = vpop.f32.mrb[0].mxu0
          %v4918 = vadd.f32 0.0, %v4917
          %v4919 = vpop.f32.mrb[0].mxu0
          %v4920 = vpop.f32.mrb[0].mxu0
          %v4921 = vadd.f32 0.0, %v4920
          %v4922 = vpop.f32.mrb[0].mxu0
          %4923 = vmatprep.mubr.bf16.mxu0 0
          %4924 = vmatmul.mubr.bf16.gmra.mrb[0].mxu0 %v4432
          %v4925 = vpop.f32.mrb[0].mxu0
          %v4926 = vadd.f32 0.0, %v4925
          %v4927 = vpop.f32.mrb[0].mxu0
          %v4928 = vpop.f32.mrb[0].mxu0
          %v4929 = vadd.f32 0.0, %v4928
          %v4930 = vpop.f32.mrb[0].mxu0
          %4931 = vmatprep.mubr.bf16.mxu0 0
          %4932 = vmatmul.mubr.bf16.gmra.mrb[0].mxu0 %v4435
          %v4933 = vpop.f32.mrb[0].mxu0
          %v4934 = vadd.f32 0.0, %v4933
          %v4935 = vpop.f32.mrb[0].mxu0
          %v4936 = vpop.f32.mrb[0].mxu0
          %v4937 = vadd.f32 0.0, %v4936
          %v4938 = vpop.f32.mrb[0].mxu0
          %4939 = vmatprep.mubr.bf16.mxu0 0
          %4940 = vmatmul.mubr.bf16.gmra.mrb[0].mxu0 %v4438
          %v4941 = vpop.f32.mrb[0].mxu0
          %v4942 = vadd.f32 0.0, %v4941
          %v4943 = vpop.f32.mrb[0].mxu0
          %v4944 = vpop.f32.mrb[0].mxu0
          %v4945 = vadd.f32 0.0, %v4944
          %v4946 = vpop.f32.mrb[0].mxu0
          %4947 = vmatprep.mubr.bf16.mxu0 0
          %4948 = vmatmul.mubr.bf16.gmra.mrb[0].mxu0 %v4441
          %v4949 = vpop.f32.mrb[0].mxu0
          %v4950 = vadd.f32 0.0, %v4949
          %v4951 = vpop.f32.mrb[0].mxu0
          %v4952 = vpop.f32.mrb[0].mxu0
          %v4953 = vadd.f32 0.0, %v4952
          %v4954 = vpop.f32.mrb[0].mxu0
          %4955 = vmatprep.mubr.bf16.mxu0 0
          %4956 = vmatmul.mubr.bf16.gmra.mrb[0].mxu0 %v4444
          %v4957 = vpop.f32.mrb[0].mxu0
          %v4958 = vadd.f32 0.0, %v4957
          %v4959 = vpop.f32.mrb[0].mxu0
          %v4960 = vpop.f32.mrb[0].mxu0
          %v4961 = vadd.f32 0.0, %v4960
          %v4962 = vpop.f32.mrb[0].mxu0
          %4963 = vmatprep.mubr.bf16.mxu0 0
          %4964 = vmatmul.mubr.bf16.gmra.mrb[0].mxu0 %v4447
          %v4965 = vpop.f32.mrb[0].mxu0
          %v4966 = vadd.f32 0.0, %v4965
          %v4967 = vpop.f32.mrb[0].mxu0
          %v4968 = vpop.f32.mrb[0].mxu0
          %v4969 = vadd.f32 0.0, %v4968
          %v4970 = vpop.f32.mrb[0].mxu0
          %4971 = vmatprep.mubr.bf16.mxu0 0
          %4972 = vmatmul.mubr.bf16.gmra.mrb[0].mxu0 %v4450
          %v4973 = vpop.f32.mrb[0].mxu0
          %v4974 = vadd.f32 0.0, %v4973
          %v4975 = vpop.f32.mrb[0].mxu0
          %v4976 = vpop.f32.mrb[0].mxu0
          %v4977 = vadd.f32 0.0, %v4976
          %v4978 = vpop.f32.mrb[0].mxu0
          %4979 = vmatprep.mubr.bf16.mxu0 0
          %4980 = vmatmul.mubr.bf16.gmra.mrb[0].mxu0 %v4453
          %v4981 = vpop.f32.mrb[0].mxu0
          %v4982 = vadd.f32 0.0, %v4981
          %v4983 = vpop.f32.mrb[0].mxu0
          %v4984 = vpop.f32.mrb[0].mxu0
          %v4985 = vadd.f32 0.0, %v4984
          %v4986 = vpop.f32.mrb[0].mxu0
          %4987 = vmatprep.mubr.bf16.mxu0 0
          %4988 = vmatmul.mubr.bf16.gmra.mrb[0].mxu0 %v4456
          %v4989 = vpop.f32.mrb[0].mxu0
          %v4990 = vadd.f32 0.0, %v4989
          %v4991 = vpop.f32.mrb[0].mxu0
          %v4992 = vpop.f32.mrb[0].mxu0
          %v4993 = vadd.f32 0.0, %v4992
          %v4994 = vpop.f32.mrb[0].mxu0
          %4995 = vmatprep.mubr.bf16.mxu0 0
          %4996 = vmatmul.mubr.bf16.gmra.mrb[0].mxu0 %v4459
          %v4997 = vpop.f32.mrb[0].mxu0
          %v4998 = vadd.f32 0.0, %v4997
          %v4999 = vpop.f32.mrb[0].mxu0
          %v5000 = vpop.f32.mrb[0].mxu0
          %v5001 = vadd.f32 0.0, %v5000
          %v5002 = vpop.f32.mrb[0].mxu0
          %5003 = vmatprep.mubr.bf16.mxu0 0
          %5004 = vmatmul.mubr.bf16.gmra.mrb[0].mxu0 %v4462
          %v5005 = vpop.f32.mrb[0].mxu0
          %v5006 = vadd.f32 0.0, %v5005
          %v5007 = vpop.f32.mrb[0].mxu0
          %v5008 = vpop.f32.mrb[0].mxu0
          %v5009 = vadd.f32 0.0, %v5008
          %v5010 = vpop.f32.mrb[0].mxu0
          %5011 = vmatprep.mubr.bf16.mxu0 0
          %5012 = vmatmul.mubr.bf16.gmra.mrb[0].mxu0 %v4465
          %v5013 = vpop.f32.mrb[0].mxu0
          %v5014 = vadd.f32 0.0, %v5013
          %v5015 = vpop.f32.mrb[0].mxu0
          %v5016 = vpop.f32.mrb[0].mxu0
          %v5017 = vadd.f32 0.0, %v5016
          %v5018 = vpop.f32.mrb[0].mxu0
          %5019 = vmatprep.mubr.bf16.mxu0 0
          %5020 = vmatmul.mubr.bf16.gmra.mrb[0].mxu0 %v4468
          %v5021 = vpop.f32.mrb[0].mxu0
          %v5022 = vadd.f32 0.0, %v5021
          %v5023 = vpop.f32.mrb[0].mxu0
          %v5024 = vpop.f32.mrb[0].mxu0
          %v5025 = vadd.f32 0.0, %v5024
          %v5026 = vpop.f32.mrb[0].mxu0
          %5027 = vmatprep.mubr.bf16.mxu0 0
          %5028 = vmatmul.mubr.bf16.gmra.mrb[0].mxu0 %v4471
          %v5029 = vpop.f32.mrb[0].mxu0
          %v5030 = vadd.f32 0.0, %v5029
          %v5031 = vpop.f32.mrb[0].mxu0
          %v5032 = vpop.f32.mrb[0].mxu0
          %v5033 = vadd.f32 0.0, %v5032
          %v5034 = vpop.f32.mrb[0].mxu0
          %5035 = vmatprep.mubr.bf16.mxu0 0
          %5036 = vmatmul.mubr.bf16.gmra.mrb[0].mxu0 %v4474
          %v5037 = vpop.f32.mrb[0].mxu0
          %v5038 = vadd.f32 0.0, %v5037
          %v5039 = vpop.f32.mrb[0].mxu0
          %v5040 = vpop.f32.mrb[0].mxu0
          %v5041 = vadd.f32 0.0, %v5040
          %v5042 = vpop.f32.mrb[0].mxu0
          %5043 = vmatprep.mubr.bf16.mxu0 0
          %5044 = vmatmul.mubr.bf16.gmra.mrb[0].mxu0 %v4477
          %v5045 = vpop.f32.mrb[0].mxu0
          %v5046 = vadd.f32 0.0, %v5045
          %v5047 = vpop.f32.mrb[0].mxu0
          %v5048 = vpop.f32.mrb[0].mxu0
          %v5049 = vadd.f32 0.0, %v5048
          %v5050 = vpop.f32.mrb[0].mxu0
          %5051 = vmatprep.mubr.bf16.mxu0 0
          %5052 = vmatmul.mubr.bf16.gmra.mrb[0].mxu0 %v4480
          %v5053 = vpop.f32.mrb[0].mxu0
          %v5054 = vadd.f32 0.0, %v5053
          %v5055 = vpop.f32.mrb[0].mxu0
          %v5056 = vpop.f32.mrb[0].mxu0
          %v5057 = vadd.f32 0.0, %v5056
          %v5058 = vpop.f32.mrb[0].mxu0
          %5059 = vmatprep.mubr.bf16.mxu0 0
          %5060 = vmatmul.mubr.bf16.gmra.mrb[0].mxu0 %v4483
          %v5061 = vpop.f32.mrb[0].mxu0
          %v5062 = vadd.f32 0.0, %v5061
          %v5063 = vpop.f32.mrb[0].mxu0
          %v5064 = vpop.f32.mrb[0].mxu0
          %v5065 = vadd.f32 0.0, %v5064
          %v5066 = vpop.f32.mrb[0].mxu0
          %5067 = vmatprep.mubr.bf16.mxu0 0
          %5068 = vmatmul.mubr.bf16.gmra.mrb[0].mxu0 %v4486
          %v5069 = vpop.f32.mrb[0].mxu0
          %v5070 = vadd.f32 0.0, %v5069
          %v5071 = vpop.f32.mrb[0].mxu0
          %v5072 = vpop.f32.mrb[0].mxu0
          %v5073 = vadd.f32 0.0, %v5072
          %v5074 = vpop.f32.mrb[0].mxu0
          %5075 = vmatprep.mubr.bf16.mxu0 0
          %5076 = vmatmul.mubr.bf16.gmra.mrb[0].mxu0 %v4489
          %v5077 = vpop.f32.mrb[0].mxu0
          %v5078 = vadd.f32 0.0, %v5077
          %v5079 = vpop.f32.mrb[0].mxu0
          %v5080 = vpop.f32.mrb[0].mxu0
          %v5081 = vadd.f32 0.0, %v5080
          %v5082 = vpop.f32.mrb[0].mxu0
          %5083 = vmatprep.mubr.bf16.mxu0 0
          %5084 = vmatmul.mubr.bf16.gmra.mrb[0].mxu0 %v4492
          %v5085 = vpop.f32.mrb[0].mxu0
          %v5086 = vadd.f32 0.0, %v5085
          %v5087 = vpop.f32.mrb[0].mxu0
          %v5088 = vpop.f32.mrb[0].mxu0
          %v5089 = vadd.f32 0.0, %v5088
          %v5090 = vpop.f32.mrb[0].mxu0
          %5091 = vmatprep.mubr.bf16.mxu0 0
          %5092 = vmatmul.mubr.bf16.gmra.mrb[0].mxu0 %v4495
          %v5093 = vpop.f32.mrb[0].mxu0
          %v5094 = vadd.f32 0.0, %v5093
          %v5095 = vpop.f32.mrb[0].mxu0
          %v5096 = vpop.f32.mrb[0].mxu0
          %v5097 = vadd.f32 0.0, %v5096
          %v5098 = vpop.f32.mrb[0].mxu0
          %5099 = vmatprep.mubr.bf16.mxu0 0
          %5100 = vmatmul.mubr.bf16.gmra.mrb[0].mxu0 %v4498
          %v5101 = vpop.f32.mrb[0].mxu0
          %v5102 = vadd.f32 0.0, %v5101
          %v5103 = vpop.f32.mrb[0].mxu0
          %v5104 = vpop.f32.mrb[0].mxu0
          %v5105 = vadd.f32 0.0, %v5104
          %v5106 = vpop.f32.mrb[0].mxu0
          %5107 = vmatprep.mubr.bf16.mxu0 0
          %5108 = vmatmul.mubr.bf16.gmra.mrb[0].mxu0 %v4501
          %v5109 = vpop.f32.mrb[0].mxu0
          %v5110 = vadd.f32 0.0, %v5109
          %v5111 = vpop.f32.mrb[0].mxu0
          %v5112 = vpop.f32.mrb[0].mxu0
          %v5113 = vadd.f32 0.0, %v5112
          %v5114 = vpop.f32.mrb[0].mxu0
          %5115 = vmatprep.mubr.bf16.mxu0 0
          %5116 = vmatmul.mubr.bf16.gmra.mrb[0].mxu0 %v4504
          %v5117 = vpop.f32.mrb[0].mxu0
          %v5118 = vadd.f32 0.0, %v5117
          %v5119 = vpop.f32.mrb[0].mxu0
          %v5120 = vpop.f32.mrb[0].mxu0
          %v5121 = vadd.f32 0.0, %v5120
          %v5122 = vpop.f32.mrb[0].mxu0
          %5123 = vmatprep.mubr.bf16.mxu0 0
          %5124 = vmatmul.mubr.bf16.gmra.mrb[0].mxu0 %v4507
          %v5125 = vpop.f32.mrb[0].mxu0
          %v5126 = vadd.f32 0.0, %v5125
          %v5127 = vpop.f32.mrb[0].mxu0
          %v5128 = vpop.f32.mrb[0].mxu0
          %v5129 = vadd.f32 0.0, %v5128
          %v5130 = vpop.f32.mrb[0].mxu0
          %5131 = vmatprep.mubr.bf16.mxu0 0
          %5132 = vmatmul.mubr.bf16.gmra.mrb[0].mxu0 %v4510
          %v5133 = vpop.f32.mrb[0].mxu0
          %v5134 = vadd.f32 0.0, %v5133
          %v5135 = vpop.f32.mrb[0].mxu0
          %v5136 = vpop.f32.mrb[0].mxu0
          %v5137 = vadd.f32 0.0, %v5136
          %v5138 = vpop.f32.mrb[0].mxu0
          %5139 = vmatprep.mubr.bf16.mxu0 0
          %5140 = vmatmul.mubr.bf16.gmra.mrb[0].mxu0 %v4513
          %v5141 = vpop.f32.mrb[0].mxu0
          %v5142 = vadd.f32 0.0, %v5141
          %v5143 = vpop.f32.mrb[0].mxu0
          %v5144 = vpop.f32.mrb[0].mxu0
          %v5145 = vadd.f32 0.0, %v5144
          %v5146 = vpop.f32.mrb[0].mxu0
          %5147 = vmatprep.mubr.bf16.mxu0 0
          %5148 = vmatmul.mubr.bf16.gmra.mrb[0].mxu0 %v4516
          %v5149 = vpop.f32.mrb[0].mxu0
          %v5150 = vadd.f32 0.0, %v5149
          %v5151 = vpop.f32.mrb[0].mxu0
          %v5152 = vpop.f32.mrb[0].mxu0
          %v5153 = vadd.f32 0.0, %v5152
          %v5154 = vpop.f32.mrb[0].mxu0
          %5155 = vmatprep.mubr.bf16.mxu0 0
          %5156 = vmatmul.mubr.bf16.gmra.mrb[0].mxu0 %v4519
          %v5157 = vpop.f32.mrb[0].mxu0
          %v5158 = vadd.f32 0.0, %v5157
          %v5159 = vpop.f32.mrb[0].mxu0
          %v5160 = vpop.f32.mrb[0].mxu0
          %v5161 = vadd.f32 0.0, %v5160
          %v5162 = vpop.f32.mrb[0].mxu0
          %5163 = vmatprep.mubr.bf16.mxu0 0
          %5164 = vmatmul.mubr.bf16.gmra.mrb[0].mxu0 %v4522
          %v5165 = vpop.f32.mrb[0].mxu0
          %v5166 = vadd.f32 0.0, %v5165
          %v5167 = vpop.f32.mrb[0].mxu0
          %v5168 = vpop.f32.mrb[0].mxu0
          %v5169 = vadd.f32 0.0, %v5168
          %v5170 = vpop.f32.mrb[0].mxu0
          %5171 = vmatprep.mubr.bf16.mxu0 0
          %5172 = vmatmul.mubr.bf16.gmra.mrb[0].mxu0 %v4525
          %v5173 = vpop.f32.mrb[0].mxu0
          %v5174 = vadd.f32 0.0, %v5173
          %v5175 = vpop.f32.mrb[0].mxu0
          %v5176 = vpop.f32.mrb[0].mxu0
          %v5177 = vadd.f32 0.0, %v5176
          %v5178 = vpop.f32.mrb[0].mxu0
          %5179 = vmatprep.mubr.bf16.mxu0 0
          %5180 = vmatmul.mubr.bf16.gmra.mrb[0].mxu0 %v4528
          %v5181 = vpop.f32.mrb[0].mxu0
          %v5182 = vadd.f32 0.0, %v5181
          %v5183 = vpop.f32.mrb[0].mxu0
          %v5184 = vpop.f32.mrb[0].mxu0
          %v5185 = vadd.f32 0.0, %v5184
          %v5186 = vpop.f32.mrb[0].mxu0
          %5187 = vmatprep.mubr.bf16.mxu0 0
          %5188 = vmatmul.mubr.bf16.gmra.mrb[0].mxu0 %v4531
          %v5189 = vpop.f32.mrb[0].mxu0
          %v5190 = vadd.f32 0.0, %v5189
          %v5191 = vpop.f32.mrb[0].mxu0
          %v5192 = vpop.f32.mrb[0].mxu0
          %v5193 = vadd.f32 0.0, %v5192
          %v5194 = vpop.f32.mrb[0].mxu0
          %5195 = vmatprep.mubr.bf16.mxu0 0
          %5196 = vmatmul.mubr.bf16.gmra.mrb[0].mxu0 %v4534
          %v5197 = vpop.f32.mrb[0].mxu0
          %v5198 = vadd.f32 0.0, %v5197
          %v5199 = vpop.f32.mrb[0].mxu0
          %v5200 = vpop.f32.mrb[0].mxu0
          %v5201 = vadd.f32 0.0, %v5200
          %v5202 = vpop.f32.mrb[0].mxu0
          %5203 = vmatprep.mubr.bf16.mxu0 0
          %5204 = vmatmul.mubr.bf16.gmra.mrb[0].mxu0 %v4537
          %v5205 = vpop.f32.mrb[0].mxu0
          %v5206 = vadd.f32 0.0, %v5205
          %v5207 = vpop.f32.mrb[0].mxu0
          %v5208 = vpop.f32.mrb[0].mxu0
          %v5209 = vadd.f32 0.0, %v5208
          %v5210 = vpop.f32.mrb[0].mxu0
          %5211 = vdwg.mxu0
          %v5212 = vmul.f32 %v4574, %v4574
          %v5213 = vmul.f32 %v4577, %v4577
          %v5214 = vmul.f32 %v4582, %v4582
          %v5215 = vmul.f32 %v4585, %v4585
          %v5216 = vmul.f32 %v4590, %v4590
          %v5217 = vmul.f32 %v4593, %v4593
          %v5218 = vmul.f32 %v4598, %v4598
          %v5219 = vmul.f32 %v4601, %v4601
          %v5220 = vmul.f32 %v4606, %v4606
          %v5221 = vmul.f32 %v4609, %v4609
          %v5222 = vmul.f32 %v4614, %v4614
          %v5223 = vmul.f32 %v4617, %v4617
          %v5224 = vmul.f32 %v4622, %v4622
          %v5225 = vmul.f32 %v4625, %v4625
          %v5226 = vmul.f32 %v4630, %v4630
          %v5227 = vmul.f32 %v4633, %v4633
          %v5228 = vmul.f32 %v4638, %v4638
          %v5229 = vmul.f32 %v4641, %v4641
          %v5230 = vmul.f32 %v4646, %v4646
          %v5231 = vmul.f32 %v4649, %v4649
          %v5232 = vmul.f32 %v4654, %v4654
          %v5233 = vmul.f32 %v4657, %v4657
          %v5234 = vmul.f32 %v4662, %v4662
          %v5235 = vmul.f32 %v4665, %v4665
          %v5236 = vmul.f32 %v4670, %v4670
          %v5237 = vmul.f32 %v4673, %v4673
          %v5238 = vmul.f32 %v4678, %v4678
          %v5239 = vmul.f32 %v4681, %v4681
          %v5240 = vmul.f32 %v4686, %v4686
          %v5241 = vmul.f32 %v4689, %v4689
          %v5242 = vmul.f32 %v4694, %v4694
          %v5243 = vmul.f32 %v4697, %v4697
          %v5244 = vmul.f32 %v4702, %v4702
          %v5245 = vmul.f32 %v4705, %v4705
          %v5246 = vmul.f32 %v4710, %v4710
          %v5247 = vmul.f32 %v4713, %v4713
          %v5248 = vmul.f32 %v4718, %v4718
          %v5249 = vmul.f32 %v4721, %v4721
          %v5250 = vmul.f32 %v4726, %v4726
          %v5251 = vmul.f32 %v4729, %v4729
          %v5252 = vmul.f32 %v4734, %v4734
          %v5253 = vmul.f32 %v4737, %v4737
          %v5254 = vmul.f32 %v4742, %v4742
          %v5255 = vmul.f32 %v4745, %v4745
          %v5256 = vmul.f32 %v4750, %v4750
          %v5257 = vmul.f32 %v4753, %v4753
          %v5258 = vmul.f32 %v4758, %v4758
          %v5259 = vmul.f32 %v4761, %v4761
          %v5260 = vmul.f32 %v4766, %v4766
          %v5261 = vmul.f32 %v4769, %v4769
          %v5262 = vmul.f32 %v4774, %v4774
          %v5263 = vmul.f32 %v4777, %v4777
          %v5264 = vmul.f32 %v4782, %v4782
          %v5265 = vmul.f32 %v4785, %v4785
          %v5266 = vmul.f32 %v4790, %v4790
          %v5267 = vmul.f32 %v4793, %v4793
          %v5268 = vmul.f32 %v4798, %v4798
          %v5269 = vmul.f32 %v4801, %v4801
          %v5270 = vmul.f32 %v4806, %v4806
          %v5271 = vmul.f32 %v4809, %v4809
          %v5272 = vmul.f32 %v4814, %v4814
          %v5273 = vmul.f32 %v4817, %v4817
          %v5274 = vmul.f32 %v4822, %v4822
          %v5275 = vmul.f32 %v4825, %v4825
          %v5276 = vmul.f32 %v4574, %v4702
          %v5277 = vmul.f32 %v4577, %v4705
          %v5278 = vmul.f32 %v4582, %v4710
          %v5279 = vmul.f32 %v4585, %v4713
          %v5280 = vmul.f32 %v4590, %v4718
          %v5281 = vmul.f32 %v4593, %v4721
          %v5282 = vmul.f32 %v4598, %v4726
          %v5283 = vmul.f32 %v4601, %v4729
          %v5284 = vmul.f32 %v4606, %v4734
          %v5285 = vmul.f32 %v4609, %v4737
          %v5286 = vmul.f32 %v4614, %v4742
          %v5287 = vmul.f32 %v4617, %v4745
          %v5288 = vmul.f32 %v4622, %v4750
          %v5289 = vmul.f32 %v4625, %v4753
          %v5290 = vmul.f32 %v4630, %v4758
          %v5291 = vmul.f32 %v4633, %v4761
          %v5292 = vmul.f32 %v4638, %v4766
          %v5293 = vmul.f32 %v4641, %v4769
          %v5294 = vmul.f32 %v4646, %v4774
          %v5295 = vmul.f32 %v4649, %v4777
          %v5296 = vmul.f32 %v4654, %v4782
          %v5297 = vmul.f32 %v4657, %v4785
          %v5298 = vmul.f32 %v4662, %v4790
          %v5299 = vmul.f32 %v4665, %v4793
          %v5300 = vmul.f32 %v4670, %v4798
          %v5301 = vmul.f32 %v4673, %v4801
          %v5302 = vmul.f32 %v4678, %v4806
          %v5303 = vmul.f32 %v4681, %v4809
          %v5304 = vmul.f32 %v4686, %v4814
          %v5305 = vmul.f32 %v4689, %v4817
          %v5306 = vmul.f32 %v4694, %v4822
          %v5307 = vmul.f32 %v4697, %v4825
          %v5308 = vsub.f32 %v4830, %v5212
          %v5309 = vsub.f32 %v4833, %v5213
          %v5310 = vsub.f32 %v4838, %v5214
          %v5311 = vsub.f32 %v4841, %v5215
          %v5312 = vsub.f32 %v4846, %v5216
          %v5313 = vsub.f32 %v4849, %v5217
          %v5314 = vsub.f32 %v4854, %v5218
          %v5315 = vsub.f32 %v4857, %v5219
          %v5316 = vsub.f32 %v4862, %v5220
          %v5317 = vsub.f32 %v4865, %v5221
          %v5318 = vsub.f32 %v4870, %v5222
          %v5319 = vsub.f32 %v4873, %v5223
          %v5320 = vsub.f32 %v4878, %v5224
          %v5321 = vsub.f32 %v4881, %v5225
          %v5322 = vsub.f32 %v4886, %v5226
          %v5323 = vsub.f32 %v4889, %v5227
          %v5324 = vsub.f32 %v4894, %v5228
          %v5325 = vsub.f32 %v4897, %v5229
          %v5326 = vsub.f32 %v4902, %v5230
          %v5327 = vsub.f32 %v4905, %v5231
          %v5328 = vsub.f32 %v4910, %v5232
          %v5329 = vsub.f32 %v4913, %v5233
          %v5330 = vsub.f32 %v4918, %v5234
          %v5331 = vsub.f32 %v4921, %v5235
          %v5332 = vsub.f32 %v4926, %v5236
          %v5333 = vsub.f32 %v4929, %v5237
          %v5334 = vsub.f32 %v4934, %v5238
          %v5335 = vsub.f32 %v4937, %v5239
          %v5336 = vsub.f32 %v4942, %v5240
          %v5337 = vsub.f32 %v4945, %v5241
          %v5338 = vsub.f32 %v4950, %v5242
          %v5339 = vsub.f32 %v4953, %v5243
          %v5340 = vsub.f32 %v4958, %v5244
          %v5341 = vsub.f32 %v4961, %v5245
          %v5342 = vsub.f32 %v4966, %v5246
          %v5343 = vsub.f32 %v4969, %v5247
          %v5344 = vsub.f32 %v4974, %v5248
          %v5345 = vsub.f32 %v4977, %v5249
          %v5346 = vsub.f32 %v4982, %v5250
          %v5347 = vsub.f32 %v4985, %v5251
          %v5348 = vsub.f32 %v4990, %v5252
          %v5349 = vsub.f32 %v4993, %v5253
          %v5350 = vsub.f32 %v4998, %v5254
          %v5351 = vsub.f32 %v5001, %v5255
          %v5352 = vsub.f32 %v5006, %v5256
          %v5353 = vsub.f32 %v5009, %v5257
          %v5354 = vsub.f32 %v5014, %v5258
          %v5355 = vsub.f32 %v5017, %v5259
          %v5356 = vsub.f32 %v5022, %v5260
          %v5357 = vsub.f32 %v5025, %v5261
          %v5358 = vsub.f32 %v5030, %v5262
          %v5359 = vsub.f32 %v5033, %v5263
          %v5360 = vsub.f32 %v5038, %v5264
          %v5361 = vsub.f32 %v5041, %v5265
          %v5362 = vsub.f32 %v5046, %v5266
          %v5363 = vsub.f32 %v5049, %v5267
          %v5364 = vsub.f32 %v5054, %v5268
          %v5365 = vsub.f32 %v5057, %v5269
          %v5366 = vsub.f32 %v5062, %v5270
          %v5367 = vsub.f32 %v5065, %v5271
          %v5368 = vsub.f32 %v5070, %v5272
          %v5369 = vsub.f32 %v5073, %v5273
          %v5370 = vsub.f32 %v5078, %v5274
          %v5371 = vsub.f32 %v5081, %v5275
          %v5372 = vsub.f32 %v5086, %v5276
          %v5373 = vsub.f32 %v5089, %v5277
          %v5374 = vsub.f32 %v5094, %v5278
          %v5375 = vsub.f32 %v5097, %v5279
          %v5376 = vsub.f32 %v5102, %v5280
          %v5377 = vsub.f32 %v5105, %v5281
          %v5378 = vsub.f32 %v5110, %v5282
          %v5379 = vsub.f32 %v5113, %v5283
          %v5380 = vsub.f32 %v5118, %v5284
          %v5381 = vsub.f32 %v5121, %v5285
          %v5382 = vsub.f32 %v5126, %v5286
          %v5383 = vsub.f32 %v5129, %v5287
          %v5384 = vsub.f32 %v5134, %v5288
          %v5385 = vsub.f32 %v5137, %v5289
          %v5386 = vsub.f32 %v5142, %v5290
          %v5387 = vsub.f32 %v5145, %v5291
          %v5388 = vsub.f32 %v5150, %v5292
          %v5389 = vsub.f32 %v5153, %v5293
          %v5390 = vsub.f32 %v5158, %v5294
          %v5391 = vsub.f32 %v5161, %v5295
          %v5392 = vsub.f32 %v5166, %v5296
          %v5393 = vsub.f32 %v5169, %v5297
          %v5394 = vsub.f32 %v5174, %v5298
          %v5395 = vsub.f32 %v5177, %v5299
          %v5396 = vsub.f32 %v5182, %v5300
          %v5397 = vsub.f32 %v5185, %v5301
          %v5398 = vsub.f32 %v5190, %v5302
          %v5399 = vsub.f32 %v5193, %v5303
          %v5400 = vsub.f32 %v5198, %v5304
          %v5401 = vsub.f32 %v5201, %v5305
          %v5402 = vsub.f32 %v5206, %v5306
          %v5403 = vsub.f32 %v5209, %v5307
          %v5404 = vmul.f32 %v5276, 2.0
          %v5405 = vmul.f32 %v5277, 2.0
          %v5406 = vmul.f32 %v5278, 2.0
          %v5407 = vmul.f32 %v5279, 2.0
          %v5408 = vmul.f32 %v5280, 2.0
          %v5409 = vmul.f32 %v5281, 2.0
          %v5410 = vmul.f32 %v5282, 2.0
          %v5411 = vmul.f32 %v5283, 2.0
          %v5412 = vmul.f32 %v5284, 2.0
          %v5413 = vmul.f32 %v5285, 2.0
          %v5414 = vmul.f32 %v5286, 2.0
          %v5415 = vmul.f32 %v5287, 2.0
          %v5416 = vmul.f32 %v5288, 2.0
          %v5417 = vmul.f32 %v5289, 2.0
          %v5418 = vmul.f32 %v5290, 2.0
          %v5419 = vmul.f32 %v5291, 2.0
          %v5420 = vmul.f32 %v5292, 2.0
          %v5421 = vmul.f32 %v5293, 2.0
          %v5422 = vmul.f32 %v5294, 2.0
          %v5423 = vmul.f32 %v5295, 2.0
          %v5424 = vmul.f32 %v5296, 2.0
          %v5425 = vmul.f32 %v5297, 2.0
          %v5426 = vmul.f32 %v5298, 2.0
          %v5427 = vmul.f32 %v5299, 2.0
          %v5428 = vmul.f32 %v5300, 2.0
          %v5429 = vmul.f32 %v5301, 2.0
          %v5430 = vmul.f32 %v5302, 2.0
          %v5431 = vmul.f32 %v5303, 2.0
          %v5432 = vmul.f32 %v5304, 2.0
          %v5433 = vmul.f32 %v5305, 2.0
          %v5434 = vmul.f32 %v5306, 2.0
          %v5435 = vmul.f32 %v5307, 2.0
          %v5436 = vadd.f32 %v5404, 0.0001
          %v5437 = vadd.f32 %v5405, 0.0001
          %v5438 = vadd.f32 %v5406, 0.0001
          %v5439 = vadd.f32 %v5407, 0.0001
          %v5440 = vadd.f32 %v5408, 0.0001
          %v5441 = vadd.f32 %v5409, 0.0001
          %v5442 = vadd.f32 %v5410, 0.0001
          %v5443 = vadd.f32 %v5411, 0.0001
          %v5444 = vadd.f32 %v5412, 0.0001
          %v5445 = vadd.f32 %v5413, 0.0001
          %v5446 = vadd.f32 %v5414, 0.0001
          %v5447 = vadd.f32 %v5415, 0.0001
          %v5448 = vadd.f32 %v5416, 0.0001
          %v5449 = vadd.f32 %v5417, 0.0001
          %v5450 = vadd.f32 %v5418, 0.0001
          %v5451 = vadd.f32 %v5419, 0.0001
          %v5452 = vadd.f32 %v5420, 0.0001
          %v5453 = vadd.f32 %v5421, 0.0001
          %v5454 = vadd.f32 %v5422, 0.0001
          %v5455 = vadd.f32 %v5423, 0.0001
          %v5456 = vadd.f32 %v5424, 0.0001
          %v5457 = vadd.f32 %v5425, 0.0001
          %v5458 = vadd.f32 %v5426, 0.0001
          %v5459 = vadd.f32 %v5427, 0.0001
          %v5460 = vadd.f32 %v5428, 0.0001
          %v5461 = vadd.f32 %v5429, 0.0001
          %v5462 = vadd.f32 %v5430, 0.0001
          %v5463 = vadd.f32 %v5431, 0.0001
          %v5464 = vadd.f32 %v5432, 0.0001
          %v5465 = vadd.f32 %v5433, 0.0001
          %v5466 = vadd.f32 %v5434, 0.0001
          %v5467 = vadd.f32 %v5435, 0.0001
          %v5468 = vmul.f32 %v5372, 2.0
          %v5469 = vmul.f32 %v5373, 2.0
          %v5470 = vmul.f32 %v5374, 2.0
          %v5471 = vmul.f32 %v5375, 2.0
          %v5472 = vmul.f32 %v5376, 2.0
          %v5473 = vmul.f32 %v5377, 2.0
          %v5474 = vmul.f32 %v5378, 2.0
          %v5475 = vmul.f32 %v5379, 2.0
          %v5476 = vmul.f32 %v5380, 2.0
          %v5477 = vmul.f32 %v5381, 2.0
          %v5478 = vmul.f32 %v5382, 2.0
          %v5479 = vmul.f32 %v5383, 2.0
          %v5480 = vmul.f32 %v5384, 2.0
          %v5481 = vmul.f32 %v5385, 2.0
          %v5482 = vmul.f32 %v5386, 2.0
          %v5483 = vmul.f32 %v5387, 2.0
          %v5484 = vmul.f32 %v5388, 2.0
          %v5485 = vmul.f32 %v5389, 2.0
          %v5486 = vmul.f32 %v5390, 2.0
          %v5487 = vmul.f32 %v5391, 2.0
          %v5488 = vmul.f32 %v5392, 2.0
          %v5489 = vmul.f32 %v5393, 2.0
          %v5490 = vmul.f32 %v5394, 2.0
          %v5491 = vmul.f32 %v5395, 2.0
          %v5492 = vmul.f32 %v5396, 2.0
          %v5493 = vmul.f32 %v5397, 2.0
          %v5494 = vmul.f32 %v5398, 2.0
          %v5495 = vmul.f32 %v5399, 2.0
          %v5496 = vmul.f32 %v5400, 2.0
          %v5497 = vmul.f32 %v5401, 2.0
          %v5498 = vmul.f32 %v5402, 2.0
          %v5499 = vmul.f32 %v5403, 2.0
          %v5500 = vadd.f32 %v5468, 0.0009
          %v5501 = vadd.f32 %v5469, 0.0009
          %v5502 = vadd.f32 %v5470, 0.0009
          %v5503 = vadd.f32 %v5471, 0.0009
          %v5504 = vadd.f32 %v5472, 0.0009
          %v5505 = vadd.f32 %v5473, 0.0009
          %v5506 = vadd.f32 %v5474, 0.0009
          %v5507 = vadd.f32 %v5475, 0.0009
          %v5508 = vadd.f32 %v5476, 0.0009
          %v5509 = vadd.f32 %v5477, 0.0009
          %v5510 = vadd.f32 %v5478, 0.0009
          %v5511 = vadd.f32 %v5479, 0.0009
          %v5512 = vadd.f32 %v5480, 0.0009
          %v5513 = vadd.f32 %v5481, 0.0009
          %v5514 = vadd.f32 %v5482, 0.0009
          %v5515 = vadd.f32 %v5483, 0.0009
          %v5516 = vadd.f32 %v5484, 0.0009
          %v5517 = vadd.f32 %v5485, 0.0009
          %v5518 = vadd.f32 %v5486, 0.0009
          %v5519 = vadd.f32 %v5487, 0.0009
          %v5520 = vadd.f32 %v5488, 0.0009
          %v5521 = vadd.f32 %v5489, 0.0009
          %v5522 = vadd.f32 %v5490, 0.0009
          %v5523 = vadd.f32 %v5491, 0.0009
          %v5524 = vadd.f32 %v5492, 0.0009
          %v5525 = vadd.f32 %v5493, 0.0009
          %v5526 = vadd.f32 %v5494, 0.0009
          %v5527 = vadd.f32 %v5495, 0.0009
          %v5528 = vadd.f32 %v5496, 0.0009
          %v5529 = vadd.f32 %v5497, 0.0009
          %v5530 = vadd.f32 %v5498, 0.0009
          %v5531 = vadd.f32 %v5499, 0.0009
          %v5532 = vmul.f32 %v5436, %v5500
          %v5533 = vmul.f32 %v5437, %v5501
          %v5534 = vmul.f32 %v5438, %v5502
          %v5535 = vmul.f32 %v5439, %v5503
          %v5536 = vmul.f32 %v5440, %v5504
          %v5537 = vmul.f32 %v5441, %v5505
          %v5538 = vmul.f32 %v5442, %v5506
          %v5539 = vmul.f32 %v5443, %v5507
          %v5540 = vmul.f32 %v5444, %v5508
          %v5541 = vmul.f32 %v5445, %v5509
          %v5542 = vmul.f32 %v5446, %v5510
          %v5543 = vmul.f32 %v5447, %v5511
          %v5544 = vmul.f32 %v5448, %v5512
          %v5545 = vmul.f32 %v5449, %v5513
          %v5546 = vmul.f32 %v5450, %v5514
          %v5547 = vmul.f32 %v5451, %v5515
          %v5548 = vmul.f32 %v5452, %v5516
          %v5549 = vmul.f32 %v5453, %v5517
          %v5550 = vmul.f32 %v5454, %v5518
          %v5551 = vmul.f32 %v5455, %v5519
          %v5552 = vmul.f32 %v5456, %v5520
          %v5553 = vmul.f32 %v5457, %v5521
          %v5554 = vmul.f32 %v5458, %v5522
          %v5555 = vmul.f32 %v5459, %v5523
          %v5556 = vmul.f32 %v5460, %v5524
          %v5557 = vmul.f32 %v5461, %v5525
          %v5558 = vmul.f32 %v5462, %v5526
          %v5559 = vmul.f32 %v5463, %v5527
          %v5560 = vmul.f32 %v5464, %v5528
          %v5561 = vmul.f32 %v5465, %v5529
          %v5562 = vmul.f32 %v5466, %v5530
          %v5563 = vmul.f32 %v5467, %v5531
          %v5564 = vadd.f32 %v5212, %v5244
          %v5565 = vadd.f32 %v5213, %v5245
          %v5566 = vadd.f32 %v5214, %v5246
          %v5567 = vadd.f32 %v5215, %v5247
          %v5568 = vadd.f32 %v5216, %v5248
          %v5569 = vadd.f32 %v5217, %v5249
          %v5570 = vadd.f32 %v5218, %v5250
          %v5571 = vadd.f32 %v5219, %v5251
          %v5572 = vadd.f32 %v5220, %v5252
          %v5573 = vadd.f32 %v5221, %v5253
          %v5574 = vadd.f32 %v5222, %v5254
          %v5575 = vadd.f32 %v5223, %v5255
          %v5576 = vadd.f32 %v5224, %v5256
          %v5577 = vadd.f32 %v5225, %v5257
          %v5578 = vadd.f32 %v5226, %v5258
          %v5579 = vadd.f32 %v5227, %v5259
          %v5580 = vadd.f32 %v5228, %v5260
          %v5581 = vadd.f32 %v5229, %v5261
          %v5582 = vadd.f32 %v5230, %v5262
          %v5583 = vadd.f32 %v5231, %v5263
          %v5584 = vadd.f32 %v5232, %v5264
          %v5585 = vadd.f32 %v5233, %v5265
          %v5586 = vadd.f32 %v5234, %v5266
          %v5587 = vadd.f32 %v5235, %v5267
          %v5588 = vadd.f32 %v5236, %v5268
          %v5589 = vadd.f32 %v5237, %v5269
          %v5590 = vadd.f32 %v5238, %v5270
          %v5591 = vadd.f32 %v5239, %v5271
          %v5592 = vadd.f32 %v5240, %v5272
          %v5593 = vadd.f32 %v5241, %v5273
          %v5594 = vadd.f32 %v5242, %v5274
          %v5595 = vadd.f32 %v5243, %v5275
          %v5596 = vadd.f32 %v5564, 0.0001
          %v5597 = vadd.f32 %v5565, 0.0001
          %v5598 = vadd.f32 %v5566, 0.0001
          %v5599 = vadd.f32 %v5567, 0.0001
          %v5600 = vadd.f32 %v5568, 0.0001
          %v5601 = vadd.f32 %v5569, 0.0001
          %v5602 = vadd.f32 %v5570, 0.0001
          %v5603 = vadd.f32 %v5571, 0.0001
          %v5604 = vadd.f32 %v5572, 0.0001
          %v5605 = vadd.f32 %v5573, 0.0001
          %v5606 = vadd.f32 %v5574, 0.0001
          %v5607 = vadd.f32 %v5575, 0.0001
          %v5608 = vadd.f32 %v5576, 0.0001
          %v5609 = vadd.f32 %v5577, 0.0001
          %v5610 = vadd.f32 %v5578, 0.0001
          %v5611 = vadd.f32 %v5579, 0.0001
          %v5612 = vadd.f32 %v5580, 0.0001
          %v5613 = vadd.f32 %v5581, 0.0001
          %v5614 = vadd.f32 %v5582, 0.0001
          %v5615 = vadd.f32 %v5583, 0.0001
          %v5616 = vadd.f32 %v5584, 0.0001
          %v5617 = vadd.f32 %v5585, 0.0001
          %v5618 = vadd.f32 %v5586, 0.0001
          %v5619 = vadd.f32 %v5587, 0.0001
          %v5620 = vadd.f32 %v5588, 0.0001
          %v5621 = vadd.f32 %v5589, 0.0001
          %v5622 = vadd.f32 %v5590, 0.0001
          %v5623 = vadd.f32 %v5591, 0.0001
          %v5624 = vadd.f32 %v5592, 0.0001
          %v5625 = vadd.f32 %v5593, 0.0001
          %v5626 = vadd.f32 %v5594, 0.0001
          %v5627 = vadd.f32 %v5595, 0.0001
          %v5628 = vadd.f32 %v5308, %v5340
          %v5629 = vadd.f32 %v5309, %v5341
          %v5630 = vadd.f32 %v5310, %v5342
          %v5631 = vadd.f32 %v5311, %v5343
          %v5632 = vadd.f32 %v5312, %v5344
          %v5633 = vadd.f32 %v5313, %v5345
          %v5634 = vadd.f32 %v5314, %v5346
          %v5635 = vadd.f32 %v5315, %v5347
          %v5636 = vadd.f32 %v5316, %v5348
          %v5637 = vadd.f32 %v5317, %v5349
          %v5638 = vadd.f32 %v5318, %v5350
          %v5639 = vadd.f32 %v5319, %v5351
          %v5640 = vadd.f32 %v5320, %v5352
          %v5641 = vadd.f32 %v5321, %v5353
          %v5642 = vadd.f32 %v5322, %v5354
          %v5643 = vadd.f32 %v5323, %v5355
          %v5644 = vadd.f32 %v5324, %v5356
          %v5645 = vadd.f32 %v5325, %v5357
          %v5646 = vadd.f32 %v5326, %v5358
          %v5647 = vadd.f32 %v5327, %v5359
          %v5648 = vadd.f32 %v5328, %v5360
          %v5649 = vadd.f32 %v5329, %v5361
          %v5650 = vadd.f32 %v5330, %v5362
          %v5651 = vadd.f32 %v5331, %v5363
          %v5652 = vadd.f32 %v5332, %v5364
          %v5653 = vadd.f32 %v5333, %v5365
          %v5654 = vadd.f32 %v5334, %v5366
          %v5655 = vadd.f32 %v5335, %v5367
          %v5656 = vadd.f32 %v5336, %v5368
          %v5657 = vadd.f32 %v5337, %v5369
          %v5658 = vadd.f32 %v5338, %v5370
          %v5659 = vadd.f32 %v5339, %v5371
          %v5660 = vadd.f32 %v5628, 0.0009
          %v5661 = vadd.f32 %v5629, 0.0009
          %v5662 = vadd.f32 %v5630, 0.0009
          %v5663 = vadd.f32 %v5631, 0.0009
          %v5664 = vadd.f32 %v5632, 0.0009
          %v5665 = vadd.f32 %v5633, 0.0009
          %v5666 = vadd.f32 %v5634, 0.0009
          %v5667 = vadd.f32 %v5635, 0.0009
          %v5668 = vadd.f32 %v5636, 0.0009
          %v5669 = vadd.f32 %v5637, 0.0009
          %v5670 = vadd.f32 %v5638, 0.0009
          %v5671 = vadd.f32 %v5639, 0.0009
          %v5672 = vadd.f32 %v5640, 0.0009
          %v5673 = vadd.f32 %v5641, 0.0009
          %v5674 = vadd.f32 %v5642, 0.0009
          %v5675 = vadd.f32 %v5643, 0.0009
          %v5676 = vadd.f32 %v5644, 0.0009
          %v5677 = vadd.f32 %v5645, 0.0009
          %v5678 = vadd.f32 %v5646, 0.0009
          %v5679 = vadd.f32 %v5647, 0.0009
          %v5680 = vadd.f32 %v5648, 0.0009
          %v5681 = vadd.f32 %v5649, 0.0009
          %v5682 = vadd.f32 %v5650, 0.0009
          %v5683 = vadd.f32 %v5651, 0.0009
          %v5684 = vadd.f32 %v5652, 0.0009
          %v5685 = vadd.f32 %v5653, 0.0009
          %v5686 = vadd.f32 %v5654, 0.0009
          %v5687 = vadd.f32 %v5655, 0.0009
          %v5688 = vadd.f32 %v5656, 0.0009
          %v5689 = vadd.f32 %v5657, 0.0009
          %v5690 = vadd.f32 %v5658, 0.0009
          %v5691 = vadd.f32 %v5659, 0.0009
          %v5692 = vmul.f32 %v5596, %v5660
          %v5693 = vmul.f32 %v5597, %v5661
          %v5694 = vmul.f32 %v5598, %v5662
          %v5695 = vmul.f32 %v5599, %v5663
          %v5696 = vmul.f32 %v5600, %v5664
          %v5697 = vmul.f32 %v5601, %v5665
          %v5698 = vmul.f32 %v5602, %v5666
          %v5699 = vmul.f32 %v5603, %v5667
          %v5700 = vmul.f32 %v5604, %v5668
          %v5701 = vmul.f32 %v5605, %v5669
          %v5702 = vmul.f32 %v5606, %v5670
          %v5703 = vmul.f32 %v5607, %v5671
          %v5704 = vmul.f32 %v5608, %v5672
          %v5705 = vmul.f32 %v5609, %v5673
          %v5706 = vmul.f32 %v5610, %v5674
          %v5707 = vmul.f32 %v5611, %v5675
          %v5708 = vmul.f32 %v5612, %v5676
          %v5709 = vmul.f32 %v5613, %v5677
          %v5710 = vmul.f32 %v5614, %v5678
          %v5711 = vmul.f32 %v5615, %v5679
          %v5712 = vmul.f32 %v5616, %v5680
          %v5713 = vmul.f32 %v5617, %v5681
          %v5714 = vmul.f32 %v5618, %v5682
          %v5715 = vmul.f32 %v5619, %v5683
          %v5716 = vmul.f32 %v5620, %v5684
          %v5717 = vmul.f32 %v5621, %v5685
          %v5718 = vmul.f32 %v5622, %v5686
          %v5719 = vmul.f32 %v5623, %v5687
          %v5720 = vmul.f32 %v5624, %v5688
          %v5721 = vmul.f32 %v5625, %v5689
          %v5722 = vmul.f32 %v5626, %v5690
          %v5723 = vmul.f32 %v5627, %v5691
          %v5724 = vrcp.pop %v5692
          %v5725 = vrcp.pop %v5693
          %v5726 = vrcp.pop %v5694
          %v5727 = vrcp.pop %v5695
          %v5728 = vrcp.pop %v5696
          %v5729 = vrcp.pop %v5697
          %v5730 = vrcp.pop %v5698
          %v5731 = vrcp.pop %v5699
          %v5732 = vrcp.pop %v5700
          %v5733 = vrcp.pop %v5701
          %v5734 = vrcp.pop %v5702
          %v5735 = vrcp.pop %v5703
          %v5736 = vrcp.pop %v5704
          %v5737 = vrcp.pop %v5705
          %v5738 = vrcp.pop %v5706
          %v5739 = vrcp.pop %v5707
          %v5740 = vrcp.pop %v5708
          %v5741 = vrcp.pop %v5709
          %v5742 = vrcp.pop %v5710
          %v5743 = vrcp.pop %v5711
          %v5744 = vrcp.pop %v5712
          %v5745 = vrcp.pop %v5713
          %v5746 = vrcp.pop %v5714
          %v5747 = vrcp.pop %v5715
          %v5748 = vrcp.pop %v5716
          %v5749 = vrcp.pop %v5717
          %v5750 = vrcp.pop %v5718
          %v5751 = vrcp.pop %v5719
          %v5752 = vrcp.pop %v5720
          %v5753 = vrcp.pop %v5721
          %v5754 = vrcp.pop %v5722
          %v5755 = vrcp.pop %v5723
          %v5756 = vmul.f32 %v5532, %v5724
          %v5757 = vmul.f32 %v5533, %v5725
          %v5758 = vmul.f32 %v5534, %v5726
          %v5759 = vmul.f32 %v5535, %v5727
          %v5760 = vmul.f32 %v5536, %v5728
          %v5761 = vmul.f32 %v5537, %v5729
          %v5762 = vmul.f32 %v5538, %v5730
          %v5763 = vmul.f32 %v5539, %v5731
          %v5764 = vmul.f32 %v5540, %v5732
          %v5765 = vmul.f32 %v5541, %v5733
          %v5766 = vmul.f32 %v5542, %v5734
          %v5767 = vmul.f32 %v5543, %v5735
          %v5768 = vmul.f32 %v5544, %v5736
          %v5769 = vmul.f32 %v5545, %v5737
          %v5770 = vmul.f32 %v5546, %v5738
          %v5771 = vmul.f32 %v5547, %v5739
          %v5772 = vmul.f32 %v5548, %v5740
          %v5773 = vmul.f32 %v5549, %v5741
          %v5774 = vmul.f32 %v5550, %v5742
          %v5775 = vmul.f32 %v5551, %v5743
          %v5776 = vmul.f32 %v5552, %v5744
          %v5777 = vmul.f32 %v5553, %v5745
          %v5778 = vmul.f32 %v5554, %v5746
          %v5779 = vmul.f32 %v5555, %v5747
          %v5780 = vmul.f32 %v5556, %v5748
          %v5781 = vmul.f32 %v5557, %v5749
          %v5782 = vmul.f32 %v5558, %v5750
          %v5783 = vmul.f32 %v5559, %v5751
          %v5784 = vmul.f32 %v5560, %v5752
          %v5785 = vmul.f32 %v5561, %v5753
          %v5786 = vmul.f32 %v5562, %v5754
          %v5787 = vmul.f32 %v5563, %v5755
          %v5788 = vld [vmem:[%s342] sm:$0x1]
          %v5789 = vld [vmem:[%s342 + $0x1] sm:$0x1]
          %v5790 = vld [vmem:[%s342 + $0x2] sm:$0x1]
          %v5791 = vld [vmem:[%s342 + $0x3] sm:$0x1]
          %v5796 = vlaneseq
          %v5797 = vshrl.u32 %v5796, 7
          %v5798 = vsub.s32 0, %v5797
          %v5799 = vrot.slane %v5788, %v5798
          %v5800 = vlaneseq
          %v5801 = vshrl.u32 %v5800, 7
          %v5802 = vsub.s32 0, %v5801
          %v5803 = vrot.slane %v5789, %v5802
          %v5804 = vlaneseq
          %v5805 = vshrl.u32 %v5804, 7
          %v5806 = vsub.s32 0, %v5805
          %v5807 = vrot.slane %v5790, %v5806
          %v5808 = vlaneseq
          %v5809 = vshrl.u32 %v5808, 7
          %v5810 = vsub.s32 0, %v5809
          %v5811 = vrot.slane %v5791, %v5810
          %5812 = vset.pattern.permute.xlu0 0
          %5813 = vperm.xlu0 %5812, %v5799
          %v5814 = vpop.permute.xlu0 %5813
          %5816 = vset.pattern.permute.xlu0 0
          %5817 = vperm.xlu0 %5816, %v5803
          %v5818 = vpop.permute.xlu0 %5817
          %5820 = vset.pattern.permute.xlu0 0
          %5821 = vperm.xlu0 %5820, %v5807
          %v5822 = vpop.permute.xlu0 %5821
          %5824 = vset.pattern.permute.xlu0 0
          %5825 = vperm.xlu0 %5824, %v5811
          %v5826 = vpop.permute.xlu0 %5825
          %v5828 = vmul.f32 %v5756, %v5814
          %v5829 = vmul.f32 %v5757, %v5814
          %v5830 = vmul.f32 %v5758, %v5814
          %v5831 = vmul.f32 %v5759, %v5814
          %v5832 = vmul.f32 %v5760, %v5814
          %v5833 = vmul.f32 %v5761, %v5814
          %v5834 = vmul.f32 %v5762, %v5814
          %v5835 = vmul.f32 %v5763, %v5814
          %v5836 = vmul.f32 %v5764, %v5818
          %v5837 = vmul.f32 %v5765, %v5818
          %v5838 = vmul.f32 %v5766, %v5818
          %v5839 = vmul.f32 %v5767, %v5818
          %v5840 = vmul.f32 %v5768, %v5818
          %v5841 = vmul.f32 %v5769, %v5818
          %v5842 = vmul.f32 %v5770, %v5818
          %v5843 = vmul.f32 %v5771, %v5818
          %v5844 = vmul.f32 %v5772, %v5822
          %v5845 = vmul.f32 %v5773, %v5822
          %v5846 = vmul.f32 %v5774, %v5822
          %v5847 = vmul.f32 %v5775, %v5822
          %v5848 = vmul.f32 %v5776, %v5822
          %v5849 = vmul.f32 %v5777, %v5822
          %v5850 = vmul.f32 %v5778, %v5822
          %v5851 = vmul.f32 %v5779, %v5822
          %v5852 = vmul.f32 %v5780, %v5826
          %v5853 = vmul.f32 %v5781, %v5826
          %v5854 = vmul.f32 %v5782, %v5826
          %v5855 = vmul.f32 %v5783, %v5826
          %v5856 = vmul.f32 %v5784, %v5826
          %v5857 = vmul.f32 %v5785, %v5826
          %v5858 = vmul.f32 %v5786, %v5826
          %v5859 = vmul.f32 %v5787, %v5826
          %v5860 = vsel %vm473, %v5828, 0.0
          %v5861 = vsel %vm473, %v5829, 0.0
          %v5862 = vadd.f32 %v5860, %v5861
          %v5863 = vsel %vm473, %v5830, 0.0
          %v5864 = vadd.f32 %v5862, %v5863
          %v5865 = vsel %vm473, %v5831, 0.0
          %v5866 = vadd.f32 %v5864, %v5865
          %v5867 = vsel %vm473, %v5832, 0.0
          %v5868 = vadd.f32 %v5866, %v5867
          %v5869 = vsel %vm473, %v5833, 0.0
          %v5870 = vadd.f32 %v5868, %v5869
          %v5871 = vsel %vm473, %v5834, 0.0
          %v5872 = vadd.f32 %v5870, %v5871
          %v5873 = vsel %vm473, %v5835, 0.0
          %v5874 = vadd.f32 %v5872, %v5873
          %v5875 = vsel %vm473, %v5836, 0.0
          %v5876 = vadd.f32 %v5874, %v5875
          %v5877 = vsel %vm473, %v5837, 0.0
          %v5878 = vadd.f32 %v5876, %v5877
          %v5879 = vsel %vm473, %v5838, 0.0
          %v5880 = vadd.f32 %v5878, %v5879
          %v5881 = vsel %vm473, %v5839, 0.0
          %v5882 = vadd.f32 %v5880, %v5881
          %v5883 = vsel %vm473, %v5840, 0.0
          %v5884 = vadd.f32 %v5882, %v5883
          %v5885 = vsel %vm473, %v5841, 0.0
          %v5886 = vadd.f32 %v5884, %v5885
          %v5887 = vsel %vm473, %v5842, 0.0
          %v5888 = vadd.f32 %v5886, %v5887
          %v5889 = vsel %vm473, %v5843, 0.0
          %v5890 = vadd.f32 %v5888, %v5889
          %v5891 = vsel %vm473, %v5844, 0.0
          %v5892 = vadd.f32 %v5890, %v5891
          %v5893 = vsel %vm473, %v5845, 0.0
          %v5894 = vadd.f32 %v5892, %v5893
          %v5895 = vsel %vm473, %v5846, 0.0
          %v5896 = vadd.f32 %v5894, %v5895
          %v5897 = vsel %vm473, %v5847, 0.0
          %v5898 = vadd.f32 %v5896, %v5897
          %v5899 = vsel %vm473, %v5848, 0.0
          %v5900 = vadd.f32 %v5898, %v5899
          %v5901 = vsel %vm473, %v5849, 0.0
          %v5902 = vadd.f32 %v5900, %v5901
          %v5903 = vsel %vm473, %v5850, 0.0
          %v5904 = vadd.f32 %v5902, %v5903
          %v5905 = vsel %vm473, %v5851, 0.0
          %v5906 = vadd.f32 %v5904, %v5905
          %v5907 = vsel %vm473, %v5852, 0.0
          %v5908 = vadd.f32 %v5906, %v5907
          %v5909 = vsel %vm473, %v5853, 0.0
          %v5910 = vadd.f32 %v5908, %v5909
          %v5911 = vsel %vm473, %v5854, 0.0
          %v5912 = vadd.f32 %v5910, %v5911
          %v5913 = vsel %vm473, %v5855, 0.0
          %v5914 = vadd.f32 %v5912, %v5913
          %v5915 = vsel %vm473, %v5856, 0.0
          %v5916 = vadd.f32 %v5914, %v5915
          %v5917 = vsel %vm473, %v5857, 0.0
          %v5918 = vadd.f32 %v5916, %v5917
          %v5919 = vsel %vm473, %v5858, 0.0
          %v5920 = vadd.f32 %v5918, %v5919
          %v5921 = vsel %vm473, %v5859, 0.0
          %v5922 = vadd.f32 %v5920, %v5921
          %5923 = vadd.xlane.f32.xlu0 %v5922
          %v5924 = vpop.xlane.xlu0 %5923
          %v5925 = vrot.slane %v5924, 4
          %v5926 = vadd.f32 %v5924, %v5925
          %v5927 = vrot.slane %v5926, 2
          %v5928 = vadd.f32 %v5926, %v5927
          %v5929 = vrot.slane %v5928, 1
          %v5930 = vadd.f32 %v5928, %v5929
          %s5931 = vtos %v5930
          %v5932 = vstv %s5931
          %5933 = vst [vmem:[%s336] sm:$0xff] %v5932
        $region52: #{tpu_custom_call.1} parent=39 // pred_fallthru
          _
        %s5934 = sand.u32 %s158, 1
        %s5935 = scalar_lea.sflag [#allocation4], %s5934
        %s5936 = sand.u32 %s158, 1
        %s5937 = smul.addr %s5936, 8
        %s5938 = scalar_lea.vmem [#allocation7], %s5937
        %s5939 = sand.u32 %s184, 1
        %s5940 = scalar_lea.sflag [#allocation9], %s5939
        %s5941 = sand.u32 %s184, 1
        %s5942 = smul.addr %s5941, 8
        %s5943 = scalar_lea.vmem [#allocation8], %s5942
        // Predicated region
        $region53: #{tpu_custom_call.1} parent=39 // pred_check
          %p5944 = pneg %p168
        $region54: #{tpu_custom_call.1} parent=39 // pred_check_branch
          %5946 = sbr.rel (%p5944) target = $region56
        $region55: #{tpu_custom_call.1} parent=39 // pred_region
          %s5948 = ssub.s32 128, 128
          %5949 = vsyncadd %s5935, %s5948
          %s5950 = smul.addr %s30, 128
          %s5951 = scalar_lea.hbm %s5, %s5950
          %s5953 = sshll.u32 %s5938, 4
          %s5954 = int_to_ptr.vmem [resolvable:$true] %s5953
          %5956 = dma.vmem_to_hbm [thread:$0]  %s5954, 128, %s5951, %s5935
        $region56: #{tpu_custom_call.1} parent=39 // pred_fallthru
          _
        // Predicated region
        $region57: #{tpu_custom_call.1} parent=39 // pred_check
          %p5957 = pneg %p194
        $region58: #{tpu_custom_call.1} parent=39 // pred_check_branch
          %5959 = sbr.rel (%p5957) target = $region60
        $region59: #{tpu_custom_call.1} parent=39 // pred_region
          %s5961 = ssub.s32 128, 128
          %5962 = vsyncadd %s5940, %s5961
          %s5963 = smul.addr %s30, 128
          %s5964 = scalar_lea.hbm %s6, %s5963
          %s5966 = sshll.u32 %s5943, 4
          %s5967 = int_to_ptr.vmem [resolvable:$true] %s5966
          %5969 = dma.vmem_to_hbm [thread:$0]  %s5967, 128, %s5964, %s5940
        $region60: #{tpu_custom_call.1} parent=39 // pred_fallthru
          _
      $region40: #{tpu_custom_call.1} parent=5 // pred_fallthru
        _
      %p5970 = scmp.le.s32.totalorder 2, %s25
      // Predicated region
      $region61: #{tpu_custom_call.1} parent=5 // pred_check
        %p5971 = pneg %p5970
      $region62: #{tpu_custom_call.1} parent=5 // pred_check_branch
        %5973 = sbr.rel (%p5971) target = $region64
      $region63: #{tpu_custom_call.1} parent=5 // pred_region
        %s5974 = ssub.s32 %s25, 2
        // Predicated region
        $region65: #{tpu_custom_call.1} parent=63 // pred_check
          %p5975 = pneg %p174
        $region66: #{tpu_custom_call.1} parent=63 // pred_check_branch
          %5977 = sbr.rel (%p5975) target = $region68
        $region67: #{tpu_custom_call.1} parent=63 // pred_region
          %s5978 = sand.u32 %s159, 1
          %s5979 = scalar_lea.sflag [#allocation4], %s5978
          %s5980 = sand.u32 %s159, 1
          %s5981 = smul.addr %s5980, 8
          %s5982 = scalar_lea.vmem [#allocation7], %s5981
          %5983 = dma.done %s5979, 128
        $region68: #{tpu_custom_call.1} parent=63 // pred_fallthru
          _
        // Predicated region
        $region69: #{tpu_custom_call.1} parent=63 // pred_check
          %p5984 = pneg %p200
        $region70: #{tpu_custom_call.1} parent=63 // pred_check_branch
          %5986 = sbr.rel (%p5984) target = $region72
        $region71: #{tpu_custom_call.1} parent=63 // pred_region
          %s5987 = sand.u32 %s185, 1
          %s5988 = scalar_lea.sflag [#allocation9], %s5987
          %s5989 = sand.u32 %s185, 1
          %s5990 = smul.addr %s5989, 8
          %s5991 = scalar_lea.vmem [#allocation8], %s5990
          %5992 = dma.done %s5988, 128
        $region72: #{tpu_custom_call.1} parent=63 // pred_fallthru
          _
      $region64: #{tpu_custom_call.1} parent=5 // pred_fallthru
        _
    $region6: #{tpu_custom_call.1} parent=1 // loop_footer
      %s29 = sadd.s32 1, %s25
    $region7: #{tpu_custom_call.1} parent=1 // loop_footer_branch
      %24 = sbr.rel target = $region3
    $region8: #{tpu_custom_call.1} parent=1 // loop_exit
      _
    %5993 = vsyncpa [#allocation3], 1
    %s5994 = scalar_lea.sflag [#allocation3], 1
    %5995 = vsyncpa %s5994, 1
    %5996 = vsyncpa [#allocation6], 1
    %s5997 = scalar_lea.sflag [#allocation6], 1
    %5998 = vsyncpa %s5997, 1
    %5999 = vsyncpa [#allocation4], 1
    %s6000 = scalar_lea.sflag [#allocation4], 1
    %6001 = vsyncpa %s6000, 1
    %6002 = vsyncpa [#allocation9], 1
    %s6003 = scalar_lea.sflag [#allocation9], 1
    %6004 = vsyncpa %s6003, 1

</llo_original>
